<compile_context>
chip_gen: v7x
topology: tpu7x:2x2x1
jax: 0.10.0
libtpu: 0.0.40
codegen_flags: <defaults>
</compile_context>

<pallas_src>
import functools

import jax
import jax.numpy as jnp
from jax.experimental import pallas as pl
from jax.experimental.pallas import tpu as pltpu


# ---------------------------------------------------------------------------
# In-kernel helpers
# ---------------------------------------------------------------------------

def _pool_sum(x):
    """Sum over the spatial (lane) axis -> (nb, C, 1) with f32 accumulation.

    f32 input : plain sum (already f32; reduce-adds are ~1 VALU pass, hidden under DMA).
    bf16 etc. : MXU dot against a ones column (single pass, exact products, f32 acc),
                which removes the whole-block cast pass and the XLU lane reduce.
    """
    if x.dtype == jnp.float32:
        return jnp.sum(x, axis=2, keepdims=True)
    ones = jnp.ones((x.shape[0], x.shape[2], 1), dtype=x.dtype)
    return jax.lax.dot_general(
        x, ones,
        dimension_numbers=(((2,), (1,)), ((0,), (0,))),
        preferred_element_type=jnp.float32)


def _gate(pooled, w1, b1, w2, b2):
    """conv1(ReLU) + conv2(Sigmoid) on pooled (nb, C, 1) f32 -> gate (nb, C, 1) f32.

    Batched 3-D dots keep the channel axis in sublanes end-to-end (no relayout before
    the broadcast multiply).  Matrices are tiny, so HIGHEST precision is free.
    """
    nb = pooled.shape[0]
    mid, c = w1.shape
    hi = jax.lax.Precision.HIGHEST

    w1b = jnp.broadcast_to(w1[None], (nb, mid, c))
    h = jax.lax.dot_general(w1b, pooled, (((2,), (1,)), ((0,), (0,))),
                            precision=hi, preferred_element_type=jnp.float32)
    h = jnp.maximum(h + b1[None], 0.0)                       # (nb, mid, 1)

    w2b = jnp.broadcast_to(w2[None], (nb, c, mid))
    s = jax.lax.dot_general(w2b, h, (((2,), (1,)), ((0,), (0,))),
                            precision=hi, preferred_element_type=jnp.float32)
    return jax.nn.sigmoid(s + b2[None])                      # (nb, c, 1)


# ---------------------------------------------------------------------------
# Main (single pallas_call) kernel: whole (C, HW) slab per sample fits in VMEM
# ---------------------------------------------------------------------------

def _sw_kernel(inv_hw, x_ref, w1_ref, b1_ref, w2_ref, b2_ref, o_ref):
    x = x_ref[...]                                           # (Nb, C, HW), activation dtype
    pooled = _pool_sum(x) * inv_hw                           # (Nb, C, 1) f32
    s = _gate(pooled, w1_ref[...], b1_ref[...], w2_ref[...], b2_ref[...])
    o_ref[...] = x * s.astype(x.dtype)                       # broadcast over spatial lanes


# ---------------------------------------------------------------------------
# Fallback kernels: spatial-tiled two-pass path for large C*HW slabs
# ---------------------------------------------------------------------------

def _sw_pool_gate_kernel(hw_true, x_ref, w1_ref, b1_ref, w2_ref, b2_ref, s_ref, acc_ref):
    """Pass A: accumulate the pooled sum over spatial tiles, emit the gate at the end."""
    t = pl.program_id(1)
    n_t = pl.num_programs(1)
    x = x_ref[...]                                           # (1, C, T)
    tile = x.shape[2]

    @pl.when(t == 0)
    def _():
        acc_ref[...] = jnp.zeros_like(acc_ref)

    @pl.when(t < n_t - 1)
    def _():
        acc_ref[...] += _pool_sum(x)

    @pl.when(t == n_t - 1)
    def _():
        # Last tile may be ragged: zero lanes beyond the true spatial extent so the
        # (garbage-padded) tail does not bias the pooled mean.
        lane = jax.lax.broadcasted_iota(jnp.int32, x.shape, 2) + t * tile
        xm = jnp.where(lane < hw_true, x, jnp.zeros_like(x))
        pooled = (acc_ref[...] + _pool_sum(xm)) * (1.0 / float(hw_true))
        s_ref[...] = _gate(pooled, w1_ref[...], b1_ref[...], w2_ref[...], b2_ref[...])


def _sw_apply_gate_kernel(x_ref, s_ref, o_ref):
    """Pass B: apply the per-channel gate, tiled over the spatial axis."""
    x = x_ref[...]                                           # (1, C, T)
    o_ref[...] = x * s_ref[...].astype(x.dtype)              # s: (1, C, 1) f32


# ---------------------------------------------------------------------------
# Trace-time hardware / block-size heuristics
# ---------------------------------------------------------------------------

def _tpu_params():
    """(vmem_capacity_bytes, num_tensorcores) with safe fallbacks."""
    vmem_cap = 64 << 20                                      # conservative (v7x per-TC)
    try:
        vmem_cap = int(pltpu.get_tpu_info().vmem_capacity_bytes)
    except Exception:
        pass
    kind = ""
    try:
        kind = jax.devices()[0].device_kind.lower()
    except Exception:
        pass
    num_tc = 2 if ("v7" in kind or "7x" in kind) else 1      # v5e/v6e: 1 TC; v7x: 2 TCs
    return vmem_cap, num_tc


def _pick_batch_block(n, per_item_bytes, max_block_bytes, num_tc):
    """Pick the batch block Nb (non-divisors allowed; ragged last block is clipped).

    Minimizes a rough wall-time model: clipped-DMA bytes on the busiest TensorCore
    (blocks are split contiguously across TCs) plus ~0.35us per grid step.  This makes
    single-TC parts take one big block and v7x prefer balanced / even grids.
    """
    max_nb = int(max(1, min(n, max_block_bytes // max(1, per_item_bytes))))
    t_item = 2.0 * per_item_bytes / 1.0e6                    # ~us to stream one sample in+out
    t_step = 0.35                                            # ~us per grid step
    best_nb, best_cost = 1, None
    for nb in range(1, max_nb + 1):
        g = -(-n // nb)
        sizes = [nb] * (g - 1) + [n - (g - 1) * nb]          # real items per block (clipped)
        half = -(-g // num_tc)
        wall = 0.0
        for c0 in range(num_tc):
            mine = sizes[c0 * half:(c0 + 1) * half]
            wall = max(wall, sum(mine) * t_item + len(mine) * t_step)
        if (best_cost is None or wall < best_cost - 1e-9
                or (abs(wall - best_cost) <= 1e-9 and nb > best_nb)):
            best_nb, best_cost = nb, wall
    return best_nb


# ---------------------------------------------------------------------------
# Wrappers
# ---------------------------------------------------------------------------

def _spatial_weighting_tiled(x, w1f, b1c, w2f, b2c, max_block_bytes, vmem_cap):
    """Two-pass spatial-tiled fallback for slabs that don't fit VMEM."""
    N, C, HW = x.shape
    mid = w1f.shape[0]
    dtype = x.dtype
    esize = jnp.dtype(dtype).itemsize

    t = max(1, max_block_bytes // (C * esize))
    t = max(128, (t // 128) * 128)                           # lane-aligned spatial tile
    t = min(t, ((HW + 127) // 128) * 128)
    n_t = pl.cdiv(HW, t)
    blk = C * t * esize
    weight_bytes = 2 * 4 * (w1f.size + w2f.size + b1c.size + b2c.size)

    # Pass A: pooled accumulator + gate computation (reduction axis last, "arbitrary").
    gates = pl.pallas_call(
        functools.partial(_sw_pool_gate_kernel, HW),
        out_shape=jax.ShapeDtypeStruct((N, C, 1), jnp.float32),
        grid_spec=pltpu.PrefetchScalarGridSpec(
            num_scalar_prefetch=0,
            grid=(N, n_t),
            in_specs=[
                pl.BlockSpec((1, C, t), lambda n, k: (n, 0, k)),
                pl.BlockSpec((mid, C), lambda n, k: (0, 0)),
                pl.BlockSpec((mid, 1), lambda n, k: (0, 0)),
                pl.BlockSpec((C, mid), lambda n, k: (0, 0)),
                pl.BlockSpec((C, 1), lambda n, k: (0, 0)),
            ],
            out_specs=pl.BlockSpec((1, C, 1), lambda n, k: (n, 0, 0)),
            scratch_shapes=[pltpu.VMEM((1, C, 1), jnp.float32)],
        ),
        compiler_params=pltpu.CompilerParams(
            dimension_semantics=("parallel", "arbitrary"),
            vmem_limit_bytes=int(min(vmem_cap,
                                     max(2 * blk + weight_bytes + (4 << 20), 16 << 20))),
        ),
    )(x, w1f, b1c, w2f, b2c)

    # Pass B: gating, fully parallel over (sample, spatial tile).
    out = pl.pallas_call(
        _sw_apply_gate_kernel,
        out_shape=jax.ShapeDtypeStruct((N, C, HW), dtype),
        grid_spec=pltpu.PrefetchScalarGridSpec(
            num_scalar_prefetch=0,
            grid=(N, n_t),
            in_specs=[
                pl.BlockSpec((1, C, t), lambda n, k: (n, 0, k)),
                pl.BlockSpec((1, C, 1), lambda n, k: (n, 0, 0)),
            ],
            out_specs=pl.BlockSpec((1, C, t), lambda n, k: (n, 0, k)),
        ),
        compiler_params=pltpu.CompilerParams(
            dimension_semantics=("parallel", "parallel"),
            vmem_limit_bytes=int(min(vmem_cap, max(4 * blk + (4 << 20), 16 << 20))),
        ),
    )(x, gates)
    return out


def spatial_weighting(x_nchw, w1, b1, w2, b2, *, block_bytes_override=None):
    """x_nchw: (N, C, H, W).  w1: (mid, C), b1: (mid,), w2: (C, mid), b2: (C,)."""
    N, C, H, W = x_nchw.shape
    HW = H * W
    mid = w1.shape[0]
    dtype = x_nchw.dtype
    esize = jnp.dtype(dtype).itemsize

    # No padding / slicing: the spatial axis keeps its true extent (full-extent block dim).
    x = x_nchw.reshape(N, C, HW)

    # FC parameters: f32, in the (channel-in-sublane) orientation the kernel uses.
    w1f = w1.astype(jnp.float32)                        # (mid, C)
    w2f = w2.astype(jnp.float32)                        # (C, mid)
    b1c = b1.reshape(mid, 1).astype(jnp.float32)        # (mid, 1)
    b2c = b2.reshape(C, 1).astype(jnp.float32)          # (C, 1)

    vmem_cap, num_tc = _tpu_params()
    weight_bytes = 2 * 4 * (w1f.size + w2f.size + b1c.size + b2c.size)

    # Generation-aware block budget: ~16 MiB blocks on single-TC 128-MiB parts,
    # ~8 MiB on v7x; 4x(block) + weights kept well inside the physical VMEM.
    usable = int(vmem_cap) * 3 // 4
    target = (8 << 20) if num_tc > 1 else (16 << 20)
    max_block_bytes = min(target, max(0, (usable - weight_bytes - (2 << 20)) // 4))
    if block_bytes_override is not None:
        max_block_bytes = int(block_bytes_override)

    per_item_bytes = C * HW * esize

    if per_item_bytes > max_block_bytes:
        # Single sample slab does not fit: spatial-tiled two-pass fallback.
        out = _spatial_weighting_tiled(x, w1f, b1c, w2f, b2c,
                                       max(max_block_bytes, 1), vmem_cap)
        return out.reshape(N, C, H, W)

    Nb = _pick_batch_block(N, per_item_bytes, max_block_bytes, num_tc)
    grid_n = pl.cdiv(N, Nb)
    block_bytes = Nb * per_item_bytes

    # Deeper pipelining only when blocks are tiny and the grid is long.
    deep = (block_bytes < (1 << 20)) and (grid_n >= 8)
    nbuf = 3 if deep else 2
    if deep:
        x_in_spec = pl.BlockSpec((Nb, C, HW), lambda n: (n, 0, 0),
                                 pipeline_mode=pl.Buffered(3))
        x_out_spec = pl.BlockSpec((Nb, C, HW), lambda n: (n, 0, 0),
                                  pipeline_mode=pl.Buffered(3))
    else:
        x_in_spec = pl.BlockSpec((Nb, C, HW), lambda n: (n, 0, 0))
        x_out_spec = pl.BlockSpec((Nb, C, HW), lambda n: (n, 0, 0))

    vmem_limit = int(min(vmem_cap,
                         max(2 * nbuf * block_bytes + weight_bytes + (2 << 20), 16 << 20)))

    cost = pl.CostEstimate(
        flops=3 * N * C * HW + 4 * N * C * mid,             # pool + gate mul + tiny FCs
        transcendentals=N * C,                              # sigmoid
        bytes_accessed=2 * N * C * HW * esize + weight_bytes,
    )

    out = pl.pallas_call(
        functools.partial(_sw_kernel, 1.0 / float(HW)),
        out_shape=jax.ShapeDtypeStruct((N, C, HW), dtype),
        grid_spec=pltpu.PrefetchScalarGridSpec(
            num_scalar_prefetch=0,
            grid=(grid_n,),
            in_specs=[
                x_in_spec,                                   # x: Nb samples per step
                pl.BlockSpec((mid, C), lambda n: (0, 0)),    # conv1 weight (resident)
                pl.BlockSpec((mid, 1), lambda n: (0, 0)),    # conv1 bias
                pl.BlockSpec((C, mid), lambda n: (0, 0)),    # conv2 weight (resident)
                pl.BlockSpec((C, 1), lambda n: (0, 0)),      # conv2 bias
            ],
            out_specs=x_out_spec,
        ),
        compiler_params=pltpu.CompilerParams(
            dimension_semantics=("parallel",),
            vmem_limit_bytes=vmem_limit,
        ),
        cost_estimate=cost,
    )(x, w1f, b1c, w2f, b2c)

    return out.reshape(N, C, H, W)


# ---------------------------------------------------------------------------
# Pure-JAX reference and self-test
# ---------------------------------------------------------------------------

def _reference(x, w1, b1, w2, b2):
    hi = jax.lax.Precision.HIGHEST
    x = x.astype(jnp.float32)
    pooled = jnp.mean(x, axis=(2, 3), keepdims=True)                      # (N,C,1,1)
    h = jnp.einsum('oc,ncij->noij', w1, pooled, precision=hi) + b1[None, :, None, None]
    h = jnp.maximum(h, 0.0)
    s = jnp.einsum('oc,ncij->noij', w2, h, precision=hi) + b2[None, :, None, None]
    return x * jax.nn.sigmoid(s)


if __name__ == "__main__":
    # channels=64, ratio=16 -> mid = 4 bottleneck channels.
    N, C, ratio = 2, 64, 16
    mid = C // ratio

    key = jax.random.PRNGKey(0)
    kx, k1, k2, k3, k4, kx2, kx3 = jax.random.split(key, 7)
    w1 = 0.1 * jax.random.normal(k1, (mid, C), dtype=jnp.float32)   # conv1.weight (mid,C,1,1)
    b1 = 0.1 * jax.random.normal(k2, (mid,), dtype=jnp.float32)     # conv1.bias
    w2 = 0.1 * jax.random.normal(k3, (C, mid), dtype=jnp.float32)   # conv2.weight (C,mid,1,1)
    b2 = 0.1 * jax.random.normal(k4, (C,), dtype=jnp.float32)       # conv2.bias

    # Case 1: lane-aligned spatial size (16x16 = 256), f32, single-call path.
    x = jax.random.normal(kx, (N, C, 16, 16), dtype=jnp.float32)
    y = jax.block_until_ready(spatial_weighting(x, w1, b1, w2, b2))
    y_ref = _reference(x, w1, b1, w2, b2)
    assert y.shape == x.shape
    assert jnp.allclose(y, y_ref, atol=1e-5, rtol=1e-5), "f32 aligned mismatch"

    # Case 2: non-128-aligned spatial size (7x7 = 49) with NO wrapper pad/slice.
    x7 = jax.random.normal(kx2, (N, C, 7, 7), dtype=jnp.float32)
    y7 = jax.block_until_ready(spatial_weighting(x7, w1, b1, w2, b2))
    y7_ref = _reference(x7, w1, b1, w2, b2)
    assert jnp.allclose(y7, y7_ref, atol=1e-5, rtol=1e-5), "f32 unaligned mismatch"

    # Case 3: bf16 activations end-to-end (pool via MXU, FC math in f32 inside the kernel).
    xb = x.astype(jnp.bfloat16)
    yb = jax.block_until_ready(spatial_weighting(xb, w1, b1, w2, b2))
    assert yb.dtype == jnp.bfloat16 and yb.shape == x.shape
    assert jnp.allclose(yb.astype(jnp.float32), y_ref, atol=3e-2, rtol=3e-2), "bf16 mismatch"

    # Case 4: force the spatial-tiled two-pass fallback (small VMEM budget) with a ragged
    # last spatial tile (20*20 = 400 = 3*128 + 16), f32.
    xt = jax.random.normal(kx3, (N, C, 20, 20), dtype=jnp.float32)
    yt = jax.block_until_ready(
        spatial_weighting(xt, w1, b1, w2, b2, block_bytes_override=32 * 1024))
    yt_ref = _reference(xt, w1, b1, w2, b2)
    assert jnp.allclose(yt, yt_ref, atol=1e-5, rtol=1e-5), "tiled fallback mismatch"

    print("KERNEL_OK")
</pallas_src>

<mosaic_0001>
module attributes {stable_mosaic.version = 11 : i64} {
  func.func @_sw_kernel(%arg0: i32, %arg1: memref<2x64x256xf32, #tpu.memory_space<vmem>>, %arg2: memref<4x64xf32, #tpu.memory_space<vmem>>, %arg3: memref<4x1xf32, #tpu.memory_space<vmem>>, %arg4: memref<64x4xf32, #tpu.memory_space<vmem>>, %arg5: memref<64x1xf32, #tpu.memory_space<vmem>>, %arg6: memref<2x64x256xf32, #tpu.memory_space<vmem>>) attributes {dimension_semantics = [#tpu.dimension_semantics<parallel>], iteration_bounds = array<i64: 1>, scalar_prefetch = 0 : i64, scratch_operands = 0 : i64, tpu.core_type = #tpu.core_type<tc>, window_params = [{transform_indices = @transform_0, window_bounds = array<i64: 2, 64, 256>}, {pipeline_mode = #tpu.pipeline_mode<synchronous>, transform_indices = @transform_1, window_bounds = array<i64: 4, 64>}, {pipeline_mode = #tpu.pipeline_mode<synchronous>, transform_indices = @transform_2, window_bounds = array<i64: 4, 1>}, {pipeline_mode = #tpu.pipeline_mode<synchronous>, transform_indices = @transform_3, window_bounds = array<i64: 64, 4>}, {pipeline_mode = #tpu.pipeline_mode<synchronous>, transform_indices = @transform_4, window_bounds = array<i64: 64, 1>}, {transform_indices = @transform_5, window_bounds = array<i64: 2, 64, 256>}]} {
    %c0 = arith.constant 0 : index
    %c0_0 = arith.constant 0 : index
    %c0_1 = arith.constant 0 : index
    %0 = vector.load %arg1[%c0, %c0_0, %c0_1] : memref<2x64x256xf32, #tpu.memory_space<vmem>>, vector<2x64x256xf32>
    %cst = arith.constant dense<0.000000e+00> : vector<2x64xf32>
    %1 = vector.multi_reduction <add>, %0, %cst [2] : vector<2x64x256xf32> to vector<2x64xf32>
    %2 = vector.shape_cast %1 : vector<2x64xf32> to vector<2x64x1xf32>
    %cst_2 = arith.constant 3.906250e-03 : f32
    %3 = vector.broadcast %cst_2 : f32 to vector<2x64x1xf32>
    %4 = arith.mulf %2, %3 : vector<2x64x1xf32>
    %c0_3 = arith.constant 0 : index
    %c0_4 = arith.constant 0 : index
    %5 = vector.load %arg2[%c0_3, %c0_4] : memref<4x64xf32, #tpu.memory_space<vmem>>, vector<4x64xf32>
    %c0_5 = arith.constant 0 : index
    %c0_6 = arith.constant 0 : index
    %6 = vector.load %arg3[%c0_5, %c0_6] : memref<4x1xf32, #tpu.memory_space<vmem>>, vector<4x1xf32>
    %c0_7 = arith.constant 0 : index
    %c0_8 = arith.constant 0 : index
    %7 = vector.load %arg4[%c0_7, %c0_8] : memref<64x4xf32, #tpu.memory_space<vmem>>, vector<64x4xf32>
    %c0_9 = arith.constant 0 : index
    %c0_10 = arith.constant 0 : index
    %8 = vector.load %arg5[%c0_9, %c0_10] : memref<64x1xf32, #tpu.memory_space<vmem>>, vector<64x1xf32>
    %9 = vector.shape_cast %5 : vector<4x64xf32> to vector<1x4x64xf32>
    %10 = vector.shape_cast %9 : vector<1x4x64xf32> to vector<1x4x64xf32>
    %11 = vector.broadcast %10 : vector<1x4x64xf32> to vector<2x4x64xf32>
    %cst_11 = arith.constant dense<0.000000e+00> : vector<2x4x1xf32>
    %12 = tpu.matmul %11, %4, %cst_11 {dimension_numbers = #tpu.dot_dimension_numbers<[2], [1], [1], [2], [0, 0, 0, 1, 1, 2], [0], [0]>, precision = #tpu.contract_precision<fp32>} : vector<2x4x64xf32>, vector<2x64x1xf32>, vector<2x4x1xf32> -> vector<2x4x1xf32>
    %13 = vector.shape_cast %6 : vector<4x1xf32> to vector<1x4x1xf32>
    %14 = vector.broadcast %13 : vector<1x4x1xf32> to vector<2x4x1xf32>
    %15 = arith.addf %12, %14 : vector<2x4x1xf32>
    %cst_12 = arith.constant 0.000000e+00 : f32
    %16 = vector.broadcast %cst_12 : f32 to vector<2x4x1xf32>
    %17 = arith.maximumf %15, %16 : vector<2x4x1xf32>
    %18 = vector.shape_cast %7 : vector<64x4xf32> to vector<1x64x4xf32>
    %19 = vector.shape_cast %18 : vector<1x64x4xf32> to vector<1x64x4xf32>
    %20 = vector.broadcast %19 : vector<1x64x4xf32> to vector<2x64x4xf32>
    %cst_13 = arith.constant dense<0.000000e+00> : vector<2x64x1xf32>
    %21 = tpu.matmul %20, %17, %cst_13 {dimension_numbers = #tpu.dot_dimension_numbers<[2], [1], [1], [2], [0, 0, 0, 1, 1, 2], [0], [0]>, precision = #tpu.contract_precision<fp32>} : vector<2x64x4xf32>, vector<2x4x1xf32>, vector<2x64x1xf32> -> vector<2x64x1xf32>
    %22 = vector.shape_cast %8 : vector<64x1xf32> to vector<1x64x1xf32>
    %23 = vector.broadcast %22 : vector<1x64x1xf32> to vector<2x64x1xf32>
    %24 = arith.addf %21, %23 : vector<2x64x1xf32>
    %25 = arith.negf %24 : vector<2x64x1xf32>
    %26 = math.exp %25 : vector<2x64x1xf32>
    %cst_14 = arith.constant 1.000000e+00 : f32
    %27 = vector.broadcast %cst_14 : f32 to vector<2x64x1xf32>
    %28 = arith.addf %27, %26 : vector<2x64x1xf32>
    %29 = arith.divf %27, %28 : vector<2x64x1xf32>
    %30 = vector.broadcast %29 : vector<2x64x1xf32> to vector<2x64x256xf32>
    %31 = arith.mulf %0, %30 : vector<2x64x256xf32>
    %c0_15 = arith.constant 0 : index
    %c0_16 = arith.constant 0 : index
    %c0_17 = arith.constant 0 : index
    %32 = vector.load %arg6[%c0_15, %c0_16, %c0_17] : memref<2x64x256xf32, #tpu.memory_space<vmem>>, vector<2x64x256xf32>
    tpu.vector_store %arg6[%c0_15, %c0_16, %c0_17], %31 {strides = array<i32>} : memref<2x64x256xf32, #tpu.memory_space<vmem>>, vector<2x64x256xf32>,
    return
  }
  func.func @transform_0(%arg0: i32) -> (i32, i32, i32) {
    %c0_i32 = arith.constant 0 : i32
    %c0_i32_0 = arith.constant 0 : i32
    %c0_i32_1 = arith.constant 0 : i32
    return %arg0, %c0_i32, %c0_i32_0 : i32, i32, i32
  }
  func.func @transform_1(%arg0: i32) -> (i32, i32) {
    %c0_i32 = arith.constant 0 : i32
    %c0_i32_0 = arith.constant 0 : i32
    %c0_i32_1 = arith.constant 0 : i32
    return %c0_i32, %c0_i32_0 : i32, i32
  }
  func.func @transform_2(%arg0: i32) -> (i32, i32) {
    %c0_i32 = arith.constant 0 : i32
    %c0_i32_0 = arith.constant 0 : i32
    %c0_i32_1 = arith.constant 0 : i32
    return %c0_i32, %c0_i32_0 : i32, i32
  }
  func.func @transform_3(%arg0: i32) -> (i32, i32) {
    %c0_i32 = arith.constant 0 : i32
    %c0_i32_0 = arith.constant 0 : i32
    %c0_i32_1 = arith.constant 0 : i32
    return %c0_i32, %c0_i32_0 : i32, i32
  }
  func.func @transform_4(%arg0: i32) -> (i32, i32) {
    %c0_i32 = arith.constant 0 : i32
    %c0_i32_0 = arith.constant 0 : i32
    %c0_i32_1 = arith.constant 0 : i32
    return %c0_i32, %c0_i32_0 : i32, i32
  }
  func.func @transform_5(%arg0: i32) -> (i32, i32, i32) {
    %c0_i32 = arith.constant 0 : i32
    %c0_i32_0 = arith.constant 0 : i32
    %c0_i32_1 = arith.constant 0 : i32
    return %arg0, %c0_i32, %c0_i32_0 : i32, i32, i32
  }
}

</mosaic_0001>

<llo_original>
// kernel: tpu_custom_call.1
$region0: #{tpu_custom_call.1}
  #allocation0 [shape = 'u32[]', space=smem, size = 0x4, offset = 0x4, fixed_abs, tag = 'smem constant byte address 0x4 - core index']
  #allocation1 [shape = 'u32[144,128]{1,0:T(1,128)}', space=vmem, size = 0x12000, scoped, tag = 'internal scratch']
  %s0 = inlined_call_operand.hbm [shape: f32[2,64,256], index: 0, kind: input, shape index: {}]
  %s1 = inlined_call_operand.vmem [shape: f32[4,64], index: 1, kind: input, shape index: {}]
  %s2 = inlined_call_operand.vmem [shape: f32[4,1], index: 2, kind: input, shape index: {}]
  %s3 = inlined_call_operand.vmem [shape: f32[64,4], index: 3, kind: input, shape index: {}]
  %s4 = inlined_call_operand.vmem [shape: f32[64,1], index: 4, kind: input, shape index: {}]
  %s5 = inlined_call_operand.hbm [shape: f32[2,64,256], index: 5, kind: output, shape index: {}]
  %s6 = sld [smem:[#allocation0]]
  $region34: #{tpu_custom_call.1} parent=0
    _
  %s8 = ssub.s32 1, %s6
  %s9 = scalar_select 0, %s8, %s6
  $region1: #{tpu_custom_call.1} parent=0
    #allocation2 [shape = 'u8[131072]{0}', space=vmem, size = 0x20000, scoped, tag = 'input window, operand 0, single buffered']
    #allocation3 [shape = 's32[1]{0}', space=sflag, size = 0x4, scoped, tag = 'scoped memory for tpu_custom_call.1']
    #allocation4 [shape = 's32[1]{0}', space=sflag, size = 0x4, scoped, tag = 'scoped memory for tpu_custom_call.1']
    #allocation5 [shape = 'u8[131072]{0}', space=vmem, size = 0x20000, scoped, tag = 'output window, operand 0, single buffered']
    %10 = vsyncpa [#allocation3], 0
    %11 = vsyncpa [#allocation4], 0
    // Predicated region
    $region2: #{tpu_custom_call.1} parent=1 // pred_check
      _
    $region3: #{tpu_custom_call.1} parent=1 // pred_check_branch
      %13 = sbr.rel (0) target = $region5
    $region4: #{tpu_custom_call.1} parent=1 // pred_region
      %s15 = ssub.s32 4096, 4096
      %16 = vsyncadd [#allocation3], %s15
      %s17 = sshll.u32 [#allocation2], 4
      %s18 = int_to_ptr.vmem [resolvable:$true] %s17
      %23 = dma.hbm_to_vmem [thread:$0]  %s0, 4096, %s18, [#allocation3], 256, 256, 16
    $region5: #{tpu_custom_call.1} parent=1 // pred_fallthru
      _
    // Predicated region
    $region6: #{tpu_custom_call.1} parent=1 // pred_check
      _
    $region7: #{tpu_custom_call.1} parent=1 // pred_check_branch
      %25 = sbr.rel (0) target = $region9
    $region8: #{tpu_custom_call.1} parent=1 // pred_region
      _
    $region9: #{tpu_custom_call.1} parent=1 // pred_fallthru
      _
    // Predicated region
    $region10: #{tpu_custom_call.1} parent=1 // pred_check
      _
    $region11: #{tpu_custom_call.1} parent=1 // pred_check_branch
      %27 = sbr.rel (0) target = $region13
    $region12: #{tpu_custom_call.1} parent=1 // pred_region
      _
    $region13: #{tpu_custom_call.1} parent=1 // pred_fallthru
      _
    // Predicated region
    $region14: #{tpu_custom_call.1} parent=1 // pred_check
      _
    $region15: #{tpu_custom_call.1} parent=1 // pred_check_branch
      %29 = sbr.rel (0) target = $region17
    $region16: #{tpu_custom_call.1} parent=1 // pred_region
      _
    $region17: #{tpu_custom_call.1} parent=1 // pred_fallthru
      _
    // Predicated region
    $region18: #{tpu_custom_call.1} parent=1 // pred_check
      _
    $region19: #{tpu_custom_call.1} parent=1 // pred_check_branch
      %31 = sbr.rel (0) target = $region21
    $region20: #{tpu_custom_call.1} parent=1 // pred_region
      _
    $region21: #{tpu_custom_call.1} parent=1 // pred_fallthru
      _
    // Predicated region
    $region22: #{tpu_custom_call.1} parent=1 // pred_check
      _
    $region23: #{tpu_custom_call.1} parent=1 // pred_check_branch
      %33 = sbr.rel (0) target = $region25
    $region24: #{tpu_custom_call.1} parent=1 // pred_region
      %34 = dma.done [#allocation3], 4096
    $region25: #{tpu_custom_call.1} parent=1 // pred_fallthru
      _
    %v35 = vld [vmem:[#allocation2] sm:$0xff]
    %v36 = vld [vmem:[#allocation2 + $0x8] sm:$0xff]
    %v37 = vld [vmem:[#allocation2 + $0x10] sm:$0xff]
    %v38 = vld [vmem:[#allocation2 + $0x18] sm:$0xff]
    %v39 = vld [vmem:[#allocation2 + $0x20] sm:$0xff]
    %v40 = vld [vmem:[#allocation2 + $0x28] sm:$0xff]
    %v41 = vld [vmem:[#allocation2 + $0x30] sm:$0xff]
    %v42 = vld [vmem:[#allocation2 + $0x38] sm:$0xff]
    %v43 = vld [vmem:[#allocation2 + $0x40] sm:$0xff]
    %v44 = vld [vmem:[#allocation2 + $0x48] sm:$0xff]
    %v45 = vld [vmem:[#allocation2 + $0x50] sm:$0xff]
    %v46 = vld [vmem:[#allocation2 + $0x58] sm:$0xff]
    %v47 = vld [vmem:[#allocation2 + $0x60] sm:$0xff]
    %v48 = vld [vmem:[#allocation2 + $0x68] sm:$0xff]
    %v49 = vld [vmem:[#allocation2 + $0x70] sm:$0xff]
    %v50 = vld [vmem:[#allocation2 + $0x78] sm:$0xff]
    %v51 = vld [vmem:[#allocation2 + $0x80] sm:$0xff]
    %v52 = vld [vmem:[#allocation2 + $0x88] sm:$0xff]
    %v53 = vld [vmem:[#allocation2 + $0x90] sm:$0xff]
    %v54 = vld [vmem:[#allocation2 + $0x98] sm:$0xff]
    %v55 = vld [vmem:[#allocation2 + $0xa0] sm:$0xff]
    %v56 = vld [vmem:[#allocation2 + $0xa8] sm:$0xff]
    %v57 = vld [vmem:[#allocation2 + $0xb0] sm:$0xff]
    %v58 = vld [vmem:[#allocation2 + $0xb8] sm:$0xff]
    %v59 = vld [vmem:[#allocation2 + $0xc0] sm:$0xff]
    %v60 = vld [vmem:[#allocation2 + $0xc8] sm:$0xff]
    %v61 = vld [vmem:[#allocation2 + $0xd0] sm:$0xff]
    %v62 = vld [vmem:[#allocation2 + $0xd8] sm:$0xff]
    %v63 = vld [vmem:[#allocation2 + $0xe0] sm:$0xff]
    %v64 = vld [vmem:[#allocation2 + $0xe8] sm:$0xff]
    %v65 = vld [vmem:[#allocation2 + $0xf0] sm:$0xff]
    %v66 = vld [vmem:[#allocation2 + $0xf8] sm:$0xff]
    %v67 = vadd.f32 %v35, %v36
    %68 = vadd.xlane.f32.xlu0 %v67
    %v69 = vpop.xlane.xlu0 %68
    %v70 = vadd.f32 %v37, %v38
    %71 = vadd.xlane.f32.xlu0 %v70
    %v72 = vpop.xlane.xlu0 %71
    %v73 = vadd.f32 %v39, %v40
    %74 = vadd.xlane.f32.xlu0 %v73
    %v75 = vpop.xlane.xlu0 %74
    %v76 = vadd.f32 %v41, %v42
    %77 = vadd.xlane.f32.xlu0 %v76
    %v78 = vpop.xlane.xlu0 %77
    %v79 = vadd.f32 %v43, %v44
    %80 = vadd.xlane.f32.xlu0 %v79
    %v81 = vpop.xlane.xlu0 %80
    %v82 = vadd.f32 %v45, %v46
    %83 = vadd.xlane.f32.xlu0 %v82
    %v84 = vpop.xlane.xlu0 %83
    %v85 = vadd.f32 %v47, %v48
    %86 = vadd.xlane.f32.xlu0 %v85
    %v87 = vpop.xlane.xlu0 %86
    %v88 = vadd.f32 %v49, %v50
    %89 = vadd.xlane.f32.xlu0 %v88
    %v90 = vpop.xlane.xlu0 %89
    %v91 = vadd.f32 %v51, %v52
    %92 = vadd.xlane.f32.xlu0 %v91
    %v93 = vpop.xlane.xlu0 %92
    %v94 = vadd.f32 %v53, %v54
    %95 = vadd.xlane.f32.xlu0 %v94
    %v96 = vpop.xlane.xlu0 %95
    %v97 = vadd.f32 %v55, %v56
    %98 = vadd.xlane.f32.xlu0 %v97
    %v99 = vpop.xlane.xlu0 %98
    %v100 = vadd.f32 %v57, %v58
    %101 = vadd.xlane.f32.xlu0 %v100
    %v102 = vpop.xlane.xlu0 %101
    %v103 = vadd.f32 %v59, %v60
    %104 = vadd.xlane.f32.xlu0 %v103
    %v105 = vpop.xlane.xlu0 %104
    %v106 = vadd.f32 %v61, %v62
    %107 = vadd.xlane.f32.xlu0 %v106
    %v108 = vpop.xlane.xlu0 %107
    %v109 = vadd.f32 %v63, %v64
    %110 = vadd.xlane.f32.xlu0 %v109
    %v111 = vpop.xlane.xlu0 %110
    %v112 = vadd.f32 %v65, %v66
    %113 = vadd.xlane.f32.xlu0 %v112
    %v114 = vpop.xlane.xlu0 %113
    %v115 = vmul.f32 %v69, 0.00390625
    %v116 = vmul.f32 %v72, 0.00390625
    %v117 = vmul.f32 %v75, 0.00390625
    %v118 = vmul.f32 %v78, 0.00390625
    %v119 = vmul.f32 %v81, 0.00390625
    %v120 = vmul.f32 %v84, 0.00390625
    %v121 = vmul.f32 %v87, 0.00390625
    %v122 = vmul.f32 %v90, 0.00390625
    %v123 = vmul.f32 %v93, 0.00390625
    %v124 = vmul.f32 %v96, 0.00390625
    %v125 = vmul.f32 %v99, 0.00390625
    %v126 = vmul.f32 %v102, 0.00390625
    %v127 = vmul.f32 %v105, 0.00390625
    %v128 = vmul.f32 %v108, 0.00390625
    %v129 = vmul.f32 %v111, 0.00390625
    %v130 = vmul.f32 %v114, 0.00390625
    %v131 = vld [vmem:[%s1] sm:$0xf]
    %v132 = vld [vmem:[%s2] sm:$0xf]
    %v133 = vld [vmem:[%s3] sm:$0xff]
    %v134 = vld [vmem:[%s3 + $0x8] sm:$0xff]
    %v135 = vld [vmem:[%s3 + $0x10] sm:$0xff]
    %v136 = vld [vmem:[%s3 + $0x18] sm:$0xff]
    %v137 = vld [vmem:[%s3 + $0x20] sm:$0xff]
    %v138 = vld [vmem:[%s3 + $0x28] sm:$0xff]
    %v139 = vld [vmem:[%s3 + $0x30] sm:$0xff]
    %v140 = vld [vmem:[%s3 + $0x38] sm:$0xff]
    %v141 = vld [vmem:[%s4] sm:$0xff]
    %v142 = vld [vmem:[%s4 + $0x8] sm:$0xff]
    %v143 = vld [vmem:[%s4 + $0x10] sm:$0xff]
    %v144 = vld [vmem:[%s4 + $0x18] sm:$0xff]
    %v145 = vld [vmem:[%s4 + $0x20] sm:$0xff]
    %v146 = vld [vmem:[%s4 + $0x28] sm:$0xff]
    %v147 = vld [vmem:[%s4 + $0x30] sm:$0xff]
    %v148 = vld [vmem:[%s4 + $0x38] sm:$0xff]
    %vm149 = vcmask 523264
    %v151 = vsel %vm149, %v131, 0
    %153 = vmatprep.subr.mxu0 0.0
    %v154 = vand.u32 %v115, 4294901760
    %155 = vmatpush1.msra.mxu0 %v154
    %156 = vmatprep.subr.mxu0 0.0
    %v157 = vand.u32 %v116, 4294901760
    %158 = vmatpush1.msra.mxu0 %v157
    %159 = vmatprep.subr.mxu0 0.0
    %v160 = vand.u32 %v117, 4294901760
    %161 = vmatpush1.msra.mxu0 %v160
    %162 = vmatprep.subr.mxu0 0.0
    %v163 = vand.u32 %v118, 4294901760
    %164 = vmatpush1.msra.mxu0 %v163
    %165 = vmatprep.subr.mxu0 0.0
    %v166 = vand.u32 %v119, 4294901760
    %167 = vmatpush1.msra.mxu0 %v166
    %168 = vmatprep.subr.mxu0 0.0
    %v169 = vand.u32 %v120, 4294901760
    %170 = vmatpush1.msra.mxu0 %v169
    %171 = vmatprep.subr.mxu0 0.0
    %v172 = vand.u32 %v121, 4294901760
    %173 = vmatpush1.msra.mxu0 %v172
    %174 = vmatprep.subr.mxu0 0.0
    %v175 = vand.u32 %v122, 4294901760
    %176 = vmatpush1.msra.mxu0 %v175
    %177 = vmatprep.subr.mxu0 0.0
    %178 = vmatpush1.msra.mxu0 0.0
    %179 = vmatprep.subr.mxu0 0.0
    %180 = vmatpush1.msra.mxu0 0.0
    %181 = vmatprep.subr.mxu0 0.0
    %182 = vmatpush1.msra.mxu0 0.0
    %183 = vmatprep.subr.mxu0 0.0
    %184 = vmatpush1.msra.mxu0 0.0
    %185 = vmatprep.subr.mxu0 0.0
    %186 = vmatpush1.msra.mxu0 0.0
    %187 = vmatprep.subr.mxu0 0.0
    %188 = vmatpush1.msra.mxu0 0.0
    %189 = vmatprep.subr.mxu0 0.0
    %190 = vmatpush1.msra.mxu0 0.0
    %191 = vmatprep.subr.mxu0 0.0
    %192 = vmatpush1.msra.mxu0 0.0
    %193 = vmatprep.subr.mxu0 0.0
    %194 = vmatpush1.msra.mxu0 0.0
    %195 = vmatprep.subr.mxu0 0.0
    %196 = vmatpush1.msra.mxu0 0.0
    %197 = vmatprep.subr.mxu0 0.0
    %198 = vmatpush1.msra.mxu0 0.0
    %199 = vmatprep.subr.mxu0 0.0
    %200 = vmatpush1.msra.mxu0 0.0
    %201 = vmatprep.subr.mxu0 0.0
    %202 = vmatpush1.msra.mxu0 0.0
    %203 = vmatprep.subr.mxu0 0.0
    %204 = vmatpush1.msra.mxu0 0.0
    %205 = vmatprep.subr.mxu0 0.0
    %206 = vmatpush1.msra.mxu0 0.0
    %207 = vmatprep.subr.mxu0 0.0
    %208 = vmatpush1.msra.mxu0 0.0
    %209 = vmatprep.subr.mxu0 0.0
    %210 = vmatpush1.msra.mxu0 0.0
    %211 = vmatprep.subr.mxu0 0.0
    %212 = vmatpush1.msra.mxu0 0.0
    %213 = vmatprep.subr.mxu0 0.0
    %214 = vmatpush1.msra.mxu0 0.0
    %215 = vmatprep.subr.mxu0 0.0
    %216 = vmatpush1.msra.mxu0 0.0
    %217 = vmatprep.subr.mxu0 0.0
    %218 = vmatpush1.msra.mxu0 0.0
    %219 = vmatprep.subr.mxu0 0.0
    %220 = vmatpush1.msra.mxu0 0.0
    %221 = vmatprep.subr.mxu0 0.0
    %222 = vmatpush1.msra.mxu0 0.0
    %223 = vmatprep.subr.mxu0 0.0
    %224 = vmatpush1.msra.mxu0 0.0
    %225 = vmatprep.mubr.f32.mxu0 0.0
    %v226 = vand.u32 %v151, 4294901760
    %v227 = vsub.f32 %v151, %v226
    %v228 = vand.u32 %v227, 4294901760
    %v229 = vsub.f32 %v227, %v228
    %v230 = vand.u32 %v229, 4294901760
    %231 = vmatmul.mubr.f32.gmra.mrb[0].mxu0 %v230
    %v232 = vpop.f32.mrb[0].mxu0
    %v233 = vadd.f32 %v132, %v232
    %v234 = vpop.f32.mrb[0].mxu0
    %235 = vdwg.mxu0
    %236 = vmatprep.subr.mxu0 0.0
    %v237 = vand.u32 %v115, 4294901760
    %v238 = vsub.f32 %v115, %v237
    %v239 = vand.u32 %v238, 4294901760
    %v240 = vsub.f32 %v238, %v239
    %v241 = vand.u32 %v240, 4294901760
    %242 = vmatpush1.msra.mxu0 %v241
    %243 = vmatprep.subr.mxu0 0.0
    %v244 = vand.u32 %v116, 4294901760
    %v245 = vsub.f32 %v116, %v244
    %v246 = vand.u32 %v245, 4294901760
    %v247 = vsub.f32 %v245, %v246
    %v248 = vand.u32 %v247, 4294901760
    %249 = vmatpush1.msra.mxu0 %v248
    %250 = vmatprep.subr.mxu0 0.0
    %v251 = vand.u32 %v117, 4294901760
    %v252 = vsub.f32 %v117, %v251
    %v253 = vand.u32 %v252, 4294901760
    %v254 = vsub.f32 %v252, %v253
    %v255 = vand.u32 %v254, 4294901760
    %256 = vmatpush1.msra.mxu0 %v255
    %257 = vmatprep.subr.mxu0 0.0
    %v258 = vand.u32 %v118, 4294901760
    %v259 = vsub.f32 %v118, %v258
    %v260 = vand.u32 %v259, 4294901760
    %v261 = vsub.f32 %v259, %v260
    %v262 = vand.u32 %v261, 4294901760
    %263 = vmatpush1.msra.mxu0 %v262
    %264 = vmatprep.subr.mxu0 0.0
    %v265 = vand.u32 %v119, 4294901760
    %v266 = vsub.f32 %v119, %v265
    %v267 = vand.u32 %v266, 4294901760
    %v268 = vsub.f32 %v266, %v267
    %v269 = vand.u32 %v268, 4294901760
    %270 = vmatpush1.msra.mxu0 %v269
    %271 = vmatprep.subr.mxu0 0.0
    %v272 = vand.u32 %v120, 4294901760
    %v273 = vsub.f32 %v120, %v272
    %v274 = vand.u32 %v273, 4294901760
    %v275 = vsub.f32 %v273, %v274
    %v276 = vand.u32 %v275, 4294901760
    %277 = vmatpush1.msra.mxu0 %v276
    %278 = vmatprep.subr.mxu0 0.0
    %v279 = vand.u32 %v121, 4294901760
    %v280 = vsub.f32 %v121, %v279
    %v281 = vand.u32 %v280, 4294901760
    %v282 = vsub.f32 %v280, %v281
    %v283 = vand.u32 %v282, 4294901760
    %284 = vmatpush1.msra.mxu0 %v283
    %285 = vmatprep.subr.mxu0 0.0
    %v286 = vand.u32 %v122, 4294901760
    %v287 = vsub.f32 %v122, %v286
    %v288 = vand.u32 %v287, 4294901760
    %v289 = vsub.f32 %v287, %v288
    %v290 = vand.u32 %v289, 4294901760
    %291 = vmatpush1.msra.mxu0 %v290
    %292 = vmatprep.subr.mxu0 0.0
    %293 = vmatpush1.msra.mxu0 0.0
    %294 = vmatprep.subr.mxu0 0.0
    %295 = vmatpush1.msra.mxu0 0.0
    %296 = vmatprep.subr.mxu0 0.0
    %297 = vmatpush1.msra.mxu0 0.0
    %298 = vmatprep.subr.mxu0 0.0
    %299 = vmatpush1.msra.mxu0 0.0
    %300 = vmatprep.subr.mxu0 0.0
    %301 = vmatpush1.msra.mxu0 0.0
    %302 = vmatprep.subr.mxu0 0.0
    %303 = vmatpush1.msra.mxu0 0.0
    %304 = vmatprep.subr.mxu0 0.0
    %305 = vmatpush1.msra.mxu0 0.0
    %306 = vmatprep.subr.mxu0 0.0
    %307 = vmatpush1.msra.mxu0 0.0
    %308 = vmatprep.subr.mxu0 0.0
    %309 = vmatpush1.msra.mxu0 0.0
    %310 = vmatprep.subr.mxu0 0.0
    %311 = vmatpush1.msra.mxu0 0.0
    %312 = vmatprep.subr.mxu0 0.0
    %313 = vmatpush1.msra.mxu0 0.0
    %314 = vmatprep.subr.mxu0 0.0
    %315 = vmatpush1.msra.mxu0 0.0
    %316 = vmatprep.subr.mxu0 0.0
    %317 = vmatpush1.msra.mxu0 0.0
    %318 = vmatprep.subr.mxu0 0.0
    %319 = vmatpush1.msra.mxu0 0.0
    %320 = vmatprep.subr.mxu0 0.0
    %321 = vmatpush1.msra.mxu0 0.0
    %322 = vmatprep.subr.mxu0 0.0
    %323 = vmatpush1.msra.mxu0 0.0
    %324 = vmatprep.subr.mxu0 0.0
    %325 = vmatpush1.msra.mxu0 0.0
    %326 = vmatprep.subr.mxu0 0.0
    %327 = vmatpush1.msra.mxu0 0.0
    %328 = vmatprep.subr.mxu0 0.0
    %329 = vmatpush1.msra.mxu0 0.0
    %330 = vmatprep.subr.mxu0 0.0
    %331 = vmatpush1.msra.mxu0 0.0
    %332 = vmatprep.subr.mxu0 0.0
    %333 = vmatpush1.msra.mxu0 0.0
    %334 = vmatprep.subr.mxu0 0.0
    %335 = vmatpush1.msra.mxu0 0.0
    %336 = vmatprep.subr.mxu0 0.0
    %337 = vmatpush1.msra.mxu0 0.0
    %338 = vmatprep.subr.mxu0 0.0
    %339 = vmatpush1.msra.mxu0 0.0
    %340 = vmatprep.mubr.f32.mxu0 0.0
    %v341 = vand.u32 %v151, 4294901760
    %342 = vmatmul.mubr.f32.gmra.mrb[0].mxu0 %v341
    %v343 = vpop.f32.mrb[0].mxu0
    %v344 = vadd.f32 %v233, %v343
    %v345 = vpop.f32.mrb[0].mxu0
    %346 = vdwg.mxu0
    %347 = vmatprep.subr.mxu0 0.0
    %v348 = vand.u32 %v115, 4294901760
    %v349 = vsub.f32 %v115, %v348
    %350 = vmatpush1.msra.mxu0 %v349
    %351 = vmatprep.subr.mxu0 0.0
    %v352 = vand.u32 %v116, 4294901760
    %v353 = vsub.f32 %v116, %v352
    %354 = vmatpush1.msra.mxu0 %v353
    %355 = vmatprep.subr.mxu0 0.0
    %v356 = vand.u32 %v117, 4294901760
    %v357 = vsub.f32 %v117, %v356
    %358 = vmatpush1.msra.mxu0 %v357
    %359 = vmatprep.subr.mxu0 0.0
    %v360 = vand.u32 %v118, 4294901760
    %v361 = vsub.f32 %v118, %v360
    %362 = vmatpush1.msra.mxu0 %v361
    %363 = vmatprep.subr.mxu0 0.0
    %v364 = vand.u32 %v119, 4294901760
    %v365 = vsub.f32 %v119, %v364
    %366 = vmatpush1.msra.mxu0 %v365
    %367 = vmatprep.subr.mxu0 0.0
    %v368 = vand.u32 %v120, 4294901760
    %v369 = vsub.f32 %v120, %v368
    %370 = vmatpush1.msra.mxu0 %v369
    %371 = vmatprep.subr.mxu0 0.0
    %v372 = vand.u32 %v121, 4294901760
    %v373 = vsub.f32 %v121, %v372
    %374 = vmatpush1.msra.mxu0 %v373
    %375 = vmatprep.subr.mxu0 0.0
    %v376 = vand.u32 %v122, 4294901760
    %v377 = vsub.f32 %v122, %v376
    %378 = vmatpush1.msra.mxu0 %v377
    %379 = vmatprep.subr.mxu0 0.0
    %380 = vmatpush1.msra.mxu0 0.0
    %381 = vmatprep.subr.mxu0 0.0
    %382 = vmatpush1.msra.mxu0 0.0
    %383 = vmatprep.subr.mxu0 0.0
    %384 = vmatpush1.msra.mxu0 0.0
    %385 = vmatprep.subr.mxu0 0.0
    %386 = vmatpush1.msra.mxu0 0.0
    %387 = vmatprep.subr.mxu0 0.0
    %388 = vmatpush1.msra.mxu0 0.0
    %389 = vmatprep.subr.mxu0 0.0
    %390 = vmatpush1.msra.mxu0 0.0
    %391 = vmatprep.subr.mxu0 0.0
    %392 = vmatpush1.msra.mxu0 0.0
    %393 = vmatprep.subr.mxu0 0.0
    %394 = vmatpush1.msra.mxu0 0.0
    %395 = vmatprep.subr.mxu0 0.0
    %396 = vmatpush1.msra.mxu0 0.0
    %397 = vmatprep.subr.mxu0 0.0
    %398 = vmatpush1.msra.mxu0 0.0
    %399 = vmatprep.subr.mxu0 0.0
    %400 = vmatpush1.msra.mxu0 0.0
    %401 = vmatprep.subr.mxu0 0.0
    %402 = vmatpush1.msra.mxu0 0.0
    %403 = vmatprep.subr.mxu0 0.0
    %404 = vmatpush1.msra.mxu0 0.0
    %405 = vmatprep.subr.mxu0 0.0
    %406 = vmatpush1.msra.mxu0 0.0
    %407 = vmatprep.subr.mxu0 0.0
    %408 = vmatpush1.msra.mxu0 0.0
    %409 = vmatprep.subr.mxu0 0.0
    %410 = vmatpush1.msra.mxu0 0.0
    %411 = vmatprep.subr.mxu0 0.0
    %412 = vmatpush1.msra.mxu0 0.0
    %413 = vmatprep.subr.mxu0 0.0
    %414 = vmatpush1.msra.mxu0 0.0
    %415 = vmatprep.subr.mxu0 0.0
    %416 = vmatpush1.msra.mxu0 0.0
    %417 = vmatprep.subr.mxu0 0.0
    %418 = vmatpush1.msra.mxu0 0.0
    %419 = vmatprep.subr.mxu0 0.0
    %420 = vmatpush1.msra.mxu0 0.0
    %421 = vmatprep.subr.mxu0 0.0
    %422 = vmatpush1.msra.mxu0 0.0
    %423 = vmatprep.subr.mxu0 0.0
    %424 = vmatpush1.msra.mxu0 0.0
    %425 = vmatprep.subr.mxu0 0.0
    %426 = vmatpush1.msra.mxu0 0.0
    %427 = vmatprep.mubr.f32.mxu0 0.0
    %v428 = vand.u32 %v151, 4294901760
    %v429 = vsub.f32 %v151, %v428
    %430 = vmatmul.mubr.f32.gmra.mrb[0].mxu0 %v429
    %v431 = vpop.f32.mrb[0].mxu0
    %v432 = vadd.f32 %v344, %v431
    %v433 = vpop.f32.mrb[0].mxu0
    %434 = vdwg.mxu0
    %435 = vmatprep.subr.mxu0 0.0
    %v436 = vand.u32 %v115, 4294901760
    %437 = vmatpush1.msra.mxu0 %v436
    %438 = vmatprep.subr.mxu0 0.0
    %v439 = vand.u32 %v116, 4294901760
    %440 = vmatpush1.msra.mxu0 %v439
    %441 = vmatprep.subr.mxu0 0.0
    %v442 = vand.u32 %v117, 4294901760
    %443 = vmatpush1.msra.mxu0 %v442
    %444 = vmatprep.subr.mxu0 0.0
    %v445 = vand.u32 %v118, 4294901760
    %446 = vmatpush1.msra.mxu0 %v445
    %447 = vmatprep.subr.mxu0 0.0
    %v448 = vand.u32 %v119, 4294901760
    %449 = vmatpush1.msra.mxu0 %v448
    %450 = vmatprep.subr.mxu0 0.0
    %v451 = vand.u32 %v120, 4294901760
    %452 = vmatpush1.msra.mxu0 %v451
    %453 = vmatprep.subr.mxu0 0.0
    %v454 = vand.u32 %v121, 4294901760
    %455 = vmatpush1.msra.mxu0 %v454
    %456 = vmatprep.subr.mxu0 0.0
    %v457 = vand.u32 %v122, 4294901760
    %458 = vmatpush1.msra.mxu0 %v457
    %459 = vmatprep.subr.mxu0 0.0
    %460 = vmatpush1.msra.mxu0 0.0
    %461 = vmatprep.subr.mxu0 0.0
    %462 = vmatpush1.msra.mxu0 0.0
    %463 = vmatprep.subr.mxu0 0.0
    %464 = vmatpush1.msra.mxu0 0.0
    %465 = vmatprep.subr.mxu0 0.0
    %466 = vmatpush1.msra.mxu0 0.0
    %467 = vmatprep.subr.mxu0 0.0
    %468 = vmatpush1.msra.mxu0 0.0
    %469 = vmatprep.subr.mxu0 0.0
    %470 = vmatpush1.msra.mxu0 0.0
    %471 = vmatprep.subr.mxu0 0.0
    %472 = vmatpush1.msra.mxu0 0.0
    %473 = vmatprep.subr.mxu0 0.0
    %474 = vmatpush1.msra.mxu0 0.0
    %475 = vmatprep.subr.mxu0 0.0
    %476 = vmatpush1.msra.mxu0 0.0
    %477 = vmatprep.subr.mxu0 0.0
    %478 = vmatpush1.msra.mxu0 0.0
    %479 = vmatprep.subr.mxu0 0.0
    %480 = vmatpush1.msra.mxu0 0.0
    %481 = vmatprep.subr.mxu0 0.0
    %482 = vmatpush1.msra.mxu0 0.0
    %483 = vmatprep.subr.mxu0 0.0
    %484 = vmatpush1.msra.mxu0 0.0
    %485 = vmatprep.subr.mxu0 0.0
    %486 = vmatpush1.msra.mxu0 0.0
    %487 = vmatprep.subr.mxu0 0.0
    %488 = vmatpush1.msra.mxu0 0.0
    %489 = vmatprep.subr.mxu0 0.0
    %490 = vmatpush1.msra.mxu0 0.0
    %491 = vmatprep.subr.mxu0 0.0
    %492 = vmatpush1.msra.mxu0 0.0
    %493 = vmatprep.subr.mxu0 0.0
    %494 = vmatpush1.msra.mxu0 0.0
    %495 = vmatprep.subr.mxu0 0.0
    %496 = vmatpush1.msra.mxu0 0.0
    %497 = vmatprep.subr.mxu0 0.0
    %498 = vmatpush1.msra.mxu0 0.0
    %499 = vmatprep.subr.mxu0 0.0
    %500 = vmatpush1.msra.mxu0 0.0
    %501 = vmatprep.subr.mxu0 0.0
    %502 = vmatpush1.msra.mxu0 0.0
    %503 = vmatprep.subr.mxu0 0.0
    %504 = vmatpush1.msra.mxu0 0.0
    %505 = vmatprep.subr.mxu0 0.0
    %506 = vmatpush1.msra.mxu0 0.0
    %507 = vmatprep.mubr.f32.mxu0 0.0
    %v508 = vand.u32 %v151, 4294901760
    %v509 = vsub.f32 %v151, %v508
    %v510 = vand.u32 %v509, 4294901760
    %511 = vmatmul.mubr.f32.gmra.mrb[0].mxu0 %v510
    %v512 = vpop.f32.mrb[0].mxu0
    %v513 = vadd.f32 %v432, %v512
    %v514 = vpop.f32.mrb[0].mxu0
    %515 = vdwg.mxu0
    %516 = vmatprep.subr.mxu0 0.0
    %v517 = vand.u32 %v115, 4294901760
    %v518 = vsub.f32 %v115, %v517
    %v519 = vand.u32 %v518, 4294901760
    %520 = vmatpush1.msra.mxu0 %v519
    %521 = vmatprep.subr.mxu0 0.0
    %v522 = vand.u32 %v116, 4294901760
    %v523 = vsub.f32 %v116, %v522
    %v524 = vand.u32 %v523, 4294901760
    %525 = vmatpush1.msra.mxu0 %v524
    %526 = vmatprep.subr.mxu0 0.0
    %v527 = vand.u32 %v117, 4294901760
    %v528 = vsub.f32 %v117, %v527
    %v529 = vand.u32 %v528, 4294901760
    %530 = vmatpush1.msra.mxu0 %v529
    %531 = vmatprep.subr.mxu0 0.0
    %v532 = vand.u32 %v118, 4294901760
    %v533 = vsub.f32 %v118, %v532
    %v534 = vand.u32 %v533, 4294901760
    %535 = vmatpush1.msra.mxu0 %v534
    %536 = vmatprep.subr.mxu0 0.0
    %v537 = vand.u32 %v119, 4294901760
    %v538 = vsub.f32 %v119, %v537
    %v539 = vand.u32 %v538, 4294901760
    %540 = vmatpush1.msra.mxu0 %v539
    %541 = vmatprep.subr.mxu0 0.0
    %v542 = vand.u32 %v120, 4294901760
    %v543 = vsub.f32 %v120, %v542
    %v544 = vand.u32 %v543, 4294901760
    %545 = vmatpush1.msra.mxu0 %v544
    %546 = vmatprep.subr.mxu0 0.0
    %v547 = vand.u32 %v121, 4294901760
    %v548 = vsub.f32 %v121, %v547
    %v549 = vand.u32 %v548, 4294901760
    %550 = vmatpush1.msra.mxu0 %v549
    %551 = vmatprep.subr.mxu0 0.0
    %v552 = vand.u32 %v122, 4294901760
    %v553 = vsub.f32 %v122, %v552
    %v554 = vand.u32 %v553, 4294901760
    %555 = vmatpush1.msra.mxu0 %v554
    %556 = vmatprep.subr.mxu0 0.0
    %557 = vmatpush1.msra.mxu0 0.0
    %558 = vmatprep.subr.mxu0 0.0
    %559 = vmatpush1.msra.mxu0 0.0
    %560 = vmatprep.subr.mxu0 0.0
    %561 = vmatpush1.msra.mxu0 0.0
    %562 = vmatprep.subr.mxu0 0.0
    %563 = vmatpush1.msra.mxu0 0.0
    %564 = vmatprep.subr.mxu0 0.0
    %565 = vmatpush1.msra.mxu0 0.0
    %566 = vmatprep.subr.mxu0 0.0
    %567 = vmatpush1.msra.mxu0 0.0
    %568 = vmatprep.subr.mxu0 0.0
    %569 = vmatpush1.msra.mxu0 0.0
    %570 = vmatprep.subr.mxu0 0.0
    %571 = vmatpush1.msra.mxu0 0.0
    %572 = vmatprep.subr.mxu0 0.0
    %573 = vmatpush1.msra.mxu0 0.0
    %574 = vmatprep.subr.mxu0 0.0
    %575 = vmatpush1.msra.mxu0 0.0
    %576 = vmatprep.subr.mxu0 0.0
    %577 = vmatpush1.msra.mxu0 0.0
    %578 = vmatprep.subr.mxu0 0.0
    %579 = vmatpush1.msra.mxu0 0.0
    %580 = vmatprep.subr.mxu0 0.0
    %581 = vmatpush1.msra.mxu0 0.0
    %582 = vmatprep.subr.mxu0 0.0
    %583 = vmatpush1.msra.mxu0 0.0
    %584 = vmatprep.subr.mxu0 0.0
    %585 = vmatpush1.msra.mxu0 0.0
    %586 = vmatprep.subr.mxu0 0.0
    %587 = vmatpush1.msra.mxu0 0.0
    %588 = vmatprep.subr.mxu0 0.0
    %589 = vmatpush1.msra.mxu0 0.0
    %590 = vmatprep.subr.mxu0 0.0
    %591 = vmatpush1.msra.mxu0 0.0
    %592 = vmatprep.subr.mxu0 0.0
    %593 = vmatpush1.msra.mxu0 0.0
    %594 = vmatprep.subr.mxu0 0.0
    %595 = vmatpush1.msra.mxu0 0.0
    %596 = vmatprep.subr.mxu0 0.0
    %597 = vmatpush1.msra.mxu0 0.0
    %598 = vmatprep.subr.mxu0 0.0
    %599 = vmatpush1.msra.mxu0 0.0
    %600 = vmatprep.subr.mxu0 0.0
    %601 = vmatpush1.msra.mxu0 0.0
    %602 = vmatprep.subr.mxu0 0.0
    %603 = vmatpush1.msra.mxu0 0.0
    %604 = vmatprep.mubr.f32.mxu0 0.0
    %v605 = vand.u32 %v151, 4294901760
    %606 = vmatmul.mubr.f32.gmra.mrb[0].mxu0 %v605
    %v607 = vpop.f32.mrb[0].mxu0
    %v608 = vadd.f32 %v513, %v607
    %v609 = vpop.f32.mrb[0].mxu0
    %610 = vdwg.mxu0
    %611 = vmatprep.subr.mxu0 0.0
    %v612 = vand.u32 %v115, 4294901760
    %613 = vmatpush1.msra.mxu0 %v612
    %614 = vmatprep.subr.mxu0 0.0
    %v615 = vand.u32 %v116, 4294901760
    %616 = vmatpush1.msra.mxu0 %v615
    %617 = vmatprep.subr.mxu0 0.0
    %v618 = vand.u32 %v117, 4294901760
    %619 = vmatpush1.msra.mxu0 %v618
    %620 = vmatprep.subr.mxu0 0.0
    %v621 = vand.u32 %v118, 4294901760
    %622 = vmatpush1.msra.mxu0 %v621
    %623 = vmatprep.subr.mxu0 0.0
    %v624 = vand.u32 %v119, 4294901760
    %625 = vmatpush1.msra.mxu0 %v624
    %626 = vmatprep.subr.mxu0 0.0
    %v627 = vand.u32 %v120, 4294901760
    %628 = vmatpush1.msra.mxu0 %v627
    %629 = vmatprep.subr.mxu0 0.0
    %v630 = vand.u32 %v121, 4294901760
    %631 = vmatpush1.msra.mxu0 %v630
    %632 = vmatprep.subr.mxu0 0.0
    %v633 = vand.u32 %v122, 4294901760
    %634 = vmatpush1.msra.mxu0 %v633
    %635 = vmatprep.subr.mxu0 0.0
    %636 = vmatpush1.msra.mxu0 0.0
    %637 = vmatprep.subr.mxu0 0.0
    %638 = vmatpush1.msra.mxu0 0.0
    %639 = vmatprep.subr.mxu0 0.0
    %640 = vmatpush1.msra.mxu0 0.0
    %641 = vmatprep.subr.mxu0 0.0
    %642 = vmatpush1.msra.mxu0 0.0
    %643 = vmatprep.subr.mxu0 0.0
    %644 = vmatpush1.msra.mxu0 0.0
    %645 = vmatprep.subr.mxu0 0.0
    %646 = vmatpush1.msra.mxu0 0.0
    %647 = vmatprep.subr.mxu0 0.0
    %648 = vmatpush1.msra.mxu0 0.0
    %649 = vmatprep.subr.mxu0 0.0
    %650 = vmatpush1.msra.mxu0 0.0
    %651 = vmatprep.subr.mxu0 0.0
    %652 = vmatpush1.msra.mxu0 0.0
    %653 = vmatprep.subr.mxu0 0.0
    %654 = vmatpush1.msra.mxu0 0.0
    %655 = vmatprep.subr.mxu0 0.0
    %656 = vmatpush1.msra.mxu0 0.0
    %657 = vmatprep.subr.mxu0 0.0
    %658 = vmatpush1.msra.mxu0 0.0
    %659 = vmatprep.subr.mxu0 0.0
    %660 = vmatpush1.msra.mxu0 0.0
    %661 = vmatprep.subr.mxu0 0.0
    %662 = vmatpush1.msra.mxu0 0.0
    %663 = vmatprep.subr.mxu0 0.0
    %664 = vmatpush1.msra.mxu0 0.0
    %665 = vmatprep.subr.mxu0 0.0
    %666 = vmatpush1.msra.mxu0 0.0
    %667 = vmatprep.subr.mxu0 0.0
    %668 = vmatpush1.msra.mxu0 0.0
    %669 = vmatprep.subr.mxu0 0.0
    %670 = vmatpush1.msra.mxu0 0.0
    %671 = vmatprep.subr.mxu0 0.0
    %672 = vmatpush1.msra.mxu0 0.0
    %673 = vmatprep.subr.mxu0 0.0
    %674 = vmatpush1.msra.mxu0 0.0
    %675 = vmatprep.subr.mxu0 0.0
    %676 = vmatpush1.msra.mxu0 0.0
    %677 = vmatprep.subr.mxu0 0.0
    %678 = vmatpush1.msra.mxu0 0.0
    %679 = vmatprep.subr.mxu0 0.0
    %680 = vmatpush1.msra.mxu0 0.0
    %681 = vmatprep.subr.mxu0 0.0
    %682 = vmatpush1.msra.mxu0 0.0
    %683 = vmatprep.mubr.f32.mxu0 0.0
    %v684 = vand.u32 %v151, 4294901760
    %685 = vmatmul.mubr.f32.gmra.mrb[0].mxu0 %v684
    %v686 = vpop.f32.mrb[0].mxu0
    %v687 = vadd.f32 %v608, %v686
    %v688 = vpop.f32.mrb[0].mxu0
    %689 = vdwg.mxu0
    %690 = vmatprep.subr.mxu0 0.0
    %v691 = vand.u32 %v123, 4294901760
    %692 = vmatpush1.msra.mxu0 %v691
    %693 = vmatprep.subr.mxu0 0.0
    %v694 = vand.u32 %v124, 4294901760
    %695 = vmatpush1.msra.mxu0 %v694
    %696 = vmatprep.subr.mxu0 0.0
    %v697 = vand.u32 %v125, 4294901760
    %698 = vmatpush1.msra.mxu0 %v697
    %699 = vmatprep.subr.mxu0 0.0
    %v700 = vand.u32 %v126, 4294901760
    %701 = vmatpush1.msra.mxu0 %v700
    %702 = vmatprep.subr.mxu0 0.0
    %v703 = vand.u32 %v127, 4294901760
    %704 = vmatpush1.msra.mxu0 %v703
    %705 = vmatprep.subr.mxu0 0.0
    %v706 = vand.u32 %v128, 4294901760
    %707 = vmatpush1.msra.mxu0 %v706
    %708 = vmatprep.subr.mxu0 0.0
    %v709 = vand.u32 %v129, 4294901760
    %710 = vmatpush1.msra.mxu0 %v709
    %711 = vmatprep.subr.mxu0 0.0
    %v712 = vand.u32 %v130, 4294901760
    %713 = vmatpush1.msra.mxu0 %v712
    %714 = vmatprep.subr.mxu0 0.0
    %715 = vmatpush1.msra.mxu0 0.0
    %716 = vmatprep.subr.mxu0 0.0
    %717 = vmatpush1.msra.mxu0 0.0
    %718 = vmatprep.subr.mxu0 0.0
    %719 = vmatpush1.msra.mxu0 0.0
    %720 = vmatprep.subr.mxu0 0.0
    %721 = vmatpush1.msra.mxu0 0.0
    %722 = vmatprep.subr.mxu0 0.0
    %723 = vmatpush1.msra.mxu0 0.0
    %724 = vmatprep.subr.mxu0 0.0
    %725 = vmatpush1.msra.mxu0 0.0
    %726 = vmatprep.subr.mxu0 0.0
    %727 = vmatpush1.msra.mxu0 0.0
    %728 = vmatprep.subr.mxu0 0.0
    %729 = vmatpush1.msra.mxu0 0.0
    %730 = vmatprep.subr.mxu0 0.0
    %731 = vmatpush1.msra.mxu0 0.0
    %732 = vmatprep.subr.mxu0 0.0
    %733 = vmatpush1.msra.mxu0 0.0
    %734 = vmatprep.subr.mxu0 0.0
    %735 = vmatpush1.msra.mxu0 0.0
    %736 = vmatprep.subr.mxu0 0.0
    %737 = vmatpush1.msra.mxu0 0.0
    %738 = vmatprep.subr.mxu0 0.0
    %739 = vmatpush1.msra.mxu0 0.0
    %740 = vmatprep.subr.mxu0 0.0
    %741 = vmatpush1.msra.mxu0 0.0
    %742 = vmatprep.subr.mxu0 0.0
    %743 = vmatpush1.msra.mxu0 0.0
    %744 = vmatprep.subr.mxu0 0.0
    %745 = vmatpush1.msra.mxu0 0.0
    %746 = vmatprep.subr.mxu0 0.0
    %747 = vmatpush1.msra.mxu0 0.0
    %748 = vmatprep.subr.mxu0 0.0
    %749 = vmatpush1.msra.mxu0 0.0
    %750 = vmatprep.subr.mxu0 0.0
    %751 = vmatpush1.msra.mxu0 0.0
    %752 = vmatprep.subr.mxu0 0.0
    %753 = vmatpush1.msra.mxu0 0.0
    %754 = vmatprep.subr.mxu0 0.0
    %755 = vmatpush1.msra.mxu0 0.0
    %756 = vmatprep.subr.mxu0 0.0
    %757 = vmatpush1.msra.mxu0 0.0
    %758 = vmatprep.subr.mxu0 0.0
    %759 = vmatpush1.msra.mxu0 0.0
    %760 = vmatprep.subr.mxu0 0.0
    %761 = vmatpush1.msra.mxu0 0.0
    %762 = vmatprep.mubr.f32.mxu0 0.0
    %v763 = vand.u32 %v151, 4294901760
    %v764 = vsub.f32 %v151, %v763
    %v765 = vand.u32 %v764, 4294901760
    %v766 = vsub.f32 %v764, %v765
    %v767 = vand.u32 %v766, 4294901760
    %768 = vmatmul.mubr.f32.gmra.mrb[0].mxu0 %v767
    %v769 = vpop.f32.mrb[0].mxu0
    %v770 = vadd.f32 %v132, %v769
    %v771 = vpop.f32.mrb[0].mxu0
    %772 = vdwg.mxu0
    %773 = vmatprep.subr.mxu0 0.0
    %v774 = vand.u32 %v123, 4294901760
    %v775 = vsub.f32 %v123, %v774
    %v776 = vand.u32 %v775, 4294901760
    %v777 = vsub.f32 %v775, %v776
    %v778 = vand.u32 %v777, 4294901760
    %779 = vmatpush1.msra.mxu0 %v778
    %780 = vmatprep.subr.mxu0 0.0
    %v781 = vand.u32 %v124, 4294901760
    %v782 = vsub.f32 %v124, %v781
    %v783 = vand.u32 %v782, 4294901760
    %v784 = vsub.f32 %v782, %v783
    %v785 = vand.u32 %v784, 4294901760
    %786 = vmatpush1.msra.mxu0 %v785
    %787 = vmatprep.subr.mxu0 0.0
    %v788 = vand.u32 %v125, 4294901760
    %v789 = vsub.f32 %v125, %v788
    %v790 = vand.u32 %v789, 4294901760
    %v791 = vsub.f32 %v789, %v790
    %v792 = vand.u32 %v791, 4294901760
    %793 = vmatpush1.msra.mxu0 %v792
    %794 = vmatprep.subr.mxu0 0.0
    %v795 = vand.u32 %v126, 4294901760
    %v796 = vsub.f32 %v126, %v795
    %v797 = vand.u32 %v796, 4294901760
    %v798 = vsub.f32 %v796, %v797
    %v799 = vand.u32 %v798, 4294901760
    %800 = vmatpush1.msra.mxu0 %v799
    %801 = vmatprep.subr.mxu0 0.0
    %v802 = vand.u32 %v127, 4294901760
    %v803 = vsub.f32 %v127, %v802
    %v804 = vand.u32 %v803, 4294901760
    %v805 = vsub.f32 %v803, %v804
    %v806 = vand.u32 %v805, 4294901760
    %807 = vmatpush1.msra.mxu0 %v806
    %808 = vmatprep.subr.mxu0 0.0
    %v809 = vand.u32 %v128, 4294901760
    %v810 = vsub.f32 %v128, %v809
    %v811 = vand.u32 %v810, 4294901760
    %v812 = vsub.f32 %v810, %v811
    %v813 = vand.u32 %v812, 4294901760
    %814 = vmatpush1.msra.mxu0 %v813
    %815 = vmatprep.subr.mxu0 0.0
    %v816 = vand.u32 %v129, 4294901760
    %v817 = vsub.f32 %v129, %v816
    %v818 = vand.u32 %v817, 4294901760
    %v819 = vsub.f32 %v817, %v818
    %v820 = vand.u32 %v819, 4294901760
    %821 = vmatpush1.msra.mxu0 %v820
    %822 = vmatprep.subr.mxu0 0.0
    %v823 = vand.u32 %v130, 4294901760
    %v824 = vsub.f32 %v130, %v823
    %v825 = vand.u32 %v824, 4294901760
    %v826 = vsub.f32 %v824, %v825
    %v827 = vand.u32 %v826, 4294901760
    %828 = vmatpush1.msra.mxu0 %v827
    %829 = vmatprep.subr.mxu0 0.0
    %830 = vmatpush1.msra.mxu0 0.0
    %831 = vmatprep.subr.mxu0 0.0
    %832 = vmatpush1.msra.mxu0 0.0
    %833 = vmatprep.subr.mxu0 0.0
    %834 = vmatpush1.msra.mxu0 0.0
    %835 = vmatprep.subr.mxu0 0.0
    %836 = vmatpush1.msra.mxu0 0.0
    %837 = vmatprep.subr.mxu0 0.0
    %838 = vmatpush1.msra.mxu0 0.0
    %839 = vmatprep.subr.mxu0 0.0
    %840 = vmatpush1.msra.mxu0 0.0
    %841 = vmatprep.subr.mxu0 0.0
    %842 = vmatpush1.msra.mxu0 0.0
    %843 = vmatprep.subr.mxu0 0.0
    %844 = vmatpush1.msra.mxu0 0.0
    %845 = vmatprep.subr.mxu0 0.0
    %846 = vmatpush1.msra.mxu0 0.0
    %847 = vmatprep.subr.mxu0 0.0
    %848 = vmatpush1.msra.mxu0 0.0
    %849 = vmatprep.subr.mxu0 0.0
    %850 = vmatpush1.msra.mxu0 0.0
    %851 = vmatprep.subr.mxu0 0.0
    %852 = vmatpush1.msra.mxu0 0.0
    %853 = vmatprep.subr.mxu0 0.0
    %854 = vmatpush1.msra.mxu0 0.0
    %855 = vmatprep.subr.mxu0 0.0
    %856 = vmatpush1.msra.mxu0 0.0
    %857 = vmatprep.subr.mxu0 0.0
    %858 = vmatpush1.msra.mxu0 0.0
    %859 = vmatprep.subr.mxu0 0.0
    %860 = vmatpush1.msra.mxu0 0.0
    %861 = vmatprep.subr.mxu0 0.0
    %862 = vmatpush1.msra.mxu0 0.0
    %863 = vmatprep.subr.mxu0 0.0
    %864 = vmatpush1.msra.mxu0 0.0
    %865 = vmatprep.subr.mxu0 0.0
    %866 = vmatpush1.msra.mxu0 0.0
    %867 = vmatprep.subr.mxu0 0.0
    %868 = vmatpush1.msra.mxu0 0.0
    %869 = vmatprep.subr.mxu0 0.0
    %870 = vmatpush1.msra.mxu0 0.0
    %871 = vmatprep.subr.mxu0 0.0
    %872 = vmatpush1.msra.mxu0 0.0
    %873 = vmatprep.subr.mxu0 0.0
    %874 = vmatpush1.msra.mxu0 0.0
    %875 = vmatprep.subr.mxu0 0.0
    %876 = vmatpush1.msra.mxu0 0.0
    %877 = vmatprep.mubr.f32.mxu0 0.0
    %v878 = vand.u32 %v151, 4294901760
    %879 = vmatmul.mubr.f32.gmra.mrb[0].mxu0 %v878
    %v880 = vpop.f32.mrb[0].mxu0
    %v881 = vadd.f32 %v770, %v880
    %v882 = vpop.f32.mrb[0].mxu0
    %883 = vdwg.mxu0
    %884 = vmatprep.subr.mxu0 0.0
    %v885 = vand.u32 %v123, 4294901760
    %v886 = vsub.f32 %v123, %v885
    %887 = vmatpush1.msra.mxu0 %v886
    %888 = vmatprep.subr.mxu0 0.0
    %v889 = vand.u32 %v124, 4294901760
    %v890 = vsub.f32 %v124, %v889
    %891 = vmatpush1.msra.mxu0 %v890
    %892 = vmatprep.subr.mxu0 0.0
    %v893 = vand.u32 %v125, 4294901760
    %v894 = vsub.f32 %v125, %v893
    %895 = vmatpush1.msra.mxu0 %v894
    %896 = vmatprep.subr.mxu0 0.0
    %v897 = vand.u32 %v126, 4294901760
    %v898 = vsub.f32 %v126, %v897
    %899 = vmatpush1.msra.mxu0 %v898
    %900 = vmatprep.subr.mxu0 0.0
    %v901 = vand.u32 %v127, 4294901760
    %v902 = vsub.f32 %v127, %v901
    %903 = vmatpush1.msra.mxu0 %v902
    %904 = vmatprep.subr.mxu0 0.0
    %v905 = vand.u32 %v128, 4294901760
    %v906 = vsub.f32 %v128, %v905
    %907 = vmatpush1.msra.mxu0 %v906
    %908 = vmatprep.subr.mxu0 0.0
    %v909 = vand.u32 %v129, 4294901760
    %v910 = vsub.f32 %v129, %v909
    %911 = vmatpush1.msra.mxu0 %v910
    %912 = vmatprep.subr.mxu0 0.0
    %v913 = vand.u32 %v130, 4294901760
    %v914 = vsub.f32 %v130, %v913
    %915 = vmatpush1.msra.mxu0 %v914
    %916 = vmatprep.subr.mxu0 0.0
    %917 = vmatpush1.msra.mxu0 0.0
    %918 = vmatprep.subr.mxu0 0.0
    %919 = vmatpush1.msra.mxu0 0.0
    %920 = vmatprep.subr.mxu0 0.0
    %921 = vmatpush1.msra.mxu0 0.0
    %922 = vmatprep.subr.mxu0 0.0
    %923 = vmatpush1.msra.mxu0 0.0
    %924 = vmatprep.subr.mxu0 0.0
    %925 = vmatpush1.msra.mxu0 0.0
    %926 = vmatprep.subr.mxu0 0.0
    %927 = vmatpush1.msra.mxu0 0.0
    %928 = vmatprep.subr.mxu0 0.0
    %929 = vmatpush1.msra.mxu0 0.0
    %930 = vmatprep.subr.mxu0 0.0
    %931 = vmatpush1.msra.mxu0 0.0
    %932 = vmatprep.subr.mxu0 0.0
    %933 = vmatpush1.msra.mxu0 0.0
    %934 = vmatprep.subr.mxu0 0.0
    %935 = vmatpush1.msra.mxu0 0.0
    %936 = vmatprep.subr.mxu0 0.0
    %937 = vmatpush1.msra.mxu0 0.0
    %938 = vmatprep.subr.mxu0 0.0
    %939 = vmatpush1.msra.mxu0 0.0
    %940 = vmatprep.subr.mxu0 0.0
    %941 = vmatpush1.msra.mxu0 0.0
    %942 = vmatprep.subr.mxu0 0.0
    %943 = vmatpush1.msra.mxu0 0.0
    %944 = vmatprep.subr.mxu0 0.0
    %945 = vmatpush1.msra.mxu0 0.0
    %946 = vmatprep.subr.mxu0 0.0
    %947 = vmatpush1.msra.mxu0 0.0
    %948 = vmatprep.subr.mxu0 0.0
    %949 = vmatpush1.msra.mxu0 0.0
    %950 = vmatprep.subr.mxu0 0.0
    %951 = vmatpush1.msra.mxu0 0.0
    %952 = vmatprep.subr.mxu0 0.0
    %953 = vmatpush1.msra.mxu0 0.0
    %954 = vmatprep.subr.mxu0 0.0
    %955 = vmatpush1.msra.mxu0 0.0
    %956 = vmatprep.subr.mxu0 0.0
    %957 = vmatpush1.msra.mxu0 0.0
    %958 = vmatprep.subr.mxu0 0.0
    %959 = vmatpush1.msra.mxu0 0.0
    %960 = vmatprep.subr.mxu0 0.0
    %961 = vmatpush1.msra.mxu0 0.0
    %962 = vmatprep.subr.mxu0 0.0
    %963 = vmatpush1.msra.mxu0 0.0
    %964 = vmatprep.mubr.f32.mxu0 0.0
    %v965 = vand.u32 %v151, 4294901760
    %v966 = vsub.f32 %v151, %v965
    %967 = vmatmul.mubr.f32.gmra.mrb[0].mxu0 %v966
    %v968 = vpop.f32.mrb[0].mxu0
    %v969 = vadd.f32 %v881, %v968
    %v970 = vpop.f32.mrb[0].mxu0
    %971 = vdwg.mxu0
    %972 = vmatprep.subr.mxu0 0.0
    %v973 = vand.u32 %v123, 4294901760
    %974 = vmatpush1.msra.mxu0 %v973
    %975 = vmatprep.subr.mxu0 0.0
    %v976 = vand.u32 %v124, 4294901760
    %977 = vmatpush1.msra.mxu0 %v976
    %978 = vmatprep.subr.mxu0 0.0
    %v979 = vand.u32 %v125, 4294901760
    %980 = vmatpush1.msra.mxu0 %v979
    %981 = vmatprep.subr.mxu0 0.0
    %v982 = vand.u32 %v126, 4294901760
    %983 = vmatpush1.msra.mxu0 %v982
    %984 = vmatprep.subr.mxu0 0.0
    %v985 = vand.u32 %v127, 4294901760
    %986 = vmatpush1.msra.mxu0 %v985
    %987 = vmatprep.subr.mxu0 0.0
    %v988 = vand.u32 %v128, 4294901760
    %989 = vmatpush1.msra.mxu0 %v988
    %990 = vmatprep.subr.mxu0 0.0
    %v991 = vand.u32 %v129, 4294901760
    %992 = vmatpush1.msra.mxu0 %v991
    %993 = vmatprep.subr.mxu0 0.0
    %v994 = vand.u32 %v130, 4294901760
    %995 = vmatpush1.msra.mxu0 %v994
    %996 = vmatprep.subr.mxu0 0.0
    %997 = vmatpush1.msra.mxu0 0.0
    %998 = vmatprep.subr.mxu0 0.0
    %999 = vmatpush1.msra.mxu0 0.0
    %1000 = vmatprep.subr.mxu0 0.0
    %1001 = vmatpush1.msra.mxu0 0.0
    %1002 = vmatprep.subr.mxu0 0.0
    %1003 = vmatpush1.msra.mxu0 0.0
    %1004 = vmatprep.subr.mxu0 0.0
    %1005 = vmatpush1.msra.mxu0 0.0
    %1006 = vmatprep.subr.mxu0 0.0
    %1007 = vmatpush1.msra.mxu0 0.0
    %1008 = vmatprep.subr.mxu0 0.0
    %1009 = vmatpush1.msra.mxu0 0.0
    %1010 = vmatprep.subr.mxu0 0.0
    %1011 = vmatpush1.msra.mxu0 0.0
    %1012 = vmatprep.subr.mxu0 0.0
    %1013 = vmatpush1.msra.mxu0 0.0
    %1014 = vmatprep.subr.mxu0 0.0
    %1015 = vmatpush1.msra.mxu0 0.0
    %1016 = vmatprep.subr.mxu0 0.0
    %1017 = vmatpush1.msra.mxu0 0.0
    %1018 = vmatprep.subr.mxu0 0.0
    %1019 = vmatpush1.msra.mxu0 0.0
    %1020 = vmatprep.subr.mxu0 0.0
    %1021 = vmatpush1.msra.mxu0 0.0
    %1022 = vmatprep.subr.mxu0 0.0
    %1023 = vmatpush1.msra.mxu0 0.0
    %1024 = vmatprep.subr.mxu0 0.0
    %1025 = vmatpush1.msra.mxu0 0.0
    %1026 = vmatprep.subr.mxu0 0.0
    %1027 = vmatpush1.msra.mxu0 0.0
    %1028 = vmatprep.subr.mxu0 0.0
    %1029 = vmatpush1.msra.mxu0 0.0
    %1030 = vmatprep.subr.mxu0 0.0
    %1031 = vmatpush1.msra.mxu0 0.0
    %1032 = vmatprep.subr.mxu0 0.0
    %1033 = vmatpush1.msra.mxu0 0.0
    %1034 = vmatprep.subr.mxu0 0.0
    %1035 = vmatpush1.msra.mxu0 0.0
    %1036 = vmatprep.subr.mxu0 0.0
    %1037 = vmatpush1.msra.mxu0 0.0
    %1038 = vmatprep.subr.mxu0 0.0
    %1039 = vmatpush1.msra.mxu0 0.0
    %1040 = vmatprep.subr.mxu0 0.0
    %1041 = vmatpush1.msra.mxu0 0.0
    %1042 = vmatprep.subr.mxu0 0.0
    %1043 = vmatpush1.msra.mxu0 0.0
    %1044 = vmatprep.mubr.f32.mxu0 0.0
    %v1045 = vand.u32 %v151, 4294901760
    %v1046 = vsub.f32 %v151, %v1045
    %v1047 = vand.u32 %v1046, 4294901760
    %1048 = vmatmul.mubr.f32.gmra.mrb[0].mxu0 %v1047
    %v1049 = vpop.f32.mrb[0].mxu0
    %v1050 = vadd.f32 %v969, %v1049
    %v1051 = vpop.f32.mrb[0].mxu0
    %1052 = vdwg.mxu0
    %1053 = vmatprep.subr.mxu0 0.0
    %v1054 = vand.u32 %v123, 4294901760
    %v1055 = vsub.f32 %v123, %v1054
    %v1056 = vand.u32 %v1055, 4294901760
    %1057 = vmatpush1.msra.mxu0 %v1056
    %1058 = vmatprep.subr.mxu0 0.0
    %v1059 = vand.u32 %v124, 4294901760
    %v1060 = vsub.f32 %v124, %v1059
    %v1061 = vand.u32 %v1060, 4294901760
    %1062 = vmatpush1.msra.mxu0 %v1061
    %1063 = vmatprep.subr.mxu0 0.0
    %v1064 = vand.u32 %v125, 4294901760
    %v1065 = vsub.f32 %v125, %v1064
    %v1066 = vand.u32 %v1065, 4294901760
    %1067 = vmatpush1.msra.mxu0 %v1066
    %1068 = vmatprep.subr.mxu0 0.0
    %v1069 = vand.u32 %v126, 4294901760
    %v1070 = vsub.f32 %v126, %v1069
    %v1071 = vand.u32 %v1070, 4294901760
    %1072 = vmatpush1.msra.mxu0 %v1071
    %1073 = vmatprep.subr.mxu0 0.0
    %v1074 = vand.u32 %v127, 4294901760
    %v1075 = vsub.f32 %v127, %v1074
    %v1076 = vand.u32 %v1075, 4294901760
    %1077 = vmatpush1.msra.mxu0 %v1076
    %1078 = vmatprep.subr.mxu0 0.0
    %v1079 = vand.u32 %v128, 4294901760
    %v1080 = vsub.f32 %v128, %v1079
    %v1081 = vand.u32 %v1080, 4294901760
    %1082 = vmatpush1.msra.mxu0 %v1081
    %1083 = vmatprep.subr.mxu0 0.0
    %v1084 = vand.u32 %v129, 4294901760
    %v1085 = vsub.f32 %v129, %v1084
    %v1086 = vand.u32 %v1085, 4294901760
    %1087 = vmatpush1.msra.mxu0 %v1086
    %1088 = vmatprep.subr.mxu0 0.0
    %v1089 = vand.u32 %v130, 4294901760
    %v1090 = vsub.f32 %v130, %v1089
    %v1091 = vand.u32 %v1090, 4294901760
    %1092 = vmatpush1.msra.mxu0 %v1091
    %1093 = vmatprep.subr.mxu0 0.0
    %1094 = vmatpush1.msra.mxu0 0.0
    %1095 = vmatprep.subr.mxu0 0.0
    %1096 = vmatpush1.msra.mxu0 0.0
    %1097 = vmatprep.subr.mxu0 0.0
    %1098 = vmatpush1.msra.mxu0 0.0
    %1099 = vmatprep.subr.mxu0 0.0
    %1100 = vmatpush1.msra.mxu0 0.0
    %1101 = vmatprep.subr.mxu0 0.0
    %1102 = vmatpush1.msra.mxu0 0.0
    %1103 = vmatprep.subr.mxu0 0.0
    %1104 = vmatpush1.msra.mxu0 0.0
    %1105 = vmatprep.subr.mxu0 0.0
    %1106 = vmatpush1.msra.mxu0 0.0
    %1107 = vmatprep.subr.mxu0 0.0
    %1108 = vmatpush1.msra.mxu0 0.0
    %1109 = vmatprep.subr.mxu0 0.0
    %1110 = vmatpush1.msra.mxu0 0.0
    %1111 = vmatprep.subr.mxu0 0.0
    %1112 = vmatpush1.msra.mxu0 0.0
    %1113 = vmatprep.subr.mxu0 0.0
    %1114 = vmatpush1.msra.mxu0 0.0
    %1115 = vmatprep.subr.mxu0 0.0
    %1116 = vmatpush1.msra.mxu0 0.0
    %1117 = vmatprep.subr.mxu0 0.0
    %1118 = vmatpush1.msra.mxu0 0.0
    %1119 = vmatprep.subr.mxu0 0.0
    %1120 = vmatpush1.msra.mxu0 0.0
    %1121 = vmatprep.subr.mxu0 0.0
    %1122 = vmatpush1.msra.mxu0 0.0
    %1123 = vmatprep.subr.mxu0 0.0
    %1124 = vmatpush1.msra.mxu0 0.0
    %1125 = vmatprep.subr.mxu0 0.0
    %1126 = vmatpush1.msra.mxu0 0.0
    %1127 = vmatprep.subr.mxu0 0.0
    %1128 = vmatpush1.msra.mxu0 0.0
    %1129 = vmatprep.subr.mxu0 0.0
    %1130 = vmatpush1.msra.mxu0 0.0
    %1131 = vmatprep.subr.mxu0 0.0
    %1132 = vmatpush1.msra.mxu0 0.0
    %1133 = vmatprep.subr.mxu0 0.0
    %1134 = vmatpush1.msra.mxu0 0.0
    %1135 = vmatprep.subr.mxu0 0.0
    %1136 = vmatpush1.msra.mxu0 0.0
    %1137 = vmatprep.subr.mxu0 0.0
    %1138 = vmatpush1.msra.mxu0 0.0
    %1139 = vmatprep.subr.mxu0 0.0
    %1140 = vmatpush1.msra.mxu0 0.0
    %1141 = vmatprep.mubr.f32.mxu0 0.0
    %v1142 = vand.u32 %v151, 4294901760
    %1143 = vmatmul.mubr.f32.gmra.mrb[0].mxu0 %v1142
    %v1144 = vpop.f32.mrb[0].mxu0
    %v1145 = vadd.f32 %v1050, %v1144
    %v1146 = vpop.f32.mrb[0].mxu0
    %1147 = vdwg.mxu0
    %1148 = vmatprep.subr.mxu0 0.0
    %v1149 = vand.u32 %v123, 4294901760
    %1150 = vmatpush1.msra.mxu0 %v1149
    %1151 = vmatprep.subr.mxu0 0.0
    %v1152 = vand.u32 %v124, 4294901760
    %1153 = vmatpush1.msra.mxu0 %v1152
    %1154 = vmatprep.subr.mxu0 0.0
    %v1155 = vand.u32 %v125, 4294901760
    %1156 = vmatpush1.msra.mxu0 %v1155
    %1157 = vmatprep.subr.mxu0 0.0
    %v1158 = vand.u32 %v126, 4294901760
    %1159 = vmatpush1.msra.mxu0 %v1158
    %1160 = vmatprep.subr.mxu0 0.0
    %v1161 = vand.u32 %v127, 4294901760
    %1162 = vmatpush1.msra.mxu0 %v1161
    %1163 = vmatprep.subr.mxu0 0.0
    %v1164 = vand.u32 %v128, 4294901760
    %1165 = vmatpush1.msra.mxu0 %v1164
    %1166 = vmatprep.subr.mxu0 0.0
    %v1167 = vand.u32 %v129, 4294901760
    %1168 = vmatpush1.msra.mxu0 %v1167
    %1169 = vmatprep.subr.mxu0 0.0
    %v1170 = vand.u32 %v130, 4294901760
    %1171 = vmatpush1.msra.mxu0 %v1170
    %1172 = vmatprep.subr.mxu0 0.0
    %1173 = vmatpush1.msra.mxu0 0.0
    %1174 = vmatprep.subr.mxu0 0.0
    %1175 = vmatpush1.msra.mxu0 0.0
    %1176 = vmatprep.subr.mxu0 0.0
    %1177 = vmatpush1.msra.mxu0 0.0
    %1178 = vmatprep.subr.mxu0 0.0
    %1179 = vmatpush1.msra.mxu0 0.0
    %1180 = vmatprep.subr.mxu0 0.0
    %1181 = vmatpush1.msra.mxu0 0.0
    %1182 = vmatprep.subr.mxu0 0.0
    %1183 = vmatpush1.msra.mxu0 0.0
    %1184 = vmatprep.subr.mxu0 0.0
    %1185 = vmatpush1.msra.mxu0 0.0
    %1186 = vmatprep.subr.mxu0 0.0
    %1187 = vmatpush1.msra.mxu0 0.0
    %1188 = vmatprep.subr.mxu0 0.0
    %1189 = vmatpush1.msra.mxu0 0.0
    %1190 = vmatprep.subr.mxu0 0.0
    %1191 = vmatpush1.msra.mxu0 0.0
    %1192 = vmatprep.subr.mxu0 0.0
    %1193 = vmatpush1.msra.mxu0 0.0
    %1194 = vmatprep.subr.mxu0 0.0
    %1195 = vmatpush1.msra.mxu0 0.0
    %1196 = vmatprep.subr.mxu0 0.0
    %1197 = vmatpush1.msra.mxu0 0.0
    %1198 = vmatprep.subr.mxu0 0.0
    %1199 = vmatpush1.msra.mxu0 0.0
    %1200 = vmatprep.subr.mxu0 0.0
    %1201 = vmatpush1.msra.mxu0 0.0
    %1202 = vmatprep.subr.mxu0 0.0
    %1203 = vmatpush1.msra.mxu0 0.0
    %1204 = vmatprep.subr.mxu0 0.0
    %1205 = vmatpush1.msra.mxu0 0.0
    %1206 = vmatprep.subr.mxu0 0.0
    %1207 = vmatpush1.msra.mxu0 0.0
    %1208 = vmatprep.subr.mxu0 0.0
    %1209 = vmatpush1.msra.mxu0 0.0
    %1210 = vmatprep.subr.mxu0 0.0
    %1211 = vmatpush1.msra.mxu0 0.0
    %1212 = vmatprep.subr.mxu0 0.0
    %1213 = vmatpush1.msra.mxu0 0.0
    %1214 = vmatprep.subr.mxu0 0.0
    %1215 = vmatpush1.msra.mxu0 0.0
    %1216 = vmatprep.subr.mxu0 0.0
    %1217 = vmatpush1.msra.mxu0 0.0
    %1218 = vmatprep.subr.mxu0 0.0
    %1219 = vmatpush1.msra.mxu0 0.0
    %1220 = vmatprep.mubr.f32.mxu0 0.0
    %v1221 = vand.u32 %v151, 4294901760
    %1222 = vmatmul.mubr.f32.gmra.mrb[0].mxu0 %v1221
    %v1223 = vpop.f32.mrb[0].mxu0
    %v1224 = vadd.f32 %v1145, %v1223
    %v1225 = vpop.f32.mrb[0].mxu0
    %1226 = vdwg.mxu0
    %v1227 = vmax.f32 %v687, 0.0
    %v1228 = vmax.f32 %v1224, 0.0
    %vm1229 = vcmask 31744
    %v1231 = vsel %vm1229, %v133, 0
    %v1234 = vsel %vm1229, %v134, 0
    %v1237 = vsel %vm1229, %v135, 0
    %v1240 = vsel %vm1229, %v136, 0
    %v1243 = vsel %vm1229, %v137, 0
    %v1246 = vsel %vm1229, %v138, 0
    %v1249 = vsel %vm1229, %v139, 0
    %v1252 = vsel %vm1229, %v140, 0
    %vm1254 = vcmask 1043456
    %v1256 = vsel %vm1254, %v1227, 0
    %1258 = vmatprep.subr.mxu0 0.0
    %v1259 = vand.u32 %v1256, 4294901760
    %1260 = vmatpush1.msra.mxu0 %v1259
    %1261 = vmatprep.subr.mxu0 0.0
    %1262 = vmatpush1.msra.mxu0 0.0
    %1263 = vmatprep.subr.mxu0 0.0
    %1264 = vmatpush1.msra.mxu0 0.0
    %1265 = vmatprep.subr.mxu0 0.0
    %1266 = vmatpush1.msra.mxu0 0.0
    %1267 = vmatprep.subr.mxu0 0.0
    %1268 = vmatpush1.msra.mxu0 0.0
    %1269 = vmatprep.subr.mxu0 0.0
    %1270 = vmatpush1.msra.mxu0 0.0
    %1271 = vmatprep.subr.mxu0 0.0
    %1272 = vmatpush1.msra.mxu0 0.0
    %1273 = vmatprep.subr.mxu0 0.0
    %1274 = vmatpush1.msra.mxu0 0.0
    %1275 = vmatprep.subr.mxu0 0.0
    %1276 = vmatpush1.msra.mxu0 0.0
    %1277 = vmatprep.subr.mxu0 0.0
    %1278 = vmatpush1.msra.mxu0 0.0
    %1279 = vmatprep.subr.mxu0 0.0
    %1280 = vmatpush1.msra.mxu0 0.0
    %1281 = vmatprep.subr.mxu0 0.0
    %1282 = vmatpush1.msra.mxu0 0.0
    %1283 = vmatprep.subr.mxu0 0.0
    %1284 = vmatpush1.msra.mxu0 0.0
    %1285 = vmatprep.subr.mxu0 0.0
    %1286 = vmatpush1.msra.mxu0 0.0
    %1287 = vmatprep.subr.mxu0 0.0
    %1288 = vmatpush1.msra.mxu0 0.0
    %1289 = vmatprep.subr.mxu0 0.0
    %1290 = vmatpush1.msra.mxu0 0.0
    %1291 = vmatprep.subr.mxu0 0.0
    %1292 = vmatpush1.msra.mxu0 0.0
    %1293 = vmatprep.subr.mxu0 0.0
    %1294 = vmatpush1.msra.mxu0 0.0
    %1295 = vmatprep.subr.mxu0 0.0
    %1296 = vmatpush1.msra.mxu0 0.0
    %1297 = vmatprep.subr.mxu0 0.0
    %1298 = vmatpush1.msra.mxu0 0.0
    %1299 = vmatprep.subr.mxu0 0.0
    %1300 = vmatpush1.msra.mxu0 0.0
    %1301 = vmatprep.subr.mxu0 0.0
    %1302 = vmatpush1.msra.mxu0 0.0
    %1303 = vmatprep.subr.mxu0 0.0
    %1304 = vmatpush1.msra.mxu0 0.0
    %1305 = vmatprep.subr.mxu0 0.0
    %1306 = vmatpush1.msra.mxu0 0.0
    %1307 = vmatprep.subr.mxu0 0.0
    %1308 = vmatpush1.msra.mxu0 0.0
    %1309 = vmatprep.subr.mxu0 0.0
    %1310 = vmatpush1.msra.mxu0 0.0
    %1311 = vmatprep.subr.mxu0 0.0
    %1312 = vmatpush1.msra.mxu0 0.0
    %1313 = vmatprep.subr.mxu0 0.0
    %1314 = vmatpush1.msra.mxu0 0.0
    %1315 = vmatprep.subr.mxu0 0.0
    %1316 = vmatpush1.msra.mxu0 0.0
    %1317 = vmatprep.subr.mxu0 0.0
    %1318 = vmatpush1.msra.mxu0 0.0
    %1319 = vmatprep.subr.mxu0 0.0
    %1320 = vmatpush1.msra.mxu0 0.0
    %1321 = vmatprep.subr.mxu0 0.0
    %1322 = vmatpush1.msra.mxu0 0.0
    %1323 = vmatprep.mubr.f32.mxu0 0.0
    %v1324 = vand.u32 %v1231, 4294901760
    %v1325 = vsub.f32 %v1231, %v1324
    %v1326 = vand.u32 %v1325, 4294901760
    %v1327 = vsub.f32 %v1325, %v1326
    %v1328 = vand.u32 %v1327, 4294901760
    %1329 = vmatmul.mubr.f32.gmra.mrb[0].mxu0 %v1328
    %v1330 = vpop.f32.mrb[0].mxu0
    %v1331 = vadd.f32 %v141, %v1330
    %v1332 = vpop.f32.mrb[0].mxu0
    %1333 = vmatprep.mubr.f32.mxu0 0.0
    %v1334 = vand.u32 %v1234, 4294901760
    %v1335 = vsub.f32 %v1234, %v1334
    %v1336 = vand.u32 %v1335, 4294901760
    %v1337 = vsub.f32 %v1335, %v1336
    %v1338 = vand.u32 %v1337, 4294901760
    %1339 = vmatmul.mubr.f32.gmra.mrb[0].mxu0 %v1338
    %v1340 = vpop.f32.mrb[0].mxu0
    %v1341 = vadd.f32 %v142, %v1340
    %v1342 = vpop.f32.mrb[0].mxu0
    %1343 = vmatprep.mubr.f32.mxu0 0.0
    %v1344 = vand.u32 %v1237, 4294901760
    %v1345 = vsub.f32 %v1237, %v1344
    %v1346 = vand.u32 %v1345, 4294901760
    %v1347 = vsub.f32 %v1345, %v1346
    %v1348 = vand.u32 %v1347, 4294901760
    %1349 = vmatmul.mubr.f32.gmra.mrb[0].mxu0 %v1348
    %v1350 = vpop.f32.mrb[0].mxu0
    %v1351 = vadd.f32 %v143, %v1350
    %v1352 = vpop.f32.mrb[0].mxu0
    %1353 = vmatprep.mubr.f32.mxu0 0.0
    %v1354 = vand.u32 %v1240, 4294901760
    %v1355 = vsub.f32 %v1240, %v1354
    %v1356 = vand.u32 %v1355, 4294901760
    %v1357 = vsub.f32 %v1355, %v1356
    %v1358 = vand.u32 %v1357, 4294901760
    %1359 = vmatmul.mubr.f32.gmra.mrb[0].mxu0 %v1358
    %v1360 = vpop.f32.mrb[0].mxu0
    %v1361 = vadd.f32 %v144, %v1360
    %v1362 = vpop.f32.mrb[0].mxu0
    %1363 = vmatprep.mubr.f32.mxu0 0.0
    %v1364 = vand.u32 %v1243, 4294901760
    %v1365 = vsub.f32 %v1243, %v1364
    %v1366 = vand.u32 %v1365, 4294901760
    %v1367 = vsub.f32 %v1365, %v1366
    %v1368 = vand.u32 %v1367, 4294901760
    %1369 = vmatmul.mubr.f32.gmra.mrb[0].mxu0 %v1368
    %v1370 = vpop.f32.mrb[0].mxu0
    %v1371 = vadd.f32 %v145, %v1370
    %v1372 = vpop.f32.mrb[0].mxu0
    %1373 = vmatprep.mubr.f32.mxu0 0.0
    %v1374 = vand.u32 %v1246, 4294901760
    %v1375 = vsub.f32 %v1246, %v1374
    %v1376 = vand.u32 %v1375, 4294901760
    %v1377 = vsub.f32 %v1375, %v1376
    %v1378 = vand.u32 %v1377, 4294901760
    %1379 = vmatmul.mubr.f32.gmra.mrb[0].mxu0 %v1378
    %v1380 = vpop.f32.mrb[0].mxu0
    %v1381 = vadd.f32 %v146, %v1380
    %v1382 = vpop.f32.mrb[0].mxu0
    %1383 = vmatprep.mubr.f32.mxu0 0.0
    %v1384 = vand.u32 %v1249, 4294901760
    %v1385 = vsub.f32 %v1249, %v1384
    %v1386 = vand.u32 %v1385, 4294901760
    %v1387 = vsub.f32 %v1385, %v1386
    %v1388 = vand.u32 %v1387, 4294901760
    %1389 = vmatmul.mubr.f32.gmra.mrb[0].mxu0 %v1388
    %v1390 = vpop.f32.mrb[0].mxu0
    %v1391 = vadd.f32 %v147, %v1390
    %v1392 = vpop.f32.mrb[0].mxu0
    %1393 = vmatprep.mubr.f32.mxu0 0.0
    %v1394 = vand.u32 %v1252, 4294901760
    %v1395 = vsub.f32 %v1252, %v1394
    %v1396 = vand.u32 %v1395, 4294901760
    %v1397 = vsub.f32 %v1395, %v1396
    %v1398 = vand.u32 %v1397, 4294901760
    %1399 = vmatmul.mubr.f32.gmra.mrb[0].mxu0 %v1398
    %v1400 = vpop.f32.mrb[0].mxu0
    %v1401 = vadd.f32 %v148, %v1400
    %v1402 = vpop.f32.mrb[0].mxu0
    %1403 = vdwg.mxu0
    %1404 = vmatprep.subr.mxu0 0.0
    %v1405 = vand.u32 %v1256, 4294901760
    %v1406 = vsub.f32 %v1256, %v1405
    %v1407 = vand.u32 %v1406, 4294901760
    %v1408 = vsub.f32 %v1406, %v1407
    %v1409 = vand.u32 %v1408, 4294901760
    %1410 = vmatpush1.msra.mxu0 %v1409
    %1411 = vmatprep.subr.mxu0 0.0
    %1412 = vmatpush1.msra.mxu0 0.0
    %1413 = vmatprep.subr.mxu0 0.0
    %1414 = vmatpush1.msra.mxu0 0.0
    %1415 = vmatprep.subr.mxu0 0.0
    %1416 = vmatpush1.msra.mxu0 0.0
    %1417 = vmatprep.subr.mxu0 0.0
    %1418 = vmatpush1.msra.mxu0 0.0
    %1419 = vmatprep.subr.mxu0 0.0
    %1420 = vmatpush1.msra.mxu0 0.0
    %1421 = vmatprep.subr.mxu0 0.0
    %1422 = vmatpush1.msra.mxu0 0.0
    %1423 = vmatprep.subr.mxu0 0.0
    %1424 = vmatpush1.msra.mxu0 0.0
    %1425 = vmatprep.subr.mxu0 0.0
    %1426 = vmatpush1.msra.mxu0 0.0
    %1427 = vmatprep.subr.mxu0 0.0
    %1428 = vmatpush1.msra.mxu0 0.0
    %1429 = vmatprep.subr.mxu0 0.0
    %1430 = vmatpush1.msra.mxu0 0.0
    %1431 = vmatprep.subr.mxu0 0.0
    %1432 = vmatpush1.msra.mxu0 0.0
    %1433 = vmatprep.subr.mxu0 0.0
    %1434 = vmatpush1.msra.mxu0 0.0
    %1435 = vmatprep.subr.mxu0 0.0
    %1436 = vmatpush1.msra.mxu0 0.0
    %1437 = vmatprep.subr.mxu0 0.0
    %1438 = vmatpush1.msra.mxu0 0.0
    %1439 = vmatprep.subr.mxu0 0.0
    %1440 = vmatpush1.msra.mxu0 0.0
    %1441 = vmatprep.subr.mxu0 0.0
    %1442 = vmatpush1.msra.mxu0 0.0
    %1443 = vmatprep.subr.mxu0 0.0
    %1444 = vmatpush1.msra.mxu0 0.0
    %1445 = vmatprep.subr.mxu0 0.0
    %1446 = vmatpush1.msra.mxu0 0.0
    %1447 = vmatprep.subr.mxu0 0.0
    %1448 = vmatpush1.msra.mxu0 0.0
    %1449 = vmatprep.subr.mxu0 0.0
    %1450 = vmatpush1.msra.mxu0 0.0
    %1451 = vmatprep.subr.mxu0 0.0
    %1452 = vmatpush1.msra.mxu0 0.0
    %1453 = vmatprep.subr.mxu0 0.0
    %1454 = vmatpush1.msra.mxu0 0.0
    %1455 = vmatprep.subr.mxu0 0.0
    %1456 = vmatpush1.msra.mxu0 0.0
    %1457 = vmatprep.subr.mxu0 0.0
    %1458 = vmatpush1.msra.mxu0 0.0
    %1459 = vmatprep.subr.mxu0 0.0
    %1460 = vmatpush1.msra.mxu0 0.0
    %1461 = vmatprep.subr.mxu0 0.0
    %1462 = vmatpush1.msra.mxu0 0.0
    %1463 = vmatprep.subr.mxu0 0.0
    %1464 = vmatpush1.msra.mxu0 0.0
    %1465 = vmatprep.subr.mxu0 0.0
    %1466 = vmatpush1.msra.mxu0 0.0
    %1467 = vmatprep.subr.mxu0 0.0
    %1468 = vmatpush1.msra.mxu0 0.0
    %1469 = vmatprep.subr.mxu0 0.0
    %1470 = vmatpush1.msra.mxu0 0.0
    %1471 = vmatprep.subr.mxu0 0.0
    %1472 = vmatpush1.msra.mxu0 0.0
    %1473 = vmatprep.mubr.f32.mxu0 0.0
    %v1474 = vand.u32 %v1231, 4294901760
    %1475 = vmatmul.mubr.f32.gmra.mrb[0].mxu0 %v1474
    %v1476 = vpop.f32.mrb[0].mxu0
    %v1477 = vadd.f32 %v1331, %v1476
    %v1478 = vpop.f32.mrb[0].mxu0
    %1479 = vmatprep.mubr.f32.mxu0 0.0
    %v1480 = vand.u32 %v1234, 4294901760
    %1481 = vmatmul.mubr.f32.gmra.mrb[0].mxu0 %v1480
    %v1482 = vpop.f32.mrb[0].mxu0
    %v1483 = vadd.f32 %v1341, %v1482
    %v1484 = vpop.f32.mrb[0].mxu0
    %1485 = vmatprep.mubr.f32.mxu0 0.0
    %v1486 = vand.u32 %v1237, 4294901760
    %1487 = vmatmul.mubr.f32.gmra.mrb[0].mxu0 %v1486
    %v1488 = vpop.f32.mrb[0].mxu0
    %v1489 = vadd.f32 %v1351, %v1488
    %v1490 = vpop.f32.mrb[0].mxu0
    %1491 = vmatprep.mubr.f32.mxu0 0.0
    %v1492 = vand.u32 %v1240, 4294901760
    %1493 = vmatmul.mubr.f32.gmra.mrb[0].mxu0 %v1492
    %v1494 = vpop.f32.mrb[0].mxu0
    %v1495 = vadd.f32 %v1361, %v1494
    %v1496 = vpop.f32.mrb[0].mxu0
    %1497 = vmatprep.mubr.f32.mxu0 0.0
    %v1498 = vand.u32 %v1243, 4294901760
    %1499 = vmatmul.mubr.f32.gmra.mrb[0].mxu0 %v1498
    %v1500 = vpop.f32.mrb[0].mxu0
    %v1501 = vadd.f32 %v1371, %v1500
    %v1502 = vpop.f32.mrb[0].mxu0
    %1503 = vmatprep.mubr.f32.mxu0 0.0
    %v1504 = vand.u32 %v1246, 4294901760
    %1505 = vmatmul.mubr.f32.gmra.mrb[0].mxu0 %v1504
    %v1506 = vpop.f32.mrb[0].mxu0
    %v1507 = vadd.f32 %v1381, %v1506
    %v1508 = vpop.f32.mrb[0].mxu0
    %1509 = vmatprep.mubr.f32.mxu0 0.0
    %v1510 = vand.u32 %v1249, 4294901760
    %1511 = vmatmul.mubr.f32.gmra.mrb[0].mxu0 %v1510
    %v1512 = vpop.f32.mrb[0].mxu0
    %v1513 = vadd.f32 %v1391, %v1512
    %v1514 = vpop.f32.mrb[0].mxu0
    %1515 = vmatprep.mubr.f32.mxu0 0.0
    %v1516 = vand.u32 %v1252, 4294901760
    %1517 = vmatmul.mubr.f32.gmra.mrb[0].mxu0 %v1516
    %v1518 = vpop.f32.mrb[0].mxu0
    %v1519 = vadd.f32 %v1401, %v1518
    %v1520 = vpop.f32.mrb[0].mxu0
    %1521 = vdwg.mxu0
    %1522 = vmatprep.subr.mxu0 0.0
    %v1523 = vand.u32 %v1256, 4294901760
    %v1524 = vsub.f32 %v1256, %v1523
    %1525 = vmatpush1.msra.mxu0 %v1524
    %1526 = vmatprep.subr.mxu0 0.0
    %1527 = vmatpush1.msra.mxu0 0.0
    %1528 = vmatprep.subr.mxu0 0.0
    %1529 = vmatpush1.msra.mxu0 0.0
    %1530 = vmatprep.subr.mxu0 0.0
    %1531 = vmatpush1.msra.mxu0 0.0
    %1532 = vmatprep.subr.mxu0 0.0
    %1533 = vmatpush1.msra.mxu0 0.0
    %1534 = vmatprep.subr.mxu0 0.0
    %1535 = vmatpush1.msra.mxu0 0.0
    %1536 = vmatprep.subr.mxu0 0.0
    %1537 = vmatpush1.msra.mxu0 0.0
    %1538 = vmatprep.subr.mxu0 0.0
    %1539 = vmatpush1.msra.mxu0 0.0
    %1540 = vmatprep.subr.mxu0 0.0
    %1541 = vmatpush1.msra.mxu0 0.0
    %1542 = vmatprep.subr.mxu0 0.0
    %1543 = vmatpush1.msra.mxu0 0.0
    %1544 = vmatprep.subr.mxu0 0.0
    %1545 = vmatpush1.msra.mxu0 0.0
    %1546 = vmatprep.subr.mxu0 0.0
    %1547 = vmatpush1.msra.mxu0 0.0
    %1548 = vmatprep.subr.mxu0 0.0
    %1549 = vmatpush1.msra.mxu0 0.0
    %1550 = vmatprep.subr.mxu0 0.0
    %1551 = vmatpush1.msra.mxu0 0.0
    %1552 = vmatprep.subr.mxu0 0.0
    %1553 = vmatpush1.msra.mxu0 0.0
    %1554 = vmatprep.subr.mxu0 0.0
    %1555 = vmatpush1.msra.mxu0 0.0
    %1556 = vmatprep.subr.mxu0 0.0
    %1557 = vmatpush1.msra.mxu0 0.0
    %1558 = vmatprep.subr.mxu0 0.0
    %1559 = vmatpush1.msra.mxu0 0.0
    %1560 = vmatprep.subr.mxu0 0.0
    %1561 = vmatpush1.msra.mxu0 0.0
    %1562 = vmatprep.subr.mxu0 0.0
    %1563 = vmatpush1.msra.mxu0 0.0
    %1564 = vmatprep.subr.mxu0 0.0
    %1565 = vmatpush1.msra.mxu0 0.0
    %1566 = vmatprep.subr.mxu0 0.0
    %1567 = vmatpush1.msra.mxu0 0.0
    %1568 = vmatprep.subr.mxu0 0.0
    %1569 = vmatpush1.msra.mxu0 0.0
    %1570 = vmatprep.subr.mxu0 0.0
    %1571 = vmatpush1.msra.mxu0 0.0
    %1572 = vmatprep.subr.mxu0 0.0
    %1573 = vmatpush1.msra.mxu0 0.0
    %1574 = vmatprep.subr.mxu0 0.0
    %1575 = vmatpush1.msra.mxu0 0.0
    %1576 = vmatprep.subr.mxu0 0.0
    %1577 = vmatpush1.msra.mxu0 0.0
    %1578 = vmatprep.subr.mxu0 0.0
    %1579 = vmatpush1.msra.mxu0 0.0
    %1580 = vmatprep.subr.mxu0 0.0
    %1581 = vmatpush1.msra.mxu0 0.0
    %1582 = vmatprep.subr.mxu0 0.0
    %1583 = vmatpush1.msra.mxu0 0.0
    %1584 = vmatprep.subr.mxu0 0.0
    %1585 = vmatpush1.msra.mxu0 0.0
    %1586 = vmatprep.subr.mxu0 0.0
    %1587 = vmatpush1.msra.mxu0 0.0
    %1588 = vmatprep.mubr.f32.mxu0 0.0
    %v1589 = vand.u32 %v1231, 4294901760
    %v1590 = vsub.f32 %v1231, %v1589
    %1591 = vmatmul.mubr.f32.gmra.mrb[0].mxu0 %v1590
    %v1592 = vpop.f32.mrb[0].mxu0
    %v1593 = vadd.f32 %v1477, %v1592
    %v1594 = vpop.f32.mrb[0].mxu0
    %1595 = vmatprep.mubr.f32.mxu0 0.0
    %v1596 = vand.u32 %v1234, 4294901760
    %v1597 = vsub.f32 %v1234, %v1596
    %1598 = vmatmul.mubr.f32.gmra.mrb[0].mxu0 %v1597
    %v1599 = vpop.f32.mrb[0].mxu0
    %v1600 = vadd.f32 %v1483, %v1599
    %v1601 = vpop.f32.mrb[0].mxu0
    %1602 = vmatprep.mubr.f32.mxu0 0.0
    %v1603 = vand.u32 %v1237, 4294901760
    %v1604 = vsub.f32 %v1237, %v1603
    %1605 = vmatmul.mubr.f32.gmra.mrb[0].mxu0 %v1604
    %v1606 = vpop.f32.mrb[0].mxu0
    %v1607 = vadd.f32 %v1489, %v1606
    %v1608 = vpop.f32.mrb[0].mxu0
    %1609 = vmatprep.mubr.f32.mxu0 0.0
    %v1610 = vand.u32 %v1240, 4294901760
    %v1611 = vsub.f32 %v1240, %v1610
    %1612 = vmatmul.mubr.f32.gmra.mrb[0].mxu0 %v1611
    %v1613 = vpop.f32.mrb[0].mxu0
    %v1614 = vadd.f32 %v1495, %v1613
    %v1615 = vpop.f32.mrb[0].mxu0
    %1616 = vmatprep.mubr.f32.mxu0 0.0
    %v1617 = vand.u32 %v1243, 4294901760
    %v1618 = vsub.f32 %v1243, %v1617
    %1619 = vmatmul.mubr.f32.gmra.mrb[0].mxu0 %v1618
    %v1620 = vpop.f32.mrb[0].mxu0
    %v1621 = vadd.f32 %v1501, %v1620
    %v1622 = vpop.f32.mrb[0].mxu0
    %1623 = vmatprep.mubr.f32.mxu0 0.0
    %v1624 = vand.u32 %v1246, 4294901760
    %v1625 = vsub.f32 %v1246, %v1624
    %1626 = vmatmul.mubr.f32.gmra.mrb[0].mxu0 %v1625
    %v1627 = vpop.f32.mrb[0].mxu0
    %v1628 = vadd.f32 %v1507, %v1627
    %v1629 = vpop.f32.mrb[0].mxu0
    %1630 = vmatprep.mubr.f32.mxu0 0.0
    %v1631 = vand.u32 %v1249, 4294901760
    %v1632 = vsub.f32 %v1249, %v1631
    %1633 = vmatmul.mubr.f32.gmra.mrb[0].mxu0 %v1632
    %v1634 = vpop.f32.mrb[0].mxu0
    %v1635 = vadd.f32 %v1513, %v1634
    %v1636 = vpop.f32.mrb[0].mxu0
    %1637 = vmatprep.mubr.f32.mxu0 0.0
    %v1638 = vand.u32 %v1252, 4294901760
    %v1639 = vsub.f32 %v1252, %v1638
    %1640 = vmatmul.mubr.f32.gmra.mrb[0].mxu0 %v1639
    %v1641 = vpop.f32.mrb[0].mxu0
    %v1642 = vadd.f32 %v1519, %v1641
    %v1643 = vpop.f32.mrb[0].mxu0
    %1644 = vdwg.mxu0
    %1645 = vmatprep.subr.mxu0 0.0
    %v1646 = vand.u32 %v1256, 4294901760
    %1647 = vmatpush1.msra.mxu0 %v1646
    %1648 = vmatprep.subr.mxu0 0.0
    %1649 = vmatpush1.msra.mxu0 0.0
    %1650 = vmatprep.subr.mxu0 0.0
    %1651 = vmatpush1.msra.mxu0 0.0
    %1652 = vmatprep.subr.mxu0 0.0
    %1653 = vmatpush1.msra.mxu0 0.0
    %1654 = vmatprep.subr.mxu0 0.0
    %1655 = vmatpush1.msra.mxu0 0.0
    %1656 = vmatprep.subr.mxu0 0.0
    %1657 = vmatpush1.msra.mxu0 0.0
    %1658 = vmatprep.subr.mxu0 0.0
    %1659 = vmatpush1.msra.mxu0 0.0
    %1660 = vmatprep.subr.mxu0 0.0
    %1661 = vmatpush1.msra.mxu0 0.0
    %1662 = vmatprep.subr.mxu0 0.0
    %1663 = vmatpush1.msra.mxu0 0.0
    %1664 = vmatprep.subr.mxu0 0.0
    %1665 = vmatpush1.msra.mxu0 0.0
    %1666 = vmatprep.subr.mxu0 0.0
    %1667 = vmatpush1.msra.mxu0 0.0
    %1668 = vmatprep.subr.mxu0 0.0
    %1669 = vmatpush1.msra.mxu0 0.0
    %1670 = vmatprep.subr.mxu0 0.0
    %1671 = vmatpush1.msra.mxu0 0.0
    %1672 = vmatprep.subr.mxu0 0.0
    %1673 = vmatpush1.msra.mxu0 0.0
    %1674 = vmatprep.subr.mxu0 0.0
    %1675 = vmatpush1.msra.mxu0 0.0
    %1676 = vmatprep.subr.mxu0 0.0
    %1677 = vmatpush1.msra.mxu0 0.0
    %1678 = vmatprep.subr.mxu0 0.0
    %1679 = vmatpush1.msra.mxu0 0.0
    %1680 = vmatprep.subr.mxu0 0.0
    %1681 = vmatpush1.msra.mxu0 0.0
    %1682 = vmatprep.subr.mxu0 0.0
    %1683 = vmatpush1.msra.mxu0 0.0
    %1684 = vmatprep.subr.mxu0 0.0
    %1685 = vmatpush1.msra.mxu0 0.0
    %1686 = vmatprep.subr.mxu0 0.0
    %1687 = vmatpush1.msra.mxu0 0.0
    %1688 = vmatprep.subr.mxu0 0.0
    %1689 = vmatpush1.msra.mxu0 0.0
    %1690 = vmatprep.subr.mxu0 0.0
    %1691 = vmatpush1.msra.mxu0 0.0
    %1692 = vmatprep.subr.mxu0 0.0
    %1693 = vmatpush1.msra.mxu0 0.0
    %1694 = vmatprep.subr.mxu0 0.0
    %1695 = vmatpush1.msra.mxu0 0.0
    %1696 = vmatprep.subr.mxu0 0.0
    %1697 = vmatpush1.msra.mxu0 0.0
    %1698 = vmatprep.subr.mxu0 0.0
    %1699 = vmatpush1.msra.mxu0 0.0
    %1700 = vmatprep.subr.mxu0 0.0
    %1701 = vmatpush1.msra.mxu0 0.0
    %1702 = vmatprep.subr.mxu0 0.0
    %1703 = vmatpush1.msra.mxu0 0.0
    %1704 = vmatprep.subr.mxu0 0.0
    %1705 = vmatpush1.msra.mxu0 0.0
    %1706 = vmatprep.subr.mxu0 0.0
    %1707 = vmatpush1.msra.mxu0 0.0
    %1708 = vmatprep.subr.mxu0 0.0
    %1709 = vmatpush1.msra.mxu0 0.0
    %1710 = vmatprep.mubr.f32.mxu0 0.0
    %v1711 = vand.u32 %v1231, 4294901760
    %v1712 = vsub.f32 %v1231, %v1711
    %v1713 = vand.u32 %v1712, 4294901760
    %1714 = vmatmul.mubr.f32.gmra.mrb[0].mxu0 %v1713
    %v1715 = vpop.f32.mrb[0].mxu0
    %v1716 = vadd.f32 %v1593, %v1715
    %v1717 = vpop.f32.mrb[0].mxu0
    %1718 = vmatprep.mubr.f32.mxu0 0.0
    %v1719 = vand.u32 %v1234, 4294901760
    %v1720 = vsub.f32 %v1234, %v1719
    %v1721 = vand.u32 %v1720, 4294901760
    %1722 = vmatmul.mubr.f32.gmra.mrb[0].mxu0 %v1721
    %v1723 = vpop.f32.mrb[0].mxu0
    %v1724 = vadd.f32 %v1600, %v1723
    %v1725 = vpop.f32.mrb[0].mxu0
    %1726 = vmatprep.mubr.f32.mxu0 0.0
    %v1727 = vand.u32 %v1237, 4294901760
    %v1728 = vsub.f32 %v1237, %v1727
    %v1729 = vand.u32 %v1728, 4294901760
    %1730 = vmatmul.mubr.f32.gmra.mrb[0].mxu0 %v1729
    %v1731 = vpop.f32.mrb[0].mxu0
    %v1732 = vadd.f32 %v1607, %v1731
    %v1733 = vpop.f32.mrb[0].mxu0
    %1734 = vmatprep.mubr.f32.mxu0 0.0
    %v1735 = vand.u32 %v1240, 4294901760
    %v1736 = vsub.f32 %v1240, %v1735
    %v1737 = vand.u32 %v1736, 4294901760
    %1738 = vmatmul.mubr.f32.gmra.mrb[0].mxu0 %v1737
    %v1739 = vpop.f32.mrb[0].mxu0
    %v1740 = vadd.f32 %v1614, %v1739
    %v1741 = vpop.f32.mrb[0].mxu0
    %1742 = vmatprep.mubr.f32.mxu0 0.0
    %v1743 = vand.u32 %v1243, 4294901760
    %v1744 = vsub.f32 %v1243, %v1743
    %v1745 = vand.u32 %v1744, 4294901760
    %1746 = vmatmul.mubr.f32.gmra.mrb[0].mxu0 %v1745
    %v1747 = vpop.f32.mrb[0].mxu0
    %v1748 = vadd.f32 %v1621, %v1747
    %v1749 = vpop.f32.mrb[0].mxu0
    %1750 = vmatprep.mubr.f32.mxu0 0.0
    %v1751 = vand.u32 %v1246, 4294901760
    %v1752 = vsub.f32 %v1246, %v1751
    %v1753 = vand.u32 %v1752, 4294901760
    %1754 = vmatmul.mubr.f32.gmra.mrb[0].mxu0 %v1753
    %v1755 = vpop.f32.mrb[0].mxu0
    %v1756 = vadd.f32 %v1628, %v1755
    %v1757 = vpop.f32.mrb[0].mxu0
    %1758 = vmatprep.mubr.f32.mxu0 0.0
    %v1759 = vand.u32 %v1249, 4294901760
    %v1760 = vsub.f32 %v1249, %v1759
    %v1761 = vand.u32 %v1760, 4294901760
    %1762 = vmatmul.mubr.f32.gmra.mrb[0].mxu0 %v1761
    %v1763 = vpop.f32.mrb[0].mxu0
    %v1764 = vadd.f32 %v1635, %v1763
    %v1765 = vpop.f32.mrb[0].mxu0
    %1766 = vmatprep.mubr.f32.mxu0 0.0
    %v1767 = vand.u32 %v1252, 4294901760
    %v1768 = vsub.f32 %v1252, %v1767
    %v1769 = vand.u32 %v1768, 4294901760
    %1770 = vmatmul.mubr.f32.gmra.mrb[0].mxu0 %v1769
    %v1771 = vpop.f32.mrb[0].mxu0
    %v1772 = vadd.f32 %v1642, %v1771
    %v1773 = vpop.f32.mrb[0].mxu0
    %1774 = vdwg.mxu0
    %1775 = vmatprep.subr.mxu0 0.0
    %v1776 = vand.u32 %v1256, 4294901760
    %v1777 = vsub.f32 %v1256, %v1776
    %v1778 = vand.u32 %v1777, 4294901760
    %1779 = vmatpush1.msra.mxu0 %v1778
    %1780 = vmatprep.subr.mxu0 0.0
    %1781 = vmatpush1.msra.mxu0 0.0
    %1782 = vmatprep.subr.mxu0 0.0
    %1783 = vmatpush1.msra.mxu0 0.0
    %1784 = vmatprep.subr.mxu0 0.0
    %1785 = vmatpush1.msra.mxu0 0.0
    %1786 = vmatprep.subr.mxu0 0.0
    %1787 = vmatpush1.msra.mxu0 0.0
    %1788 = vmatprep.subr.mxu0 0.0
    %1789 = vmatpush1.msra.mxu0 0.0
    %1790 = vmatprep.subr.mxu0 0.0
    %1791 = vmatpush1.msra.mxu0 0.0
    %1792 = vmatprep.subr.mxu0 0.0
    %1793 = vmatpush1.msra.mxu0 0.0
    %1794 = vmatprep.subr.mxu0 0.0
    %1795 = vmatpush1.msra.mxu0 0.0
    %1796 = vmatprep.subr.mxu0 0.0
    %1797 = vmatpush1.msra.mxu0 0.0
    %1798 = vmatprep.subr.mxu0 0.0
    %1799 = vmatpush1.msra.mxu0 0.0
    %1800 = vmatprep.subr.mxu0 0.0
    %1801 = vmatpush1.msra.mxu0 0.0
    %1802 = vmatprep.subr.mxu0 0.0
    %1803 = vmatpush1.msra.mxu0 0.0
    %1804 = vmatprep.subr.mxu0 0.0
    %1805 = vmatpush1.msra.mxu0 0.0
    %1806 = vmatprep.subr.mxu0 0.0
    %1807 = vmatpush1.msra.mxu0 0.0
    %1808 = vmatprep.subr.mxu0 0.0
    %1809 = vmatpush1.msra.mxu0 0.0
    %1810 = vmatprep.subr.mxu0 0.0
    %1811 = vmatpush1.msra.mxu0 0.0
    %1812 = vmatprep.subr.mxu0 0.0
    %1813 = vmatpush1.msra.mxu0 0.0
    %1814 = vmatprep.subr.mxu0 0.0
    %1815 = vmatpush1.msra.mxu0 0.0
    %1816 = vmatprep.subr.mxu0 0.0
    %1817 = vmatpush1.msra.mxu0 0.0
    %1818 = vmatprep.subr.mxu0 0.0
    %1819 = vmatpush1.msra.mxu0 0.0
    %1820 = vmatprep.subr.mxu0 0.0
    %1821 = vmatpush1.msra.mxu0 0.0
    %1822 = vmatprep.subr.mxu0 0.0
    %1823 = vmatpush1.msra.mxu0 0.0
    %1824 = vmatprep.subr.mxu0 0.0
    %1825 = vmatpush1.msra.mxu0 0.0
    %1826 = vmatprep.subr.mxu0 0.0
    %1827 = vmatpush1.msra.mxu0 0.0
    %1828 = vmatprep.subr.mxu0 0.0
    %1829 = vmatpush1.msra.mxu0 0.0
    %1830 = vmatprep.subr.mxu0 0.0
    %1831 = vmatpush1.msra.mxu0 0.0
    %1832 = vmatprep.subr.mxu0 0.0
    %1833 = vmatpush1.msra.mxu0 0.0
    %1834 = vmatprep.subr.mxu0 0.0
    %1835 = vmatpush1.msra.mxu0 0.0
    %1836 = vmatprep.subr.mxu0 0.0
    %1837 = vmatpush1.msra.mxu0 0.0
    %1838 = vmatprep.subr.mxu0 0.0
    %1839 = vmatpush1.msra.mxu0 0.0
    %1840 = vmatprep.subr.mxu0 0.0
    %1841 = vmatpush1.msra.mxu0 0.0
    %1842 = vmatprep.mubr.f32.mxu0 0.0
    %v1843 = vand.u32 %v1231, 4294901760
    %1844 = vmatmul.mubr.f32.gmra.mrb[0].mxu0 %v1843
    %v1845 = vpop.f32.mrb[0].mxu0
    %v1846 = vadd.f32 %v1716, %v1845
    %v1847 = vpop.f32.mrb[0].mxu0
    %1848 = vmatprep.mubr.f32.mxu0 0.0
    %v1849 = vand.u32 %v1234, 4294901760
    %1850 = vmatmul.mubr.f32.gmra.mrb[0].mxu0 %v1849
    %v1851 = vpop.f32.mrb[0].mxu0
    %v1852 = vadd.f32 %v1724, %v1851
    %v1853 = vpop.f32.mrb[0].mxu0
    %1854 = vmatprep.mubr.f32.mxu0 0.0
    %v1855 = vand.u32 %v1237, 4294901760
    %1856 = vmatmul.mubr.f32.gmra.mrb[0].mxu0 %v1855
    %v1857 = vpop.f32.mrb[0].mxu0
    %v1858 = vadd.f32 %v1732, %v1857
    %v1859 = vpop.f32.mrb[0].mxu0
    %1860 = vmatprep.mubr.f32.mxu0 0.0
    %v1861 = vand.u32 %v1240, 4294901760
    %1862 = vmatmul.mubr.f32.gmra.mrb[0].mxu0 %v1861
    %v1863 = vpop.f32.mrb[0].mxu0
    %v1864 = vadd.f32 %v1740, %v1863
    %v1865 = vpop.f32.mrb[0].mxu0
    %1866 = vmatprep.mubr.f32.mxu0 0.0
    %v1867 = vand.u32 %v1243, 4294901760
    %1868 = vmatmul.mubr.f32.gmra.mrb[0].mxu0 %v1867
    %v1869 = vpop.f32.mrb[0].mxu0
    %v1870 = vadd.f32 %v1748, %v1869
    %v1871 = vpop.f32.mrb[0].mxu0
    %1872 = vmatprep.mubr.f32.mxu0 0.0
    %v1873 = vand.u32 %v1246, 4294901760
    %1874 = vmatmul.mubr.f32.gmra.mrb[0].mxu0 %v1873
    %v1875 = vpop.f32.mrb[0].mxu0
    %v1876 = vadd.f32 %v1756, %v1875
    %v1877 = vpop.f32.mrb[0].mxu0
    %1878 = vmatprep.mubr.f32.mxu0 0.0
    %v1879 = vand.u32 %v1249, 4294901760
    %1880 = vmatmul.mubr.f32.gmra.mrb[0].mxu0 %v1879
    %v1881 = vpop.f32.mrb[0].mxu0
    %v1882 = vadd.f32 %v1764, %v1881
    %v1883 = vpop.f32.mrb[0].mxu0
    %1884 = vmatprep.mubr.f32.mxu0 0.0
    %v1885 = vand.u32 %v1252, 4294901760
    %1886 = vmatmul.mubr.f32.gmra.mrb[0].mxu0 %v1885
    %v1887 = vpop.f32.mrb[0].mxu0
    %v1888 = vadd.f32 %v1772, %v1887
    %v1889 = vpop.f32.mrb[0].mxu0
    %1890 = vdwg.mxu0
    %1891 = vmatprep.subr.mxu0 0.0
    %v1892 = vand.u32 %v1256, 4294901760
    %1893 = vmatpush1.msra.mxu0 %v1892
    %1894 = vmatprep.subr.mxu0 0.0
    %1895 = vmatpush1.msra.mxu0 0.0
    %1896 = vmatprep.subr.mxu0 0.0
    %1897 = vmatpush1.msra.mxu0 0.0
    %1898 = vmatprep.subr.mxu0 0.0
    %1899 = vmatpush1.msra.mxu0 0.0
    %1900 = vmatprep.subr.mxu0 0.0
    %1901 = vmatpush1.msra.mxu0 0.0
    %1902 = vmatprep.subr.mxu0 0.0
    %1903 = vmatpush1.msra.mxu0 0.0
    %1904 = vmatprep.subr.mxu0 0.0
    %1905 = vmatpush1.msra.mxu0 0.0
    %1906 = vmatprep.subr.mxu0 0.0
    %1907 = vmatpush1.msra.mxu0 0.0
    %1908 = vmatprep.subr.mxu0 0.0
    %1909 = vmatpush1.msra.mxu0 0.0
    %1910 = vmatprep.subr.mxu0 0.0
    %1911 = vmatpush1.msra.mxu0 0.0
    %1912 = vmatprep.subr.mxu0 0.0
    %1913 = vmatpush1.msra.mxu0 0.0
    %1914 = vmatprep.subr.mxu0 0.0
    %1915 = vmatpush1.msra.mxu0 0.0
    %1916 = vmatprep.subr.mxu0 0.0
    %1917 = vmatpush1.msra.mxu0 0.0
    %1918 = vmatprep.subr.mxu0 0.0
    %1919 = vmatpush1.msra.mxu0 0.0
    %1920 = vmatprep.subr.mxu0 0.0
    %1921 = vmatpush1.msra.mxu0 0.0
    %1922 = vmatprep.subr.mxu0 0.0
    %1923 = vmatpush1.msra.mxu0 0.0
    %1924 = vmatprep.subr.mxu0 0.0
    %1925 = vmatpush1.msra.mxu0 0.0
    %1926 = vmatprep.subr.mxu0 0.0
    %1927 = vmatpush1.msra.mxu0 0.0
    %1928 = vmatprep.subr.mxu0 0.0
    %1929 = vmatpush1.msra.mxu0 0.0
    %1930 = vmatprep.subr.mxu0 0.0
    %1931 = vmatpush1.msra.mxu0 0.0
    %1932 = vmatprep.subr.mxu0 0.0
    %1933 = vmatpush1.msra.mxu0 0.0
    %1934 = vmatprep.subr.mxu0 0.0
    %1935 = vmatpush1.msra.mxu0 0.0
    %1936 = vmatprep.subr.mxu0 0.0
    %1937 = vmatpush1.msra.mxu0 0.0
    %1938 = vmatprep.subr.mxu0 0.0
    %1939 = vmatpush1.msra.mxu0 0.0
    %1940 = vmatprep.subr.mxu0 0.0
    %1941 = vmatpush1.msra.mxu0 0.0
    %1942 = vmatprep.subr.mxu0 0.0
    %1943 = vmatpush1.msra.mxu0 0.0
    %1944 = vmatprep.subr.mxu0 0.0
    %1945 = vmatpush1.msra.mxu0 0.0
    %1946 = vmatprep.subr.mxu0 0.0
    %1947 = vmatpush1.msra.mxu0 0.0
    %1948 = vmatprep.subr.mxu0 0.0
    %1949 = vmatpush1.msra.mxu0 0.0
    %1950 = vmatprep.subr.mxu0 0.0
    %1951 = vmatpush1.msra.mxu0 0.0
    %1952 = vmatprep.subr.mxu0 0.0
    %1953 = vmatpush1.msra.mxu0 0.0
    %1954 = vmatprep.subr.mxu0 0.0
    %1955 = vmatpush1.msra.mxu0 0.0
    %1956 = vmatprep.mubr.f32.mxu0 0.0
    %v1957 = vand.u32 %v1231, 4294901760
    %1958 = vmatmul.mubr.f32.gmra.mrb[0].mxu0 %v1957
    %v1959 = vpop.f32.mrb[0].mxu0
    %v1960 = vadd.f32 %v1846, %v1959
    %v1961 = vpop.f32.mrb[0].mxu0
    %1962 = vmatprep.mubr.f32.mxu0 0.0
    %v1963 = vand.u32 %v1234, 4294901760
    %1964 = vmatmul.mubr.f32.gmra.mrb[0].mxu0 %v1963
    %v1965 = vpop.f32.mrb[0].mxu0
    %v1966 = vadd.f32 %v1852, %v1965
    %v1967 = vpop.f32.mrb[0].mxu0
    %1968 = vmatprep.mubr.f32.mxu0 0.0
    %v1969 = vand.u32 %v1237, 4294901760
    %1970 = vmatmul.mubr.f32.gmra.mrb[0].mxu0 %v1969
    %v1971 = vpop.f32.mrb[0].mxu0
    %v1972 = vadd.f32 %v1858, %v1971
    %v1973 = vpop.f32.mrb[0].mxu0
    %1974 = vmatprep.mubr.f32.mxu0 0.0
    %v1975 = vand.u32 %v1240, 4294901760
    %1976 = vmatmul.mubr.f32.gmra.mrb[0].mxu0 %v1975
    %v1977 = vpop.f32.mrb[0].mxu0
    %v1978 = vadd.f32 %v1864, %v1977
    %v1979 = vpop.f32.mrb[0].mxu0
    %1980 = vmatprep.mubr.f32.mxu0 0.0
    %v1981 = vand.u32 %v1243, 4294901760
    %1982 = vmatmul.mubr.f32.gmra.mrb[0].mxu0 %v1981
    %v1983 = vpop.f32.mrb[0].mxu0
    %v1984 = vadd.f32 %v1870, %v1983
    %v1985 = vpop.f32.mrb[0].mxu0
    %1986 = vmatprep.mubr.f32.mxu0 0.0
    %v1987 = vand.u32 %v1246, 4294901760
    %1988 = vmatmul.mubr.f32.gmra.mrb[0].mxu0 %v1987
    %v1989 = vpop.f32.mrb[0].mxu0
    %v1990 = vadd.f32 %v1876, %v1989
    %v1991 = vpop.f32.mrb[0].mxu0
    %1992 = vmatprep.mubr.f32.mxu0 0.0
    %v1993 = vand.u32 %v1249, 4294901760
    %1994 = vmatmul.mubr.f32.gmra.mrb[0].mxu0 %v1993
    %v1995 = vpop.f32.mrb[0].mxu0
    %v1996 = vadd.f32 %v1882, %v1995
    %v1997 = vpop.f32.mrb[0].mxu0
    %1998 = vmatprep.mubr.f32.mxu0 0.0
    %v1999 = vand.u32 %v1252, 4294901760
    %2000 = vmatmul.mubr.f32.gmra.mrb[0].mxu0 %v1999
    %v2001 = vpop.f32.mrb[0].mxu0
    %v2002 = vadd.f32 %v1888, %v2001
    %v2003 = vpop.f32.mrb[0].mxu0
    %2004 = vdwg.mxu0
    %v2006 = vsel %vm1254, %v1228, 0
    %2008 = vmatprep.subr.mxu0 0.0
    %v2009 = vand.u32 %v2006, 4294901760
    %2010 = vmatpush1.msra.mxu0 %v2009
    %2011 = vmatprep.subr.mxu0 0.0
    %2012 = vmatpush1.msra.mxu0 0.0
    %2013 = vmatprep.subr.mxu0 0.0
    %2014 = vmatpush1.msra.mxu0 0.0
    %2015 = vmatprep.subr.mxu0 0.0
    %2016 = vmatpush1.msra.mxu0 0.0
    %2017 = vmatprep.subr.mxu0 0.0
    %2018 = vmatpush1.msra.mxu0 0.0
    %2019 = vmatprep.subr.mxu0 0.0
    %2020 = vmatpush1.msra.mxu0 0.0
    %2021 = vmatprep.subr.mxu0 0.0
    %2022 = vmatpush1.msra.mxu0 0.0
    %2023 = vmatprep.subr.mxu0 0.0
    %2024 = vmatpush1.msra.mxu0 0.0
    %2025 = vmatprep.subr.mxu0 0.0
    %2026 = vmatpush1.msra.mxu0 0.0
    %2027 = vmatprep.subr.mxu0 0.0
    %2028 = vmatpush1.msra.mxu0 0.0
    %2029 = vmatprep.subr.mxu0 0.0
    %2030 = vmatpush1.msra.mxu0 0.0
    %2031 = vmatprep.subr.mxu0 0.0
    %2032 = vmatpush1.msra.mxu0 0.0
    %2033 = vmatprep.subr.mxu0 0.0
    %2034 = vmatpush1.msra.mxu0 0.0
    %2035 = vmatprep.subr.mxu0 0.0
    %2036 = vmatpush1.msra.mxu0 0.0
    %2037 = vmatprep.subr.mxu0 0.0
    %2038 = vmatpush1.msra.mxu0 0.0
    %2039 = vmatprep.subr.mxu0 0.0
    %2040 = vmatpush1.msra.mxu0 0.0
    %2041 = vmatprep.subr.mxu0 0.0
    %2042 = vmatpush1.msra.mxu0 0.0
    %2043 = vmatprep.subr.mxu0 0.0
    %2044 = vmatpush1.msra.mxu0 0.0
    %2045 = vmatprep.subr.mxu0 0.0
    %2046 = vmatpush1.msra.mxu0 0.0
    %2047 = vmatprep.subr.mxu0 0.0
    %2048 = vmatpush1.msra.mxu0 0.0
    %2049 = vmatprep.subr.mxu0 0.0
    %2050 = vmatpush1.msra.mxu0 0.0
    %2051 = vmatprep.subr.mxu0 0.0
    %2052 = vmatpush1.msra.mxu0 0.0
    %2053 = vmatprep.subr.mxu0 0.0
    %2054 = vmatpush1.msra.mxu0 0.0
    %2055 = vmatprep.subr.mxu0 0.0
    %2056 = vmatpush1.msra.mxu0 0.0
    %2057 = vmatprep.subr.mxu0 0.0
    %2058 = vmatpush1.msra.mxu0 0.0
    %2059 = vmatprep.subr.mxu0 0.0
    %2060 = vmatpush1.msra.mxu0 0.0
    %2061 = vmatprep.subr.mxu0 0.0
    %2062 = vmatpush1.msra.mxu0 0.0
    %2063 = vmatprep.subr.mxu0 0.0
    %2064 = vmatpush1.msra.mxu0 0.0
    %2065 = vmatprep.subr.mxu0 0.0
    %2066 = vmatpush1.msra.mxu0 0.0
    %2067 = vmatprep.subr.mxu0 0.0
    %2068 = vmatpush1.msra.mxu0 0.0
    %2069 = vmatprep.subr.mxu0 0.0
    %2070 = vmatpush1.msra.mxu0 0.0
    %2071 = vmatprep.subr.mxu0 0.0
    %2072 = vmatpush1.msra.mxu0 0.0
    %2073 = vmatprep.mubr.f32.mxu0 0.0
    %v2074 = vand.u32 %v1231, 4294901760
    %v2075 = vsub.f32 %v1231, %v2074
    %v2076 = vand.u32 %v2075, 4294901760
    %v2077 = vsub.f32 %v2075, %v2076
    %v2078 = vand.u32 %v2077, 4294901760
    %2079 = vmatmul.mubr.f32.gmra.mrb[0].mxu0 %v2078
    %v2080 = vpop.f32.mrb[0].mxu0
    %v2081 = vadd.f32 %v141, %v2080
    %v2082 = vpop.f32.mrb[0].mxu0
    %2083 = vmatprep.mubr.f32.mxu0 0.0
    %v2084 = vand.u32 %v1234, 4294901760
    %v2085 = vsub.f32 %v1234, %v2084
    %v2086 = vand.u32 %v2085, 4294901760
    %v2087 = vsub.f32 %v2085, %v2086
    %v2088 = vand.u32 %v2087, 4294901760
    %2089 = vmatmul.mubr.f32.gmra.mrb[0].mxu0 %v2088
    %v2090 = vpop.f32.mrb[0].mxu0
    %v2091 = vadd.f32 %v142, %v2090
    %v2092 = vpop.f32.mrb[0].mxu0
    %2093 = vmatprep.mubr.f32.mxu0 0.0
    %v2094 = vand.u32 %v1237, 4294901760
    %v2095 = vsub.f32 %v1237, %v2094
    %v2096 = vand.u32 %v2095, 4294901760
    %v2097 = vsub.f32 %v2095, %v2096
    %v2098 = vand.u32 %v2097, 4294901760
    %2099 = vmatmul.mubr.f32.gmra.mrb[0].mxu0 %v2098
    %v2100 = vpop.f32.mrb[0].mxu0
    %v2101 = vadd.f32 %v143, %v2100
    %v2102 = vpop.f32.mrb[0].mxu0
    %2103 = vmatprep.mubr.f32.mxu0 0.0
    %v2104 = vand.u32 %v1240, 4294901760
    %v2105 = vsub.f32 %v1240, %v2104
    %v2106 = vand.u32 %v2105, 4294901760
    %v2107 = vsub.f32 %v2105, %v2106
    %v2108 = vand.u32 %v2107, 4294901760
    %2109 = vmatmul.mubr.f32.gmra.mrb[0].mxu0 %v2108
    %v2110 = vpop.f32.mrb[0].mxu0
    %v2111 = vadd.f32 %v144, %v2110
    %v2112 = vpop.f32.mrb[0].mxu0
    %2113 = vmatprep.mubr.f32.mxu0 0.0
    %v2114 = vand.u32 %v1243, 4294901760
    %v2115 = vsub.f32 %v1243, %v2114
    %v2116 = vand.u32 %v2115, 4294901760
    %v2117 = vsub.f32 %v2115, %v2116
    %v2118 = vand.u32 %v2117, 4294901760
    %2119 = vmatmul.mubr.f32.gmra.mrb[0].mxu0 %v2118
    %v2120 = vpop.f32.mrb[0].mxu0
    %v2121 = vadd.f32 %v145, %v2120
    %v2122 = vpop.f32.mrb[0].mxu0
    %2123 = vmatprep.mubr.f32.mxu0 0.0
    %v2124 = vand.u32 %v1246, 4294901760
    %v2125 = vsub.f32 %v1246, %v2124
    %v2126 = vand.u32 %v2125, 4294901760
    %v2127 = vsub.f32 %v2125, %v2126
    %v2128 = vand.u32 %v2127, 4294901760
    %2129 = vmatmul.mubr.f32.gmra.mrb[0].mxu0 %v2128
    %v2130 = vpop.f32.mrb[0].mxu0
    %v2131 = vadd.f32 %v146, %v2130
    %v2132 = vpop.f32.mrb[0].mxu0
    %2133 = vmatprep.mubr.f32.mxu0 0.0
    %v2134 = vand.u32 %v1249, 4294901760
    %v2135 = vsub.f32 %v1249, %v2134
    %v2136 = vand.u32 %v2135, 4294901760
    %v2137 = vsub.f32 %v2135, %v2136
    %v2138 = vand.u32 %v2137, 4294901760
    %2139 = vmatmul.mubr.f32.gmra.mrb[0].mxu0 %v2138
    %v2140 = vpop.f32.mrb[0].mxu0
    %v2141 = vadd.f32 %v147, %v2140
    %v2142 = vpop.f32.mrb[0].mxu0
    %2143 = vmatprep.mubr.f32.mxu0 0.0
    %v2144 = vand.u32 %v1252, 4294901760
    %v2145 = vsub.f32 %v1252, %v2144
    %v2146 = vand.u32 %v2145, 4294901760
    %v2147 = vsub.f32 %v2145, %v2146
    %v2148 = vand.u32 %v2147, 4294901760
    %2149 = vmatmul.mubr.f32.gmra.mrb[0].mxu0 %v2148
    %v2150 = vpop.f32.mrb[0].mxu0
    %v2151 = vadd.f32 %v148, %v2150
    %v2152 = vpop.f32.mrb[0].mxu0
    %2153 = vdwg.mxu0
    %2154 = vmatprep.subr.mxu0 0.0
    %v2155 = vand.u32 %v2006, 4294901760
    %v2156 = vsub.f32 %v2006, %v2155
    %v2157 = vand.u32 %v2156, 4294901760
    %v2158 = vsub.f32 %v2156, %v2157
    %v2159 = vand.u32 %v2158, 4294901760
    %2160 = vmatpush1.msra.mxu0 %v2159
    %2161 = vmatprep.subr.mxu0 0.0
    %2162 = vmatpush1.msra.mxu0 0.0
    %2163 = vmatprep.subr.mxu0 0.0
    %2164 = vmatpush1.msra.mxu0 0.0
    %2165 = vmatprep.subr.mxu0 0.0
    %2166 = vmatpush1.msra.mxu0 0.0
    %2167 = vmatprep.subr.mxu0 0.0
    %2168 = vmatpush1.msra.mxu0 0.0
    %2169 = vmatprep.subr.mxu0 0.0
    %2170 = vmatpush1.msra.mxu0 0.0
    %2171 = vmatprep.subr.mxu0 0.0
    %2172 = vmatpush1.msra.mxu0 0.0
    %2173 = vmatprep.subr.mxu0 0.0
    %2174 = vmatpush1.msra.mxu0 0.0
    %2175 = vmatprep.subr.mxu0 0.0
    %2176 = vmatpush1.msra.mxu0 0.0
    %2177 = vmatprep.subr.mxu0 0.0
    %2178 = vmatpush1.msra.mxu0 0.0
    %2179 = vmatprep.subr.mxu0 0.0
    %2180 = vmatpush1.msra.mxu0 0.0
    %2181 = vmatprep.subr.mxu0 0.0
    %2182 = vmatpush1.msra.mxu0 0.0
    %2183 = vmatprep.subr.mxu0 0.0
    %2184 = vmatpush1.msra.mxu0 0.0
    %2185 = vmatprep.subr.mxu0 0.0
    %2186 = vmatpush1.msra.mxu0 0.0
    %2187 = vmatprep.subr.mxu0 0.0
    %2188 = vmatpush1.msra.mxu0 0.0
    %2189 = vmatprep.subr.mxu0 0.0
    %2190 = vmatpush1.msra.mxu0 0.0
    %2191 = vmatprep.subr.mxu0 0.0
    %2192 = vmatpush1.msra.mxu0 0.0
    %2193 = vmatprep.subr.mxu0 0.0
    %2194 = vmatpush1.msra.mxu0 0.0
    %2195 = vmatprep.subr.mxu0 0.0
    %2196 = vmatpush1.msra.mxu0 0.0
    %2197 = vmatprep.subr.mxu0 0.0
    %2198 = vmatpush1.msra.mxu0 0.0
    %2199 = vmatprep.subr.mxu0 0.0
    %2200 = vmatpush1.msra.mxu0 0.0
    %2201 = vmatprep.subr.mxu0 0.0
    %2202 = vmatpush1.msra.mxu0 0.0
    %2203 = vmatprep.subr.mxu0 0.0
    %2204 = vmatpush1.msra.mxu0 0.0
    %2205 = vmatprep.subr.mxu0 0.0
    %2206 = vmatpush1.msra.mxu0 0.0
    %2207 = vmatprep.subr.mxu0 0.0
    %2208 = vmatpush1.msra.mxu0 0.0
    %2209 = vmatprep.subr.mxu0 0.0
    %2210 = vmatpush1.msra.mxu0 0.0
    %2211 = vmatprep.subr.mxu0 0.0
    %2212 = vmatpush1.msra.mxu0 0.0
    %2213 = vmatprep.subr.mxu0 0.0
    %2214 = vmatpush1.msra.mxu0 0.0
    %2215 = vmatprep.subr.mxu0 0.0
    %2216 = vmatpush1.msra.mxu0 0.0
    %2217 = vmatprep.subr.mxu0 0.0
    %2218 = vmatpush1.msra.mxu0 0.0
    %2219 = vmatprep.subr.mxu0 0.0
    %2220 = vmatpush1.msra.mxu0 0.0
    %2221 = vmatprep.subr.mxu0 0.0
    %2222 = vmatpush1.msra.mxu0 0.0
    %2223 = vmatprep.mubr.f32.mxu0 0.0
    %v2224 = vand.u32 %v1231, 4294901760
    %2225 = vmatmul.mubr.f32.gmra.mrb[0].mxu0 %v2224
    %v2226 = vpop.f32.mrb[0].mxu0
    %v2227 = vadd.f32 %v2081, %v2226
    %v2228 = vpop.f32.mrb[0].mxu0
    %2229 = vmatprep.mubr.f32.mxu0 0.0
    %v2230 = vand.u32 %v1234, 4294901760
    %2231 = vmatmul.mubr.f32.gmra.mrb[0].mxu0 %v2230
    %v2232 = vpop.f32.mrb[0].mxu0
    %v2233 = vadd.f32 %v2091, %v2232
    %v2234 = vpop.f32.mrb[0].mxu0
    %2235 = vmatprep.mubr.f32.mxu0 0.0
    %v2236 = vand.u32 %v1237, 4294901760
    %2237 = vmatmul.mubr.f32.gmra.mrb[0].mxu0 %v2236
    %v2238 = vpop.f32.mrb[0].mxu0
    %v2239 = vadd.f32 %v2101, %v2238
    %v2240 = vpop.f32.mrb[0].mxu0
    %2241 = vmatprep.mubr.f32.mxu0 0.0
    %v2242 = vand.u32 %v1240, 4294901760
    %2243 = vmatmul.mubr.f32.gmra.mrb[0].mxu0 %v2242
    %v2244 = vpop.f32.mrb[0].mxu0
    %v2245 = vadd.f32 %v2111, %v2244
    %v2246 = vpop.f32.mrb[0].mxu0
    %2247 = vmatprep.mubr.f32.mxu0 0.0
    %v2248 = vand.u32 %v1243, 4294901760
    %2249 = vmatmul.mubr.f32.gmra.mrb[0].mxu0 %v2248
    %v2250 = vpop.f32.mrb[0].mxu0
    %v2251 = vadd.f32 %v2121, %v2250
    %v2252 = vpop.f32.mrb[0].mxu0
    %2253 = vmatprep.mubr.f32.mxu0 0.0
    %v2254 = vand.u32 %v1246, 4294901760
    %2255 = vmatmul.mubr.f32.gmra.mrb[0].mxu0 %v2254
    %v2256 = vpop.f32.mrb[0].mxu0
    %v2257 = vadd.f32 %v2131, %v2256
    %v2258 = vpop.f32.mrb[0].mxu0
    %2259 = vmatprep.mubr.f32.mxu0 0.0
    %v2260 = vand.u32 %v1249, 4294901760
    %2261 = vmatmul.mubr.f32.gmra.mrb[0].mxu0 %v2260
    %v2262 = vpop.f32.mrb[0].mxu0
    %v2263 = vadd.f32 %v2141, %v2262
    %v2264 = vpop.f32.mrb[0].mxu0
    %2265 = vmatprep.mubr.f32.mxu0 0.0
    %v2266 = vand.u32 %v1252, 4294901760
    %2267 = vmatmul.mubr.f32.gmra.mrb[0].mxu0 %v2266
    %v2268 = vpop.f32.mrb[0].mxu0
    %v2269 = vadd.f32 %v2151, %v2268
    %v2270 = vpop.f32.mrb[0].mxu0
    %2271 = vdwg.mxu0
    %2272 = vmatprep.subr.mxu0 0.0
    %v2273 = vand.u32 %v2006, 4294901760
    %v2274 = vsub.f32 %v2006, %v2273
    %2275 = vmatpush1.msra.mxu0 %v2274
    %2276 = vmatprep.subr.mxu0 0.0
    %2277 = vmatpush1.msra.mxu0 0.0
    %2278 = vmatprep.subr.mxu0 0.0
    %2279 = vmatpush1.msra.mxu0 0.0
    %2280 = vmatprep.subr.mxu0 0.0
    %2281 = vmatpush1.msra.mxu0 0.0
    %2282 = vmatprep.subr.mxu0 0.0
    %2283 = vmatpush1.msra.mxu0 0.0
    %2284 = vmatprep.subr.mxu0 0.0
    %2285 = vmatpush1.msra.mxu0 0.0
    %2286 = vmatprep.subr.mxu0 0.0
    %2287 = vmatpush1.msra.mxu0 0.0
    %2288 = vmatprep.subr.mxu0 0.0
    %2289 = vmatpush1.msra.mxu0 0.0
    %2290 = vmatprep.subr.mxu0 0.0
    %2291 = vmatpush1.msra.mxu0 0.0
    %2292 = vmatprep.subr.mxu0 0.0
    %2293 = vmatpush1.msra.mxu0 0.0
    %2294 = vmatprep.subr.mxu0 0.0
    %2295 = vmatpush1.msra.mxu0 0.0
    %2296 = vmatprep.subr.mxu0 0.0
    %2297 = vmatpush1.msra.mxu0 0.0
    %2298 = vmatprep.subr.mxu0 0.0
    %2299 = vmatpush1.msra.mxu0 0.0
    %2300 = vmatprep.subr.mxu0 0.0
    %2301 = vmatpush1.msra.mxu0 0.0
    %2302 = vmatprep.subr.mxu0 0.0
    %2303 = vmatpush1.msra.mxu0 0.0
    %2304 = vmatprep.subr.mxu0 0.0
    %2305 = vmatpush1.msra.mxu0 0.0
    %2306 = vmatprep.subr.mxu0 0.0
    %2307 = vmatpush1.msra.mxu0 0.0
    %2308 = vmatprep.subr.mxu0 0.0
    %2309 = vmatpush1.msra.mxu0 0.0
    %2310 = vmatprep.subr.mxu0 0.0
    %2311 = vmatpush1.msra.mxu0 0.0
    %2312 = vmatprep.subr.mxu0 0.0
    %2313 = vmatpush1.msra.mxu0 0.0
    %2314 = vmatprep.subr.mxu0 0.0
    %2315 = vmatpush1.msra.mxu0 0.0
    %2316 = vmatprep.subr.mxu0 0.0
    %2317 = vmatpush1.msra.mxu0 0.0
    %2318 = vmatprep.subr.mxu0 0.0
    %2319 = vmatpush1.msra.mxu0 0.0
    %2320 = vmatprep.subr.mxu0 0.0
    %2321 = vmatpush1.msra.mxu0 0.0
    %2322 = vmatprep.subr.mxu0 0.0
    %2323 = vmatpush1.msra.mxu0 0.0
    %2324 = vmatprep.subr.mxu0 0.0
    %2325 = vmatpush1.msra.mxu0 0.0
    %2326 = vmatprep.subr.mxu0 0.0
    %2327 = vmatpush1.msra.mxu0 0.0
    %2328 = vmatprep.subr.mxu0 0.0
    %2329 = vmatpush1.msra.mxu0 0.0
    %2330 = vmatprep.subr.mxu0 0.0
    %2331 = vmatpush1.msra.mxu0 0.0
    %2332 = vmatprep.subr.mxu0 0.0
    %2333 = vmatpush1.msra.mxu0 0.0
    %2334 = vmatprep.subr.mxu0 0.0
    %2335 = vmatpush1.msra.mxu0 0.0
    %2336 = vmatprep.subr.mxu0 0.0
    %2337 = vmatpush1.msra.mxu0 0.0
    %2338 = vmatprep.mubr.f32.mxu0 0.0
    %v2339 = vand.u32 %v1231, 4294901760
    %v2340 = vsub.f32 %v1231, %v2339
    %2341 = vmatmul.mubr.f32.gmra.mrb[0].mxu0 %v2340
    %v2342 = vpop.f32.mrb[0].mxu0
    %v2343 = vadd.f32 %v2227, %v2342
    %v2344 = vpop.f32.mrb[0].mxu0
    %2345 = vmatprep.mubr.f32.mxu0 0.0
    %v2346 = vand.u32 %v1234, 4294901760
    %v2347 = vsub.f32 %v1234, %v2346
    %2348 = vmatmul.mubr.f32.gmra.mrb[0].mxu0 %v2347
    %v2349 = vpop.f32.mrb[0].mxu0
    %v2350 = vadd.f32 %v2233, %v2349
    %v2351 = vpop.f32.mrb[0].mxu0
    %2352 = vmatprep.mubr.f32.mxu0 0.0
    %v2353 = vand.u32 %v1237, 4294901760
    %v2354 = vsub.f32 %v1237, %v2353
    %2355 = vmatmul.mubr.f32.gmra.mrb[0].mxu0 %v2354
    %v2356 = vpop.f32.mrb[0].mxu0
    %v2357 = vadd.f32 %v2239, %v2356
    %v2358 = vpop.f32.mrb[0].mxu0
    %2359 = vmatprep.mubr.f32.mxu0 0.0
    %v2360 = vand.u32 %v1240, 4294901760
    %v2361 = vsub.f32 %v1240, %v2360
    %2362 = vmatmul.mubr.f32.gmra.mrb[0].mxu0 %v2361
    %v2363 = vpop.f32.mrb[0].mxu0
    %v2364 = vadd.f32 %v2245, %v2363
    %v2365 = vpop.f32.mrb[0].mxu0
    %2366 = vmatprep.mubr.f32.mxu0 0.0
    %v2367 = vand.u32 %v1243, 4294901760
    %v2368 = vsub.f32 %v1243, %v2367
    %2369 = vmatmul.mubr.f32.gmra.mrb[0].mxu0 %v2368
    %v2370 = vpop.f32.mrb[0].mxu0
    %v2371 = vadd.f32 %v2251, %v2370
    %v2372 = vpop.f32.mrb[0].mxu0
    %2373 = vmatprep.mubr.f32.mxu0 0.0
    %v2374 = vand.u32 %v1246, 4294901760
    %v2375 = vsub.f32 %v1246, %v2374
    %2376 = vmatmul.mubr.f32.gmra.mrb[0].mxu0 %v2375
    %v2377 = vpop.f32.mrb[0].mxu0
    %v2378 = vadd.f32 %v2257, %v2377
    %v2379 = vpop.f32.mrb[0].mxu0
    %2380 = vmatprep.mubr.f32.mxu0 0.0
    %v2381 = vand.u32 %v1249, 4294901760
    %v2382 = vsub.f32 %v1249, %v2381
    %2383 = vmatmul.mubr.f32.gmra.mrb[0].mxu0 %v2382
    %v2384 = vpop.f32.mrb[0].mxu0
    %v2385 = vadd.f32 %v2263, %v2384
    %v2386 = vpop.f32.mrb[0].mxu0
    %2387 = vmatprep.mubr.f32.mxu0 0.0
    %v2388 = vand.u32 %v1252, 4294901760
    %v2389 = vsub.f32 %v1252, %v2388
    %2390 = vmatmul.mubr.f32.gmra.mrb[0].mxu0 %v2389
    %v2391 = vpop.f32.mrb[0].mxu0
    %v2392 = vadd.f32 %v2269, %v2391
    %v2393 = vpop.f32.mrb[0].mxu0
    %2394 = vdwg.mxu0
    %2395 = vmatprep.subr.mxu0 0.0
    %v2396 = vand.u32 %v2006, 4294901760
    %2397 = vmatpush1.msra.mxu0 %v2396
    %2398 = vmatprep.subr.mxu0 0.0
    %2399 = vmatpush1.msra.mxu0 0.0
    %2400 = vmatprep.subr.mxu0 0.0
    %2401 = vmatpush1.msra.mxu0 0.0
    %2402 = vmatprep.subr.mxu0 0.0
    %2403 = vmatpush1.msra.mxu0 0.0
    %2404 = vmatprep.subr.mxu0 0.0
    %2405 = vmatpush1.msra.mxu0 0.0
    %2406 = vmatprep.subr.mxu0 0.0
    %2407 = vmatpush1.msra.mxu0 0.0
    %2408 = vmatprep.subr.mxu0 0.0
    %2409 = vmatpush1.msra.mxu0 0.0
    %2410 = vmatprep.subr.mxu0 0.0
    %2411 = vmatpush1.msra.mxu0 0.0
    %2412 = vmatprep.subr.mxu0 0.0
    %2413 = vmatpush1.msra.mxu0 0.0
    %2414 = vmatprep.subr.mxu0 0.0
    %2415 = vmatpush1.msra.mxu0 0.0
    %2416 = vmatprep.subr.mxu0 0.0
    %2417 = vmatpush1.msra.mxu0 0.0
    %2418 = vmatprep.subr.mxu0 0.0
    %2419 = vmatpush1.msra.mxu0 0.0
    %2420 = vmatprep.subr.mxu0 0.0
    %2421 = vmatpush1.msra.mxu0 0.0
    %2422 = vmatprep.subr.mxu0 0.0
    %2423 = vmatpush1.msra.mxu0 0.0
    %2424 = vmatprep.subr.mxu0 0.0
    %2425 = vmatpush1.msra.mxu0 0.0
    %2426 = vmatprep.subr.mxu0 0.0
    %2427 = vmatpush1.msra.mxu0 0.0
    %2428 = vmatprep.subr.mxu0 0.0
    %2429 = vmatpush1.msra.mxu0 0.0
    %2430 = vmatprep.subr.mxu0 0.0
    %2431 = vmatpush1.msra.mxu0 0.0
    %2432 = vmatprep.subr.mxu0 0.0
    %2433 = vmatpush1.msra.mxu0 0.0
    %2434 = vmatprep.subr.mxu0 0.0
    %2435 = vmatpush1.msra.mxu0 0.0
    %2436 = vmatprep.subr.mxu0 0.0
    %2437 = vmatpush1.msra.mxu0 0.0
    %2438 = vmatprep.subr.mxu0 0.0
    %2439 = vmatpush1.msra.mxu0 0.0
    %2440 = vmatprep.subr.mxu0 0.0
    %2441 = vmatpush1.msra.mxu0 0.0
    %2442 = vmatprep.subr.mxu0 0.0
    %2443 = vmatpush1.msra.mxu0 0.0
    %2444 = vmatprep.subr.mxu0 0.0
    %2445 = vmatpush1.msra.mxu0 0.0
    %2446 = vmatprep.subr.mxu0 0.0
    %2447 = vmatpush1.msra.mxu0 0.0
    %2448 = vmatprep.subr.mxu0 0.0
    %2449 = vmatpush1.msra.mxu0 0.0
    %2450 = vmatprep.subr.mxu0 0.0
    %2451 = vmatpush1.msra.mxu0 0.0
    %2452 = vmatprep.subr.mxu0 0.0
    %2453 = vmatpush1.msra.mxu0 0.0
    %2454 = vmatprep.subr.mxu0 0.0
    %2455 = vmatpush1.msra.mxu0 0.0
    %2456 = vmatprep.subr.mxu0 0.0
    %2457 = vmatpush1.msra.mxu0 0.0
    %2458 = vmatprep.subr.mxu0 0.0
    %2459 = vmatpush1.msra.mxu0 0.0
    %2460 = vmatprep.mubr.f32.mxu0 0.0
    %v2461 = vand.u32 %v1231, 4294901760
    %v2462 = vsub.f32 %v1231, %v2461
    %v2463 = vand.u32 %v2462, 4294901760
    %2464 = vmatmul.mubr.f32.gmra.mrb[0].mxu0 %v2463
    %v2465 = vpop.f32.mrb[0].mxu0
    %v2466 = vadd.f32 %v2343, %v2465
    %v2467 = vpop.f32.mrb[0].mxu0
    %2468 = vmatprep.mubr.f32.mxu0 0.0
    %v2469 = vand.u32 %v1234, 4294901760
    %v2470 = vsub.f32 %v1234, %v2469
    %v2471 = vand.u32 %v2470, 4294901760
    %2472 = vmatmul.mubr.f32.gmra.mrb[0].mxu0 %v2471
    %v2473 = vpop.f32.mrb[0].mxu0
    %v2474 = vadd.f32 %v2350, %v2473
    %v2475 = vpop.f32.mrb[0].mxu0
    %2476 = vmatprep.mubr.f32.mxu0 0.0
    %v2477 = vand.u32 %v1237, 4294901760
    %v2478 = vsub.f32 %v1237, %v2477
    %v2479 = vand.u32 %v2478, 4294901760
    %2480 = vmatmul.mubr.f32.gmra.mrb[0].mxu0 %v2479
    %v2481 = vpop.f32.mrb[0].mxu0
    %v2482 = vadd.f32 %v2357, %v2481
    %v2483 = vpop.f32.mrb[0].mxu0
    %2484 = vmatprep.mubr.f32.mxu0 0.0
    %v2485 = vand.u32 %v1240, 4294901760
    %v2486 = vsub.f32 %v1240, %v2485
    %v2487 = vand.u32 %v2486, 4294901760
    %2488 = vmatmul.mubr.f32.gmra.mrb[0].mxu0 %v2487
    %v2489 = vpop.f32.mrb[0].mxu0
    %v2490 = vadd.f32 %v2364, %v2489
    %v2491 = vpop.f32.mrb[0].mxu0
    %2492 = vmatprep.mubr.f32.mxu0 0.0
    %v2493 = vand.u32 %v1243, 4294901760
    %v2494 = vsub.f32 %v1243, %v2493
    %v2495 = vand.u32 %v2494, 4294901760
    %2496 = vmatmul.mubr.f32.gmra.mrb[0].mxu0 %v2495
    %v2497 = vpop.f32.mrb[0].mxu0
    %v2498 = vadd.f32 %v2371, %v2497
    %v2499 = vpop.f32.mrb[0].mxu0
    %2500 = vmatprep.mubr.f32.mxu0 0.0
    %v2501 = vand.u32 %v1246, 4294901760
    %v2502 = vsub.f32 %v1246, %v2501
    %v2503 = vand.u32 %v2502, 4294901760
    %2504 = vmatmul.mubr.f32.gmra.mrb[0].mxu0 %v2503
    %v2505 = vpop.f32.mrb[0].mxu0
    %v2506 = vadd.f32 %v2378, %v2505
    %v2507 = vpop.f32.mrb[0].mxu0
    %2508 = vmatprep.mubr.f32.mxu0 0.0
    %v2509 = vand.u32 %v1249, 4294901760
    %v2510 = vsub.f32 %v1249, %v2509
    %v2511 = vand.u32 %v2510, 4294901760
    %2512 = vmatmul.mubr.f32.gmra.mrb[0].mxu0 %v2511
    %v2513 = vpop.f32.mrb[0].mxu0
    %v2514 = vadd.f32 %v2385, %v2513
    %v2515 = vpop.f32.mrb[0].mxu0
    %2516 = vmatprep.mubr.f32.mxu0 0.0
    %v2517 = vand.u32 %v1252, 4294901760
    %v2518 = vsub.f32 %v1252, %v2517
    %v2519 = vand.u32 %v2518, 4294901760
    %2520 = vmatmul.mubr.f32.gmra.mrb[0].mxu0 %v2519
    %v2521 = vpop.f32.mrb[0].mxu0
    %v2522 = vadd.f32 %v2392, %v2521
    %v2523 = vpop.f32.mrb[0].mxu0
    %2524 = vdwg.mxu0
    %2525 = vmatprep.subr.mxu0 0.0
    %v2526 = vand.u32 %v2006, 4294901760
    %v2527 = vsub.f32 %v2006, %v2526
    %v2528 = vand.u32 %v2527, 4294901760
    %2529 = vmatpush1.msra.mxu0 %v2528
    %2530 = vmatprep.subr.mxu0 0.0
    %2531 = vmatpush1.msra.mxu0 0.0
    %2532 = vmatprep.subr.mxu0 0.0
    %2533 = vmatpush1.msra.mxu0 0.0
    %2534 = vmatprep.subr.mxu0 0.0
    %2535 = vmatpush1.msra.mxu0 0.0
    %2536 = vmatprep.subr.mxu0 0.0
    %2537 = vmatpush1.msra.mxu0 0.0
    %2538 = vmatprep.subr.mxu0 0.0
    %2539 = vmatpush1.msra.mxu0 0.0
    %2540 = vmatprep.subr.mxu0 0.0
    %2541 = vmatpush1.msra.mxu0 0.0
    %2542 = vmatprep.subr.mxu0 0.0
    %2543 = vmatpush1.msra.mxu0 0.0
    %2544 = vmatprep.subr.mxu0 0.0
    %2545 = vmatpush1.msra.mxu0 0.0
    %2546 = vmatprep.subr.mxu0 0.0
    %2547 = vmatpush1.msra.mxu0 0.0
    %2548 = vmatprep.subr.mxu0 0.0
    %2549 = vmatpush1.msra.mxu0 0.0
    %2550 = vmatprep.subr.mxu0 0.0
    %2551 = vmatpush1.msra.mxu0 0.0
    %2552 = vmatprep.subr.mxu0 0.0
    %2553 = vmatpush1.msra.mxu0 0.0
    %2554 = vmatprep.subr.mxu0 0.0
    %2555 = vmatpush1.msra.mxu0 0.0
    %2556 = vmatprep.subr.mxu0 0.0
    %2557 = vmatpush1.msra.mxu0 0.0
    %2558 = vmatprep.subr.mxu0 0.0
    %2559 = vmatpush1.msra.mxu0 0.0
    %2560 = vmatprep.subr.mxu0 0.0
    %2561 = vmatpush1.msra.mxu0 0.0
    %2562 = vmatprep.subr.mxu0 0.0
    %2563 = vmatpush1.msra.mxu0 0.0
    %2564 = vmatprep.subr.mxu0 0.0
    %2565 = vmatpush1.msra.mxu0 0.0
    %2566 = vmatprep.subr.mxu0 0.0
    %2567 = vmatpush1.msra.mxu0 0.0
    %2568 = vmatprep.subr.mxu0 0.0
    %2569 = vmatpush1.msra.mxu0 0.0
    %2570 = vmatprep.subr.mxu0 0.0
    %2571 = vmatpush1.msra.mxu0 0.0
    %2572 = vmatprep.subr.mxu0 0.0
    %2573 = vmatpush1.msra.mxu0 0.0
    %2574 = vmatprep.subr.mxu0 0.0
    %2575 = vmatpush1.msra.mxu0 0.0
    %2576 = vmatprep.subr.mxu0 0.0
    %2577 = vmatpush1.msra.mxu0 0.0
    %2578 = vmatprep.subr.mxu0 0.0
    %2579 = vmatpush1.msra.mxu0 0.0
    %2580 = vmatprep.subr.mxu0 0.0
    %2581 = vmatpush1.msra.mxu0 0.0
    %2582 = vmatprep.subr.mxu0 0.0
    %2583 = vmatpush1.msra.mxu0 0.0
    %2584 = vmatprep.subr.mxu0 0.0
    %2585 = vmatpush1.msra.mxu0 0.0
    %2586 = vmatprep.subr.mxu0 0.0
    %2587 = vmatpush1.msra.mxu0 0.0
    %2588 = vmatprep.subr.mxu0 0.0
    %2589 = vmatpush1.msra.mxu0 0.0
    %2590 = vmatprep.subr.mxu0 0.0
    %2591 = vmatpush1.msra.mxu0 0.0
    %2592 = vmatprep.mubr.f32.mxu0 0.0
    %v2593 = vand.u32 %v1231, 4294901760
    %2594 = vmatmul.mubr.f32.gmra.mrb[0].mxu0 %v2593
    %v2595 = vpop.f32.mrb[0].mxu0
    %v2596 = vadd.f32 %v2466, %v2595
    %v2597 = vpop.f32.mrb[0].mxu0
    %2598 = vmatprep.mubr.f32.mxu0 0.0
    %v2599 = vand.u32 %v1234, 4294901760
    %2600 = vmatmul.mubr.f32.gmra.mrb[0].mxu0 %v2599
    %v2601 = vpop.f32.mrb[0].mxu0
    %v2602 = vadd.f32 %v2474, %v2601
    %v2603 = vpop.f32.mrb[0].mxu0
    %2604 = vmatprep.mubr.f32.mxu0 0.0
    %v2605 = vand.u32 %v1237, 4294901760
    %2606 = vmatmul.mubr.f32.gmra.mrb[0].mxu0 %v2605
    %v2607 = vpop.f32.mrb[0].mxu0
    %v2608 = vadd.f32 %v2482, %v2607
    %v2609 = vpop.f32.mrb[0].mxu0
    %2610 = vmatprep.mubr.f32.mxu0 0.0
    %v2611 = vand.u32 %v1240, 4294901760
    %2612 = vmatmul.mubr.f32.gmra.mrb[0].mxu0 %v2611
    %v2613 = vpop.f32.mrb[0].mxu0
    %v2614 = vadd.f32 %v2490, %v2613
    %v2615 = vpop.f32.mrb[0].mxu0
    %2616 = vmatprep.mubr.f32.mxu0 0.0
    %v2617 = vand.u32 %v1243, 4294901760
    %2618 = vmatmul.mubr.f32.gmra.mrb[0].mxu0 %v2617
    %v2619 = vpop.f32.mrb[0].mxu0
    %v2620 = vadd.f32 %v2498, %v2619
    %v2621 = vpop.f32.mrb[0].mxu0
    %2622 = vmatprep.mubr.f32.mxu0 0.0
    %v2623 = vand.u32 %v1246, 4294901760
    %2624 = vmatmul.mubr.f32.gmra.mrb[0].mxu0 %v2623
    %v2625 = vpop.f32.mrb[0].mxu0
    %v2626 = vadd.f32 %v2506, %v2625
    %v2627 = vpop.f32.mrb[0].mxu0
    %2628 = vmatprep.mubr.f32.mxu0 0.0
    %v2629 = vand.u32 %v1249, 4294901760
    %2630 = vmatmul.mubr.f32.gmra.mrb[0].mxu0 %v2629
    %v2631 = vpop.f32.mrb[0].mxu0
    %v2632 = vadd.f32 %v2514, %v2631
    %v2633 = vpop.f32.mrb[0].mxu0
    %2634 = vmatprep.mubr.f32.mxu0 0.0
    %v2635 = vand.u32 %v1252, 4294901760
    %2636 = vmatmul.mubr.f32.gmra.mrb[0].mxu0 %v2635
    %v2637 = vpop.f32.mrb[0].mxu0
    %v2638 = vadd.f32 %v2522, %v2637
    %v2639 = vpop.f32.mrb[0].mxu0
    %2640 = vdwg.mxu0
    %2641 = vmatprep.subr.mxu0 0.0
    %v2642 = vand.u32 %v2006, 4294901760
    %2643 = vmatpush1.msra.mxu0 %v2642
    %2644 = vmatprep.subr.mxu0 0.0
    %2645 = vmatpush1.msra.mxu0 0.0
    %2646 = vmatprep.subr.mxu0 0.0
    %2647 = vmatpush1.msra.mxu0 0.0
    %2648 = vmatprep.subr.mxu0 0.0
    %2649 = vmatpush1.msra.mxu0 0.0
    %2650 = vmatprep.subr.mxu0 0.0
    %2651 = vmatpush1.msra.mxu0 0.0
    %2652 = vmatprep.subr.mxu0 0.0
    %2653 = vmatpush1.msra.mxu0 0.0
    %2654 = vmatprep.subr.mxu0 0.0
    %2655 = vmatpush1.msra.mxu0 0.0
    %2656 = vmatprep.subr.mxu0 0.0
    %2657 = vmatpush1.msra.mxu0 0.0
    %2658 = vmatprep.subr.mxu0 0.0
    %2659 = vmatpush1.msra.mxu0 0.0
    %2660 = vmatprep.subr.mxu0 0.0
    %2661 = vmatpush1.msra.mxu0 0.0
    %2662 = vmatprep.subr.mxu0 0.0
    %2663 = vmatpush1.msra.mxu0 0.0
    %2664 = vmatprep.subr.mxu0 0.0
    %2665 = vmatpush1.msra.mxu0 0.0
    %2666 = vmatprep.subr.mxu0 0.0
    %2667 = vmatpush1.msra.mxu0 0.0
    %2668 = vmatprep.subr.mxu0 0.0
    %2669 = vmatpush1.msra.mxu0 0.0
    %2670 = vmatprep.subr.mxu0 0.0
    %2671 = vmatpush1.msra.mxu0 0.0
    %2672 = vmatprep.subr.mxu0 0.0
    %2673 = vmatpush1.msra.mxu0 0.0
    %2674 = vmatprep.subr.mxu0 0.0
    %2675 = vmatpush1.msra.mxu0 0.0
    %2676 = vmatprep.subr.mxu0 0.0
    %2677 = vmatpush1.msra.mxu0 0.0
    %2678 = vmatprep.subr.mxu0 0.0
    %2679 = vmatpush1.msra.mxu0 0.0
    %2680 = vmatprep.subr.mxu0 0.0
    %2681 = vmatpush1.msra.mxu0 0.0
    %2682 = vmatprep.subr.mxu0 0.0
    %2683 = vmatpush1.msra.mxu0 0.0
    %2684 = vmatprep.subr.mxu0 0.0
    %2685 = vmatpush1.msra.mxu0 0.0
    %2686 = vmatprep.subr.mxu0 0.0
    %2687 = vmatpush1.msra.mxu0 0.0
    %2688 = vmatprep.subr.mxu0 0.0
    %2689 = vmatpush1.msra.mxu0 0.0
    %2690 = vmatprep.subr.mxu0 0.0
    %2691 = vmatpush1.msra.mxu0 0.0
    %2692 = vmatprep.subr.mxu0 0.0
    %2693 = vmatpush1.msra.mxu0 0.0
    %2694 = vmatprep.subr.mxu0 0.0
    %2695 = vmatpush1.msra.mxu0 0.0
    %2696 = vmatprep.subr.mxu0 0.0
    %2697 = vmatpush1.msra.mxu0 0.0
    %2698 = vmatprep.subr.mxu0 0.0
    %2699 = vmatpush1.msra.mxu0 0.0
    %2700 = vmatprep.subr.mxu0 0.0
    %2701 = vmatpush1.msra.mxu0 0.0
    %2702 = vmatprep.subr.mxu0 0.0
    %2703 = vmatpush1.msra.mxu0 0.0
    %2704 = vmatprep.subr.mxu0 0.0
    %2705 = vmatpush1.msra.mxu0 0.0
    %2706 = vmatprep.mubr.f32.mxu0 0.0
    %v2707 = vand.u32 %v1231, 4294901760
    %2708 = vmatmul.mubr.f32.gmra.mrb[0].mxu0 %v2707
    %v2709 = vpop.f32.mrb[0].mxu0
    %v2710 = vadd.f32 %v2596, %v2709
    %v2711 = vpop.f32.mrb[0].mxu0
    %2712 = vmatprep.mubr.f32.mxu0 0.0
    %v2713 = vand.u32 %v1234, 4294901760
    %2714 = vmatmul.mubr.f32.gmra.mrb[0].mxu0 %v2713
    %v2715 = vpop.f32.mrb[0].mxu0
    %v2716 = vadd.f32 %v2602, %v2715
    %v2717 = vpop.f32.mrb[0].mxu0
    %2718 = vmatprep.mubr.f32.mxu0 0.0
    %v2719 = vand.u32 %v1237, 4294901760
    %2720 = vmatmul.mubr.f32.gmra.mrb[0].mxu0 %v2719
    %v2721 = vpop.f32.mrb[0].mxu0
    %v2722 = vadd.f32 %v2608, %v2721
    %v2723 = vpop.f32.mrb[0].mxu0
    %2724 = vmatprep.mubr.f32.mxu0 0.0
    %v2725 = vand.u32 %v1240, 4294901760
    %2726 = vmatmul.mubr.f32.gmra.mrb[0].mxu0 %v2725
    %v2727 = vpop.f32.mrb[0].mxu0
    %v2728 = vadd.f32 %v2614, %v2727
    %v2729 = vpop.f32.mrb[0].mxu0
    %2730 = vmatprep.mubr.f32.mxu0 0.0
    %v2731 = vand.u32 %v1243, 4294901760
    %2732 = vmatmul.mubr.f32.gmra.mrb[0].mxu0 %v2731
    %v2733 = vpop.f32.mrb[0].mxu0
    %v2734 = vadd.f32 %v2620, %v2733
    %v2735 = vpop.f32.mrb[0].mxu0
    %2736 = vmatprep.mubr.f32.mxu0 0.0
    %v2737 = vand.u32 %v1246, 4294901760
    %2738 = vmatmul.mubr.f32.gmra.mrb[0].mxu0 %v2737
    %v2739 = vpop.f32.mrb[0].mxu0
    %v2740 = vadd.f32 %v2626, %v2739
    %v2741 = vpop.f32.mrb[0].mxu0
    %2742 = vmatprep.mubr.f32.mxu0 0.0
    %v2743 = vand.u32 %v1249, 4294901760
    %2744 = vmatmul.mubr.f32.gmra.mrb[0].mxu0 %v2743
    %v2745 = vpop.f32.mrb[0].mxu0
    %v2746 = vadd.f32 %v2632, %v2745
    %v2747 = vpop.f32.mrb[0].mxu0
    %2748 = vmatprep.mubr.f32.mxu0 0.0
    %v2749 = vand.u32 %v1252, 4294901760
    %2750 = vmatmul.mubr.f32.gmra.mrb[0].mxu0 %v2749
    %v2751 = vpop.f32.mrb[0].mxu0
    %v2752 = vadd.f32 %v2638, %v2751
    %v2753 = vpop.f32.mrb[0].mxu0
    %2754 = vdwg.mxu0
    %v2755 = vxor.u32 %v1960, 2147483648
    %v2756 = vxor.u32 %v1966, 2147483648
    %v2757 = vxor.u32 %v1972, 2147483648
    %v2758 = vxor.u32 %v1978, 2147483648
    %v2759 = vxor.u32 %v1984, 2147483648
    %v2760 = vxor.u32 %v1990, 2147483648
    %v2761 = vxor.u32 %v1996, 2147483648
    %v2762 = vxor.u32 %v2002, 2147483648
    %v2763 = vxor.u32 %v2710, 2147483648
    %v2764 = vxor.u32 %v2716, 2147483648
    %v2765 = vxor.u32 %v2722, 2147483648
    %v2766 = vxor.u32 %v2728, 2147483648
    %v2767 = vxor.u32 %v2734, 2147483648
    %v2768 = vxor.u32 %v2740, 2147483648
    %v2769 = vxor.u32 %v2746, 2147483648
    %v2770 = vxor.u32 %v2752, 2147483648
    %v2771 = vmul.f32 %v2755, 1.442695
    %v2772 = vpow.pop %v2771
    %v2773 = vmul.f32 %v2756, 1.442695
    %v2774 = vpow.pop %v2773
    %v2775 = vmul.f32 %v2757, 1.442695
    %v2776 = vpow.pop %v2775
    %v2777 = vmul.f32 %v2758, 1.442695
    %v2778 = vpow.pop %v2777
    %v2779 = vmul.f32 %v2759, 1.442695
    %v2780 = vpow.pop %v2779
    %v2781 = vmul.f32 %v2760, 1.442695
    %v2782 = vpow.pop %v2781
    %v2783 = vmul.f32 %v2761, 1.442695
    %v2784 = vpow.pop %v2783
    %v2785 = vmul.f32 %v2762, 1.442695
    %v2786 = vpow.pop %v2785
    %v2787 = vmul.f32 %v2763, 1.442695
    %v2788 = vpow.pop %v2787
    %v2789 = vmul.f32 %v2764, 1.442695
    %v2790 = vpow.pop %v2789
    %v2791 = vmul.f32 %v2765, 1.442695
    %v2792 = vpow.pop %v2791
    %v2793 = vmul.f32 %v2766, 1.442695
    %v2794 = vpow.pop %v2793
    %v2795 = vmul.f32 %v2767, 1.442695
    %v2796 = vpow.pop %v2795
    %v2797 = vmul.f32 %v2768, 1.442695
    %v2798 = vpow.pop %v2797
    %v2799 = vmul.f32 %v2769, 1.442695
    %v2800 = vpow.pop %v2799
    %v2801 = vmul.f32 %v2770, 1.442695
    %v2802 = vpow.pop %v2801
    %v2803 = vadd.f32 %v2772, 1.0
    %v2804 = vadd.f32 %v2774, 1.0
    %v2805 = vadd.f32 %v2776, 1.0
    %v2806 = vadd.f32 %v2778, 1.0
    %v2807 = vadd.f32 %v2780, 1.0
    %v2808 = vadd.f32 %v2782, 1.0
    %v2809 = vadd.f32 %v2784, 1.0
    %v2810 = vadd.f32 %v2786, 1.0
    %v2811 = vadd.f32 %v2788, 1.0
    %v2812 = vadd.f32 %v2790, 1.0
    %v2813 = vadd.f32 %v2792, 1.0
    %v2814 = vadd.f32 %v2794, 1.0
    %v2815 = vadd.f32 %v2796, 1.0
    %v2816 = vadd.f32 %v2798, 1.0
    %v2817 = vadd.f32 %v2800, 1.0
    %v2818 = vadd.f32 %v2802, 1.0
    %v2819 = vrcp.pop %v2803
    %v2820 = vmul.f32 1.0, %v2819
    %v2821 = vrcp.pop %v2804
    %v2822 = vmul.f32 1.0, %v2821
    %v2823 = vrcp.pop %v2805
    %v2824 = vmul.f32 1.0, %v2823
    %v2825 = vrcp.pop %v2806
    %v2826 = vmul.f32 1.0, %v2825
    %v2827 = vrcp.pop %v2807
    %v2828 = vmul.f32 1.0, %v2827
    %v2829 = vrcp.pop %v2808
    %v2830 = vmul.f32 1.0, %v2829
    %v2831 = vrcp.pop %v2809
    %v2832 = vmul.f32 1.0, %v2831
    %v2833 = vrcp.pop %v2810
    %v2834 = vmul.f32 1.0, %v2833
    %v2835 = vrcp.pop %v2811
    %v2836 = vmul.f32 1.0, %v2835
    %v2837 = vrcp.pop %v2812
    %v2838 = vmul.f32 1.0, %v2837
    %v2839 = vrcp.pop %v2813
    %v2840 = vmul.f32 1.0, %v2839
    %v2841 = vrcp.pop %v2814
    %v2842 = vmul.f32 1.0, %v2841
    %v2843 = vrcp.pop %v2815
    %v2844 = vmul.f32 1.0, %v2843
    %v2845 = vrcp.pop %v2816
    %v2846 = vmul.f32 1.0, %v2845
    %v2847 = vrcp.pop %v2817
    %v2848 = vmul.f32 1.0, %v2847
    %v2849 = vrcp.pop %v2818
    %v2850 = vmul.f32 1.0, %v2849
    %2852 = vset.pattern.permute.xlu0 0
    %2853 = vperm.xlu0 %2852, %v2820
    %v2854 = vpop.permute.xlu0 %2853
    %2857 = vset.pattern.permute.xlu0 0
    %2858 = vperm.xlu0 %2857, %v2822
    %v2859 = vpop.permute.xlu0 %2858
    %2862 = vset.pattern.permute.xlu0 0
    %2863 = vperm.xlu0 %2862, %v2824
    %v2864 = vpop.permute.xlu0 %2863
    %2867 = vset.pattern.permute.xlu0 0
    %2868 = vperm.xlu0 %2867, %v2826
    %v2869 = vpop.permute.xlu0 %2868
    %2872 = vset.pattern.permute.xlu0 0
    %2873 = vperm.xlu0 %2872, %v2828
    %v2874 = vpop.permute.xlu0 %2873
    %2877 = vset.pattern.permute.xlu0 0
    %2878 = vperm.xlu0 %2877, %v2830
    %v2879 = vpop.permute.xlu0 %2878
    %2882 = vset.pattern.permute.xlu0 0
    %2883 = vperm.xlu0 %2882, %v2832
    %v2884 = vpop.permute.xlu0 %2883
    %2887 = vset.pattern.permute.xlu0 0
    %2888 = vperm.xlu0 %2887, %v2834
    %v2889 = vpop.permute.xlu0 %2888
    %2892 = vset.pattern.permute.xlu0 0
    %2893 = vperm.xlu0 %2892, %v2836
    %v2894 = vpop.permute.xlu0 %2893
    %2897 = vset.pattern.permute.xlu0 0
    %2898 = vperm.xlu0 %2897, %v2838
    %v2899 = vpop.permute.xlu0 %2898
    %2902 = vset.pattern.permute.xlu0 0
    %2903 = vperm.xlu0 %2902, %v2840
    %v2904 = vpop.permute.xlu0 %2903
    %2907 = vset.pattern.permute.xlu0 0
    %2908 = vperm.xlu0 %2907, %v2842
    %v2909 = vpop.permute.xlu0 %2908
    %2912 = vset.pattern.permute.xlu0 0
    %2913 = vperm.xlu0 %2912, %v2844
    %v2914 = vpop.permute.xlu0 %2913
    %2917 = vset.pattern.permute.xlu0 0
    %2918 = vperm.xlu0 %2917, %v2846
    %v2919 = vpop.permute.xlu0 %2918
    %2922 = vset.pattern.permute.xlu0 0
    %2923 = vperm.xlu0 %2922, %v2848
    %v2924 = vpop.permute.xlu0 %2923
    %2927 = vset.pattern.permute.xlu0 0
    %2928 = vperm.xlu0 %2927, %v2850
    %v2929 = vpop.permute.xlu0 %2928
    %v2931 = vmul.f32 %v35, %v2854
    %v2932 = vmul.f32 %v36, %v2854
    %v2933 = vmul.f32 %v37, %v2859
    %v2934 = vmul.f32 %v38, %v2859
    %v2935 = vmul.f32 %v39, %v2864
    %v2936 = vmul.f32 %v40, %v2864
    %v2937 = vmul.f32 %v41, %v2869
    %v2938 = vmul.f32 %v42, %v2869
    %v2939 = vmul.f32 %v43, %v2874
    %v2940 = vmul.f32 %v44, %v2874
    %v2941 = vmul.f32 %v45, %v2879
    %v2942 = vmul.f32 %v46, %v2879
    %v2943 = vmul.f32 %v47, %v2884
    %v2944 = vmul.f32 %v48, %v2884
    %v2945 = vmul.f32 %v49, %v2889
    %v2946 = vmul.f32 %v50, %v2889
    %v2947 = vmul.f32 %v51, %v2894
    %v2948 = vmul.f32 %v52, %v2894
    %v2949 = vmul.f32 %v53, %v2899
    %v2950 = vmul.f32 %v54, %v2899
    %v2951 = vmul.f32 %v55, %v2904
    %v2952 = vmul.f32 %v56, %v2904
    %v2953 = vmul.f32 %v57, %v2909
    %v2954 = vmul.f32 %v58, %v2909
    %v2955 = vmul.f32 %v59, %v2914
    %v2956 = vmul.f32 %v60, %v2914
    %v2957 = vmul.f32 %v61, %v2919
    %v2958 = vmul.f32 %v62, %v2919
    %v2959 = vmul.f32 %v63, %v2924
    %v2960 = vmul.f32 %v64, %v2924
    %v2961 = vmul.f32 %v65, %v2929
    %v2962 = vmul.f32 %v66, %v2929
    %2963 = vst [vmem:[#allocation5] sm:$0xff] %v2931
    %2964 = vst [vmem:[#allocation5 + $0x8] sm:$0xff] %v2932
    %2965 = vst [vmem:[#allocation5 + $0x10] sm:$0xff] %v2933
    %2966 = vst [vmem:[#allocation5 + $0x18] sm:$0xff] %v2934
    %2967 = vst [vmem:[#allocation5 + $0x20] sm:$0xff] %v2935
    %2968 = vst [vmem:[#allocation5 + $0x28] sm:$0xff] %v2936
    %2969 = vst [vmem:[#allocation5 + $0x30] sm:$0xff] %v2937
    %2970 = vst [vmem:[#allocation5 + $0x38] sm:$0xff] %v2938
    %2971 = vst [vmem:[#allocation5 + $0x40] sm:$0xff] %v2939
    %2972 = vst [vmem:[#allocation5 + $0x48] sm:$0xff] %v2940
    %2973 = vst [vmem:[#allocation5 + $0x50] sm:$0xff] %v2941
    %2974 = vst [vmem:[#allocation5 + $0x58] sm:$0xff] %v2942
    %2975 = vst [vmem:[#allocation5 + $0x60] sm:$0xff] %v2943
    %2976 = vst [vmem:[#allocation5 + $0x68] sm:$0xff] %v2944
    %2977 = vst [vmem:[#allocation5 + $0x70] sm:$0xff] %v2945
    %2978 = vst [vmem:[#allocation5 + $0x78] sm:$0xff] %v2946
    %2979 = vst [vmem:[#allocation5 + $0x80] sm:$0xff] %v2947
    %2980 = vst [vmem:[#allocation5 + $0x88] sm:$0xff] %v2948
    %2981 = vst [vmem:[#allocation5 + $0x90] sm:$0xff] %v2949
    %2982 = vst [vmem:[#allocation5 + $0x98] sm:$0xff] %v2950
    %2983 = vst [vmem:[#allocation5 + $0xa0] sm:$0xff] %v2951
    %2984 = vst [vmem:[#allocation5 + $0xa8] sm:$0xff] %v2952
    %2985 = vst [vmem:[#allocation5 + $0xb0] sm:$0xff] %v2953
    %2986 = vst [vmem:[#allocation5 + $0xb8] sm:$0xff] %v2954
    %2987 = vst [vmem:[#allocation5 + $0xc0] sm:$0xff] %v2955
    %2988 = vst [vmem:[#allocation5 + $0xc8] sm:$0xff] %v2956
    %2989 = vst [vmem:[#allocation5 + $0xd0] sm:$0xff] %v2957
    %2990 = vst [vmem:[#allocation5 + $0xd8] sm:$0xff] %v2958
    %2991 = vst [vmem:[#allocation5 + $0xe0] sm:$0xff] %v2959
    %2992 = vst [vmem:[#allocation5 + $0xe8] sm:$0xff] %v2960
    %2993 = vst [vmem:[#allocation5 + $0xf0] sm:$0xff] %v2961
    %2994 = vst [vmem:[#allocation5 + $0xf8] sm:$0xff] %v2962
    // Predicated region
    $region26: #{tpu_custom_call.1} parent=1 // pred_check
      _
    $region27: #{tpu_custom_call.1} parent=1 // pred_check_branch
      %2996 = sbr.rel (0) target = $region29
    $region28: #{tpu_custom_call.1} parent=1 // pred_region
      %s2998 = ssub.s32 4096, 4096
      %2999 = vsyncadd [#allocation4], %s2998
      %s3000 = sshll.u32 [#allocation5], 4
      %s3001 = int_to_ptr.vmem [resolvable:$true] %s3000
      %3006 = dma.vmem_to_hbm [thread:$0]  %s3001, 4096, %s5, [#allocation4], 256, 256, 16
    $region29: #{tpu_custom_call.1} parent=1 // pred_fallthru
      _
    // Predicated region
    $region30: #{tpu_custom_call.1} parent=1 // pred_check
      _
    $region31: #{tpu_custom_call.1} parent=1 // pred_check_branch
      %3008 = sbr.rel (0) target = $region33
    $region32: #{tpu_custom_call.1} parent=1 // pred_region
      %3009 = dma.done [#allocation4], 4096
    $region33: #{tpu_custom_call.1} parent=1 // pred_fallthru
      _
    %3010 = vsyncpa [#allocation3], 1
    %3011 = vsyncpa [#allocation4], 1

</llo_original>
